<compile_context>
chip_gen: v7x
topology: tpu7x:2x2x1
jax: 0.10.0
libtpu: 0.0.40
codegen_flags: <defaults>
</compile_context>

<pallas_src>
import functools
import math

import jax
import jax.numpy as jnp
from jax.experimental import pallas as pl
from jax.experimental.pallas import tpu as pltpu

VMEM = pltpu.MemorySpace.VMEM


# ------------------------------ in-kernel helpers ----------------------------

def _add_layer_norm(x, res, g, b, eps):
    y = x + res
    mu = jnp.mean(y, axis=-1, keepdims=True)
    yc = y - mu
    var = jnp.mean(yc * yc, axis=-1, keepdims=True)
    return yc * jax.lax.rsqrt(var + eps) * g + b


def _softmax_last(s):
    s = s - jnp.max(s, axis=-1, keepdims=True)
    p = jnp.exp(s)
    return p * pl.reciprocal(jnp.sum(p, axis=-1, keepdims=True), approx=True)


# --------------------- fused transformer encoder layer ----------------------

def _encoder_layer_kernel(x_ref,
                          in_w_ref, in_b_ref, out_w_ref, out_b_ref,
                          ln1_g_ref, ln1_b_ref,
                          ff1_w_ref, ff1_b_ref, ff2_w_ref, ff2_b_ref,
                          ln2_g_ref, ln2_b_ref,
                          o_ref, *, nhead, eps):
    x = x_ref[...]                                   # (S, E)  one batch element
    s_len, e = x.shape
    dh = e // nhead
    scale = 1.0 / math.sqrt(dh)

    # QKV projection; head split via static lane slices (never leaves VMEM).
    qkv = jnp.dot(x, in_w_ref[...], preferred_element_type=jnp.float32) + in_b_ref[...]
    heads = []
    for h in range(nhead):
        q = qkv[:, h * dh:(h + 1) * dh]
        k = qkv[:, e + h * dh:e + (h + 1) * dh]
        v = qkv[:, 2 * e + h * dh:2 * e + (h + 1) * dh]
        sc = jax.lax.dot_general(q, k, (((1,), (1,)), ((), ())),
                                 preferred_element_type=jnp.float32) * scale
        p = _softmax_last(sc)                        # (S, S)
        heads.append(jnp.dot(p, v, preferred_element_type=jnp.float32))
    attn = jnp.concatenate(heads, axis=-1)           # (S, E)
    attn = jnp.dot(attn, out_w_ref[...], preferred_element_type=jnp.float32) + out_b_ref[...]

    x1 = _add_layer_norm(x, attn, ln1_g_ref[...], ln1_b_ref[...], eps)      # norm1(x + sa)
    ff = jnp.dot(x1, ff1_w_ref[...], preferred_element_type=jnp.float32) + ff1_b_ref[...]
    ff = jnp.maximum(ff, 0.0)
    ff = jnp.dot(ff, ff2_w_ref[...], preferred_element_type=jnp.float32) + ff2_b_ref[...]
    o_ref[...] = _add_layer_norm(x1, ff, ln2_g_ref[...], ln2_b_ref[...], eps)  # norm2(x + ffn)


def transformer_encoder_layer(x, lp, *, eps=1e-5):
    b, s, e = x.shape
    weights = [lp['in_proj_w'], lp['in_proj_b'], lp['out_proj_w'], lp['out_proj_b'],
               lp['ln1_g'], lp['ln1_b'],
               lp['ff1_w'], lp['ff1_b'], lp['ff2_w'], lp['ff2_b'],
               lp['ln2_g'], lp['ln2_b']]

    def const_spec(w):
        return pl.BlockSpec(w.shape, lambda i: (0,) * w.ndim)   # fetched once, VMEM resident

    return pl.pallas_call(
        functools.partial(_encoder_layer_kernel, nhead=lp['nhead'], eps=eps),
        out_shape=jax.ShapeDtypeStruct((b, s, e), jnp.float32),
        grid=(b,),
        in_specs=[pl.BlockSpec((None, s, e), lambda i: (i, 0, 0))]
                 + [const_spec(w) for w in weights],
        out_specs=pl.BlockSpec((None, s, e), lambda i: (i, 0, 0)),
        compiler_params=pltpu.CompilerParams(dimension_semantics=("parallel",)),
    )(x, *weights)


# ----------------------- fused teacher-forcing decoder -----------------------

def _decoder_kernel(dec_in_ref, h0_ref, c0_ref, enc_ref,
                    attn_w_ref, attn_b_ref, w_ih_ref, w_hh_ref,
                    b_ih_ref, b_hh_ref, proj_w_ref, proj_b_ref,
                    o_ref, *, hidden, p_steps):
    h = h0_ref[...]                                  # (B, H) previous hidden (attn query)
    c = c0_ref[...]                                  # (B, H) previous cell
    enc = enc_ref[...]                               # (B, E, S) literal torch reshape
    attn_w = attn_w_ref[...]
    attn_b = attn_b_ref[...]
    w_ih = w_ih_ref[...]
    w_hh = w_hh_ref[...]
    b_ih = b_ih_ref[...]
    b_hh = b_hh_ref[...]

    hn_rows = []
    for i in range(p_steps):                         # teacher forcing: inputs precomputed
        x = dec_in_ref[i]                            # (B, misc)
        cat = jnp.concatenate([x, h], axis=-1)       # (B, misc + H)
        scores = jnp.dot(cat, attn_w, preferred_element_type=jnp.float32) + attn_b   # (B, 96)
        aw = _softmax_last(scores)
        # bmm((B,E,S),(B,S,1)) -> (B,E); S == 96 by construction.
        # TODO(synk): switch to an MXU batched matvec once Mosaic matvec lowering verified.
        attn_applied = jnp.sum(enc * aw[:, None, :], axis=-1)                         # (B, H)

        # single-step single-layer LSTM, h0 = attention context (as in the reference)
        gates = (jnp.dot(x, w_ih, preferred_element_type=jnp.float32) + b_ih
                 + jnp.dot(attn_applied, w_hh, preferred_element_type=jnp.float32) + b_hh)
        i_g = jax.nn.sigmoid(gates[:, 0 * hidden:1 * hidden])
        f_g = jax.nn.sigmoid(gates[:, 1 * hidden:2 * hidden])
        g_g = jnp.tanh(gates[:, 2 * hidden:3 * hidden])
        o_g = jax.nn.sigmoid(gates[:, 3 * hidden:4 * hidden])
        c = f_g * c + i_g * g_g
        h = o_g * jnp.tanh(c)
        hn_rows.append(h)

    # hoisted output projections: one matmul over all steps, lane-padded (P*B, 128) store
    hn_all = jnp.concatenate(hn_rows, axis=0)        # (P*B, H), step-major like torch stack
    o_ref[...] = (jnp.dot(hn_all, proj_w_ref[...], preferred_element_type=jnp.float32)
                  + proj_b_ref[...])


def fused_decoder(dec_inputs, h0, c0, enc_r, dp, *, hidden, p_steps, out_width):
    b = h0.shape[0]
    return pl.pallas_call(
        functools.partial(_decoder_kernel, hidden=hidden, p_steps=p_steps),
        out_shape=jax.ShapeDtypeStruct((p_steps * b, out_width), jnp.float32),
        in_specs=[pl.BlockSpec(memory_space=VMEM)] * 12,
        out_specs=pl.BlockSpec(memory_space=VMEM),
    )(dec_inputs, h0, c0, enc_r,
      dp['attn_w'], dp['attn_b'], dp['w_ih'], dp['w_hh'],
      dp['b_ih'], dp['b_hh'], dp['proj_w'], dp['proj_b'])


# ------------------------------- model glue ---------------------------------

def encoder_forward(params, tokens, *, hidden):
    b, s = tokens.shape
    embeds = jnp.take(params['embedding'], tokens, axis=0)       # (B, S, E) gather (XLA glue)
    out = embeds
    for lp in params['encoder_layers']:
        out = transformer_encoder_layer(out, lp)
    h0 = jnp.zeros((b, hidden), jnp.float32)                     # h_0 / c_0 as in Encoder.__init__
    c0 = jnp.zeros((b, hidden), jnp.float32)
    return out, h0, c0


def encoder_decoder_forward(params, tokens, true_labels, cfg):
    b, s = tokens.shape
    na, nt = cfg['num_actions'], cfg['num_targets']
    p_steps, hidden = cfg['num_predictions'], cfg['hidden']
    assert s == 96, "decoder attention Linear emits 96 scores that are bmm'ed over the sequence"

    enc_out, h0, c0 = encoder_forward(params, tokens, hidden=hidden)

    # literal torch `.reshape(B, -1, S)` (row-major reshape, not a transpose)
    enc_r = enc_out.reshape(b, -1, s)                            # (B, E, S)

    # Precompute ALL teacher-forced decoder inputs (they never depend on decoder outputs):
    # step 0 = <SOS>, step i>0 = one-hots of true_labels[:, i-1].
    sos = jnp.concatenate([jax.nn.one_hot(jnp.array([0]), na + 3, dtype=jnp.float32),
                           jax.nn.one_hot(jnp.array([0]), nt + 3, dtype=jnp.float32)], axis=1)
    sos = jnp.tile(sos, (b, 1))[None]                            # (1, B, misc)
    tf_in = jnp.concatenate(
        [jax.nn.one_hot(true_labels[:, :p_steps - 1, 0], na + 3, dtype=jnp.float32),
         jax.nn.one_hot(true_labels[:, :p_steps - 1, 1], nt + 3, dtype=jnp.float32)],
        axis=-1)                                                 # (B, P-1, misc)
    tf_in = jnp.transpose(tf_in, (1, 0, 2))                      # (P-1, B, misc)
    dec_inputs = jnp.concatenate([sos, tf_in], axis=0)           # (P, B, misc)

    # Combined, lane-padded output projection (act | tgt | zero-pad to multiple of 128).
    dp = params['decoder']
    proj_w = jnp.concatenate([dp['act_w'], dp['tgt_w']], axis=1)
    proj_b = jnp.concatenate([dp['act_b'], dp['tgt_b']], axis=1)
    width = proj_w.shape[1]
    out_width = ((width + 127) // 128) * 128
    proj_w = jnp.pad(proj_w, ((0, 0), (0, out_width - width)))
    proj_b = jnp.pad(proj_b, ((0, 0), (0, out_width - width)))

    logits = fused_decoder(dec_inputs, h0, c0, enc_r,
                           dict(dp, proj_w=proj_w, proj_b=proj_b),
                           hidden=hidden, p_steps=p_steps, out_width=out_width)  # (P*B, 128)

    # literal torch reshape (P,B,C) -> (B,P,C), not a transpose
    action_preds = logits[:, :na + 3].reshape(b, p_steps, na + 3)
    target_preds = logits[:, na + 3:na + 3 + nt + 3].reshape(b, p_steps, nt + 3)
    return action_preds, target_preds


# ------------------------------- parameters ---------------------------------

def _uniform(key, shape, scale):
    return jax.random.uniform(key, shape, jnp.float32, minval=-scale, maxval=scale)


def init_params(key, *, vocab_size, embed_dim, ffn_dim, nhead, num_enc_layers,
                hidden, num_actions, num_targets):
    misc = num_actions + num_targets + 6
    keys = iter(jax.random.split(key, 64))

    emb = 0.1 * jax.random.normal(next(keys), (vocab_size, embed_dim), jnp.float32)
    emb = emb.at[0].set(0.0)                                     # padding_idx=0

    enc_layers = []
    se = 1.0 / math.sqrt(embed_dim)
    sf = 1.0 / math.sqrt(ffn_dim)
    for _ in range(num_enc_layers):
        enc_layers.append(dict(
            nhead=nhead,
            in_proj_w=_uniform(next(keys), (embed_dim, 3 * embed_dim), se),
            in_proj_b=jnp.zeros((1, 3 * embed_dim), jnp.float32),
            out_proj_w=_uniform(next(keys), (embed_dim, embed_dim), se),
            out_proj_b=jnp.zeros((1, embed_dim), jnp.float32),
            ln1_g=jnp.ones((1, embed_dim), jnp.float32),
            ln1_b=jnp.zeros((1, embed_dim), jnp.float32),
            ln2_g=jnp.ones((1, embed_dim), jnp.float32),
            ln2_b=jnp.zeros((1, embed_dim), jnp.float32),
            ff1_w=_uniform(next(keys), (embed_dim, ffn_dim), se),
            ff1_b=_uniform(next(keys), (1, ffn_dim), se),
            ff2_w=_uniform(next(keys), (ffn_dim, embed_dim), sf),
            ff2_b=_uniform(next(keys), (1, embed_dim), sf),
        ))

    sh = 1.0 / math.sqrt(hidden)
    sa = 1.0 / math.sqrt(misc + hidden)
    dec = dict(
        attn_w=_uniform(next(keys), (misc + hidden, 96), sa),
        attn_b=_uniform(next(keys), (1, 96), sa),
        w_ih=_uniform(next(keys), (misc, 4 * hidden), sh),
        w_hh=_uniform(next(keys), (hidden, 4 * hidden), sh),
        b_ih=_uniform(next(keys), (1, 4 * hidden), sh),
        b_hh=_uniform(next(keys), (1, 4 * hidden), sh),
        act_w=_uniform(next(keys), (hidden, num_actions + 3), sh),
        act_b=_uniform(next(keys), (1, num_actions + 3), sh),
        tgt_w=_uniform(next(keys), (hidden, num_targets + 3), sh),
        tgt_b=_uniform(next(keys), (1, num_targets + 3), sh),
    )
    return dict(embedding=emb, encoder_layers=enc_layers, decoder=dec)


# ----------------------------------- main ------------------------------------

if __name__ == "__main__":
    cfg = dict(
        vocab_size=50,
        embed_dim=32,        # encoder_embedding_dim == decoder_hidden_size (required by LSTM h0)
        hidden=32,           # encoder_hidden_size == decoder_hidden_size
        ffn_dim=2048,        # PyTorch TransformerEncoderLayer default dim_feedforward
        nhead=2,
        num_enc_layers=1,    # encoder_num_layers (also decoder_num_layers == 1)
        num_actions=8,
        num_targets=8,
        num_predictions=5,
        batch=2,
        seq=96,              # required: decoder attn bmm contracts 96 scores against seq
    )

    key = jax.random.PRNGKey(0)
    kp, kx, kl = jax.random.split(key, 3)

    params = init_params(
        kp, vocab_size=cfg['vocab_size'], embed_dim=cfg['embed_dim'],
        ffn_dim=cfg['ffn_dim'], nhead=cfg['nhead'],
        num_enc_layers=cfg['num_enc_layers'], hidden=cfg['hidden'],
        num_actions=cfg['num_actions'], num_targets=cfg['num_targets'])

    tokens = jax.random.randint(kx, (cfg['batch'], cfg['seq']), 1, cfg['vocab_size'],
                                dtype=jnp.int32)
    true_labels = jax.random.randint(kl, (cfg['batch'], cfg['num_predictions'], 2), 0,
                                     cfg['num_actions'] + 3, dtype=jnp.int32)

    action_preds, target_preds = encoder_decoder_forward(params, tokens, true_labels, cfg)
    jax.block_until_ready((action_preds, target_preds))

    assert action_preds.shape == (cfg['batch'], cfg['num_predictions'], cfg['num_actions'] + 3)
    assert target_preds.shape == (cfg['batch'], cfg['num_predictions'], cfg['num_targets'] + 3)
    print("KERNEL_OK")
</pallas_src>

<mosaic_0001>
module attributes {stable_mosaic.version = 11 : i64} {
  func.func @_encoder_layer_kernel(%arg0: i32, %arg1: memref<1x96x32xf32, #tpu.memory_space<vmem>>, %arg2: memref<32x96xf32, #tpu.memory_space<vmem>>, %arg3: memref<1x96xf32, #tpu.memory_space<vmem>>, %arg4: memref<32x32xf32, #tpu.memory_space<vmem>>, %arg5: memref<1x32xf32, #tpu.memory_space<vmem>>, %arg6: memref<1x32xf32, #tpu.memory_space<vmem>>, %arg7: memref<1x32xf32, #tpu.memory_space<vmem>>, %arg8: memref<32x2048xf32, #tpu.memory_space<vmem>>, %arg9: memref<1x2048xf32, #tpu.memory_space<vmem>>, %arg10: memref<2048x32xf32, #tpu.memory_space<vmem>>, %arg11: memref<1x32xf32, #tpu.memory_space<vmem>>, %arg12: memref<1x32xf32, #tpu.memory_space<vmem>>, %arg13: memref<1x32xf32, #tpu.memory_space<vmem>>, %arg14: memref<1x96x32xf32, #tpu.memory_space<vmem>>) attributes {dimension_semantics = [#tpu.dimension_semantics<parallel>], iteration_bounds = array<i64: 2>, scalar_prefetch = 0 : i64, scratch_operands = 0 : i64, tpu.core_type = #tpu.core_type<tc>, window_params = [{transform_indices = @transform_0, window_bounds = array<i64: 1, 96, 32>}, {pipeline_mode = #tpu.pipeline_mode<synchronous>, transform_indices = @transform_1, window_bounds = array<i64: 32, 96>}, {pipeline_mode = #tpu.pipeline_mode<synchronous>, transform_indices = @transform_2, window_bounds = array<i64: 1, 96>}, {pipeline_mode = #tpu.pipeline_mode<synchronous>, transform_indices = @transform_3, window_bounds = array<i64: 32, 32>}, {pipeline_mode = #tpu.pipeline_mode<synchronous>, transform_indices = @transform_4, window_bounds = array<i64: 1, 32>}, {pipeline_mode = #tpu.pipeline_mode<synchronous>, transform_indices = @transform_5, window_bounds = array<i64: 1, 32>}, {pipeline_mode = #tpu.pipeline_mode<synchronous>, transform_indices = @transform_6, window_bounds = array<i64: 1, 32>}, {pipeline_mode = #tpu.pipeline_mode<synchronous>, transform_indices = @transform_7, window_bounds = array<i64: 32, 2048>}, {pipeline_mode = #tpu.pipeline_mode<synchronous>, transform_indices = @transform_8, window_bounds = array<i64: 1, 2048>}, {pipeline_mode = #tpu.pipeline_mode<synchronous>, transform_indices = @transform_9, window_bounds = array<i64: 2048, 32>}, {pipeline_mode = #tpu.pipeline_mode<synchronous>, transform_indices = @transform_10, window_bounds = array<i64: 1, 32>}, {pipeline_mode = #tpu.pipeline_mode<synchronous>, transform_indices = @transform_11, window_bounds = array<i64: 1, 32>}, {pipeline_mode = #tpu.pipeline_mode<synchronous>, transform_indices = @transform_12, window_bounds = array<i64: 1, 32>}, {transform_indices = @transform_13, window_bounds = array<i64: 1, 96, 32>}]} {
    %c0 = arith.constant 0 : index
    %c0_0 = arith.constant 0 : index
    %c0_1 = arith.constant 0 : index
    %0 = vector.load %arg1[%c0, %c0_0, %c0_1] : memref<1x96x32xf32, #tpu.memory_space<vmem>>, vector<1x96x32xf32>
    %1 = vector.shape_cast %0 : vector<1x96x32xf32> to vector<96x32xf32>
    %c0_2 = arith.constant 0 : index
    %c0_3 = arith.constant 0 : index
    %2 = vector.load %arg2[%c0_2, %c0_3] : memref<32x96xf32, #tpu.memory_space<vmem>>, vector<32x96xf32>
    %cst = arith.constant dense<0.000000e+00> : vector<96x96xf32>
    %3 = tpu.matmul %1, %2, %cst {dimension_numbers = #tpu.dot_dimension_numbers<[1], [0], [0], [1], [0, 0, 1, 1], [], []>} : vector<96x32xf32>, vector<32x96xf32>, vector<96x96xf32> -> vector<96x96xf32>
    %c0_4 = arith.constant 0 : index
    %c0_5 = arith.constant 0 : index
    %4 = vector.load %arg3[%c0_4, %c0_5] : memref<1x96xf32, #tpu.memory_space<vmem>>, vector<1x96xf32>
    %5 = vector.broadcast %4 : vector<1x96xf32> to vector<96x96xf32>
    %6 = arith.addf %3, %5 : vector<96x96xf32>
    %7 = vector.extract_strided_slice %6 {offsets = [0, 0], sizes = [96, 16], strides = [1, 1]} : vector<96x96xf32> to vector<96x16xf32>
    %8 = vector.extract_strided_slice %6 {offsets = [0, 32], sizes = [96, 16], strides = [1, 1]} : vector<96x96xf32> to vector<96x16xf32>
    %9 = vector.extract_strided_slice %6 {offsets = [0, 64], sizes = [96, 16], strides = [1, 1]} : vector<96x96xf32> to vector<96x16xf32>
    %cst_6 = arith.constant dense<0.000000e+00> : vector<96x96xf32>
    %10 = tpu.matmul %7, %8, %cst_6 {dimension_numbers = #tpu.dot_dimension_numbers<[1], [1], [0], [0], [0, 0, 1, 0], [], []>} : vector<96x16xf32>, vector<96x16xf32>, vector<96x96xf32> -> vector<96x96xf32>
    %cst_7 = arith.constant 2.500000e-01 : f32
    %11 = vector.broadcast %cst_7 : f32 to vector<96x96xf32>
    %12 = arith.mulf %10, %11 : vector<96x96xf32>
    %cst_8 = arith.constant dense<0xFF800000> : vector<96xf32>
    %13 = vector.multi_reduction <maximumf>, %12, %cst_8 [1] : vector<96x96xf32> to vector<96xf32>
    %14 = vector.shape_cast %13 : vector<96xf32> to vector<96x1xf32>
    %15 = vector.broadcast %14 : vector<96x1xf32> to vector<96x96xf32>
    %16 = arith.subf %12, %15 : vector<96x96xf32>
    %17 = math.exp %16 : vector<96x96xf32>
    %cst_9 = arith.constant dense<0.000000e+00> : vector<96xf32>
    %18 = vector.multi_reduction <add>, %17, %cst_9 [1] : vector<96x96xf32> to vector<96xf32>
    %19 = vector.shape_cast %18 : vector<96xf32> to vector<96x1xf32>
    %20 = tpu.reciprocal %19 {approx = true} : vector<96x1xf32> -> vector<96x1xf32>
    %21 = vector.broadcast %20 : vector<96x1xf32> to vector<96x96xf32>
    %22 = arith.mulf %17, %21 : vector<96x96xf32>
    %cst_10 = arith.constant dense<0.000000e+00> : vector<96x16xf32>
    %23 = tpu.matmul %22, %9, %cst_10 {dimension_numbers = #tpu.dot_dimension_numbers<[1], [0], [0], [1], [0, 0, 1, 1], [], []>} : vector<96x96xf32>, vector<96x16xf32>, vector<96x16xf32> -> vector<96x16xf32>
    %24 = vector.extract_strided_slice %6 {offsets = [0, 16], sizes = [96, 16], strides = [1, 1]} : vector<96x96xf32> to vector<96x16xf32>
    %25 = vector.extract_strided_slice %6 {offsets = [0, 48], sizes = [96, 16], strides = [1, 1]} : vector<96x96xf32> to vector<96x16xf32>
    %26 = vector.extract_strided_slice %6 {offsets = [0, 80], sizes = [96, 16], strides = [1, 1]} : vector<96x96xf32> to vector<96x16xf32>
    %cst_11 = arith.constant dense<0.000000e+00> : vector<96x96xf32>
    %27 = tpu.matmul %24, %25, %cst_11 {dimension_numbers = #tpu.dot_dimension_numbers<[1], [1], [0], [0], [0, 0, 1, 0], [], []>} : vector<96x16xf32>, vector<96x16xf32>, vector<96x96xf32> -> vector<96x96xf32>
    %cst_12 = arith.constant 2.500000e-01 : f32
    %28 = vector.broadcast %cst_12 : f32 to vector<96x96xf32>
    %29 = arith.mulf %27, %28 : vector<96x96xf32>
    %cst_13 = arith.constant dense<0xFF800000> : vector<96xf32>
    %30 = vector.multi_reduction <maximumf>, %29, %cst_13 [1] : vector<96x96xf32> to vector<96xf32>
    %31 = vector.shape_cast %30 : vector<96xf32> to vector<96x1xf32>
    %32 = vector.broadcast %31 : vector<96x1xf32> to vector<96x96xf32>
    %33 = arith.subf %29, %32 : vector<96x96xf32>
    %34 = math.exp %33 : vector<96x96xf32>
    %cst_14 = arith.constant dense<0.000000e+00> : vector<96xf32>
    %35 = vector.multi_reduction <add>, %34, %cst_14 [1] : vector<96x96xf32> to vector<96xf32>
    %36 = vector.shape_cast %35 : vector<96xf32> to vector<96x1xf32>
    %37 = tpu.reciprocal %36 {approx = true} : vector<96x1xf32> -> vector<96x1xf32>
    %38 = vector.broadcast %37 : vector<96x1xf32> to vector<96x96xf32>
    %39 = arith.mulf %34, %38 : vector<96x96xf32>
    %cst_15 = arith.constant dense<0.000000e+00> : vector<96x16xf32>
    %40 = tpu.matmul %39, %26, %cst_15 {dimension_numbers = #tpu.dot_dimension_numbers<[1], [0], [0], [1], [0, 0, 1, 1], [], []>} : vector<96x96xf32>, vector<96x16xf32>, vector<96x16xf32> -> vector<96x16xf32>
    %41 = tpu.concatenate %23, %40 in 1 : vector<96x16xf32>, vector<96x16xf32> -> vector<96x32xf32>
    %c0_16 = arith.constant 0 : index
    %c0_17 = arith.constant 0 : index
    %42 = vector.load %arg4[%c0_16, %c0_17] : memref<32x32xf32, #tpu.memory_space<vmem>>, vector<32x32xf32>
    %cst_18 = arith.constant dense<0.000000e+00> : vector<96x32xf32>
    %43 = tpu.matmul %41, %42, %cst_18 {dimension_numbers = #tpu.dot_dimension_numbers<[1], [0], [0], [1], [0, 0, 1, 1], [], []>} : vector<96x32xf32>, vector<32x32xf32>, vector<96x32xf32> -> vector<96x32xf32>
    %c0_19 = arith.constant 0 : index
    %c0_20 = arith.constant 0 : index
    %44 = vector.load %arg5[%c0_19, %c0_20] : memref<1x32xf32, #tpu.memory_space<vmem>>, vector<1x32xf32>
    %45 = vector.broadcast %44 : vector<1x32xf32> to vector<96x32xf32>
    %46 = arith.addf %43, %45 : vector<96x32xf32>
    %c0_21 = arith.constant 0 : index
    %c0_22 = arith.constant 0 : index
    %47 = vector.load %arg6[%c0_21, %c0_22] : memref<1x32xf32, #tpu.memory_space<vmem>>, vector<1x32xf32>
    %c0_23 = arith.constant 0 : index
    %c0_24 = arith.constant 0 : index
    %48 = vector.load %arg7[%c0_23, %c0_24] : memref<1x32xf32, #tpu.memory_space<vmem>>, vector<1x32xf32>
    %49 = arith.addf %1, %46 : vector<96x32xf32>
    %cst_25 = arith.constant dense<0.000000e+00> : vector<96xf32>
    %50 = vector.multi_reduction <add>, %49, %cst_25 [1] : vector<96x32xf32> to vector<96xf32>
    %51 = vector.shape_cast %50 : vector<96xf32> to vector<96x1xf32>
    %cst_26 = arith.constant 3.200000e+01 : f32
    %52 = vector.broadcast %cst_26 : f32 to vector<96x1xf32>
    %53 = arith.divf %51, %52 : vector<96x1xf32>
    %54 = vector.broadcast %53 : vector<96x1xf32> to vector<96x32xf32>
    %55 = arith.subf %49, %54 : vector<96x32xf32>
    %56 = arith.mulf %55, %55 : vector<96x32xf32>
    %cst_27 = arith.constant dense<0.000000e+00> : vector<96xf32>
    %57 = vector.multi_reduction <add>, %56, %cst_27 [1] : vector<96x32xf32> to vector<96xf32>
    %58 = vector.shape_cast %57 : vector<96xf32> to vector<96x1xf32>
    %cst_28 = arith.constant 3.200000e+01 : f32
    %59 = vector.broadcast %cst_28 : f32 to vector<96x1xf32>
    %60 = arith.divf %58, %59 : vector<96x1xf32>
    %cst_29 = arith.constant 9.99999974E-6 : f32
    %61 = vector.broadcast %cst_29 : f32 to vector<96x1xf32>
    %62 = arith.addf %60, %61 : vector<96x1xf32>
    %63 = math.rsqrt %62 : vector<96x1xf32>
    %64 = vector.broadcast %63 : vector<96x1xf32> to vector<96x32xf32>
    %65 = arith.mulf %55, %64 : vector<96x32xf32>
    %66 = vector.broadcast %47 : vector<1x32xf32> to vector<96x32xf32>
    %67 = arith.mulf %65, %66 : vector<96x32xf32>
    %68 = vector.broadcast %48 : vector<1x32xf32> to vector<96x32xf32>
    %69 = arith.addf %67, %68 : vector<96x32xf32>
    %c0_30 = arith.constant 0 : index
    %c0_31 = arith.constant 0 : index
    %70 = vector.load %arg8[%c0_30, %c0_31] : memref<32x2048xf32, #tpu.memory_space<vmem>>, vector<32x2048xf32>
    %cst_32 = arith.constant dense<0.000000e+00> : vector<96x2048xf32>
    %71 = tpu.matmul %69, %70, %cst_32 {dimension_numbers = #tpu.dot_dimension_numbers<[1], [0], [0], [1], [0, 0, 1, 1], [], []>} : vector<96x32xf32>, vector<32x2048xf32>, vector<96x2048xf32> -> vector<96x2048xf32>
    %c0_33 = arith.constant 0 : index
    %c0_34 = arith.constant 0 : index
    %72 = vector.load %arg9[%c0_33, %c0_34] : memref<1x2048xf32, #tpu.memory_space<vmem>>, vector<1x2048xf32>
    %73 = vector.broadcast %72 : vector<1x2048xf32> to vector<96x2048xf32>
    %74 = arith.addf %71, %73 : vector<96x2048xf32>
    %cst_35 = arith.constant 0.000000e+00 : f32
    %75 = vector.broadcast %cst_35 : f32 to vector<96x2048xf32>
    %76 = arith.maximumf %74, %75 : vector<96x2048xf32>
    %c0_36 = arith.constant 0 : index
    %c0_37 = arith.constant 0 : index
    %77 = vector.load %arg10[%c0_36, %c0_37] : memref<2048x32xf32, #tpu.memory_space<vmem>>, vector<2048x32xf32>
    %cst_38 = arith.constant dense<0.000000e+00> : vector<96x32xf32>
    %78 = tpu.matmul %76, %77, %cst_38 {dimension_numbers = #tpu.dot_dimension_numbers<[1], [0], [0], [1], [0, 0, 1, 1], [], []>} : vector<96x2048xf32>, vector<2048x32xf32>, vector<96x32xf32> -> vector<96x32xf32>
    %c0_39 = arith.constant 0 : index
    %c0_40 = arith.constant 0 : index
    %79 = vector.load %arg11[%c0_39, %c0_40] : memref<1x32xf32, #tpu.memory_space<vmem>>, vector<1x32xf32>
    %80 = vector.broadcast %79 : vector<1x32xf32> to vector<96x32xf32>
    %81 = arith.addf %78, %80 : vector<96x32xf32>
    %c0_41 = arith.constant 0 : index
    %c0_42 = arith.constant 0 : index
    %82 = vector.load %arg12[%c0_41, %c0_42] : memref<1x32xf32, #tpu.memory_space<vmem>>, vector<1x32xf32>
    %c0_43 = arith.constant 0 : index
    %c0_44 = arith.constant 0 : index
    %83 = vector.load %arg13[%c0_43, %c0_44] : memref<1x32xf32, #tpu.memory_space<vmem>>, vector<1x32xf32>
    %84 = arith.addf %69, %81 : vector<96x32xf32>
    %cst_45 = arith.constant dense<0.000000e+00> : vector<96xf32>
    %85 = vector.multi_reduction <add>, %84, %cst_45 [1] : vector<96x32xf32> to vector<96xf32>
    %86 = vector.shape_cast %85 : vector<96xf32> to vector<96x1xf32>
    %cst_46 = arith.constant 3.200000e+01 : f32
    %87 = vector.broadcast %cst_46 : f32 to vector<96x1xf32>
    %88 = arith.divf %86, %87 : vector<96x1xf32>
    %89 = vector.broadcast %88 : vector<96x1xf32> to vector<96x32xf32>
    %90 = arith.subf %84, %89 : vector<96x32xf32>
    %91 = arith.mulf %90, %90 : vector<96x32xf32>
    %cst_47 = arith.constant dense<0.000000e+00> : vector<96xf32>
    %92 = vector.multi_reduction <add>, %91, %cst_47 [1] : vector<96x32xf32> to vector<96xf32>
    %93 = vector.shape_cast %92 : vector<96xf32> to vector<96x1xf32>
    %cst_48 = arith.constant 3.200000e+01 : f32
    %94 = vector.broadcast %cst_48 : f32 to vector<96x1xf32>
    %95 = arith.divf %93, %94 : vector<96x1xf32>
    %cst_49 = arith.constant 9.99999974E-6 : f32
    %96 = vector.broadcast %cst_49 : f32 to vector<96x1xf32>
    %97 = arith.addf %95, %96 : vector<96x1xf32>
    %98 = math.rsqrt %97 : vector<96x1xf32>
    %99 = vector.broadcast %98 : vector<96x1xf32> to vector<96x32xf32>
    %100 = arith.mulf %90, %99 : vector<96x32xf32>
    %101 = vector.broadcast %82 : vector<1x32xf32> to vector<96x32xf32>
    %102 = arith.mulf %100, %101 : vector<96x32xf32>
    %103 = vector.broadcast %83 : vector<1x32xf32> to vector<96x32xf32>
    %104 = arith.addf %102, %103 : vector<96x32xf32>
    %c0_50 = arith.constant 0 : index
    %c0_51 = arith.constant 0 : index
    %c0_52 = arith.constant 0 : index
    %105 = vector.load %arg14[%c0_50, %c0_51, %c0_52] : memref<1x96x32xf32, #tpu.memory_space<vmem>>, vector<1x96x32xf32>
    %106 = vector.shape_cast %105 : vector<1x96x32xf32> to vector<96x32xf32>
    %107 = vector.shape_cast %104 : vector<96x32xf32> to vector<1x96x32xf32>
    tpu.vector_store %arg14[%c0_50, %c0_51, %c0_52], %107 {strides = array<i32>} : memref<1x96x32xf32, #tpu.memory_space<vmem>>, vector<1x96x32xf32>,
    return
  }
  func.func @transform_0(%arg0: i32) -> (i32, i32, i32) {
    %c0_i32 = arith.constant 0 : i32
    %c0_i32_0 = arith.constant 0 : i32
    %c0_i32_1 = arith.constant 0 : i32
    return %arg0, %c0_i32, %c0_i32_0 : i32, i32, i32
  }
  func.func @transform_1(%arg0: i32) -> (i32, i32) {
    %c0_i32 = arith.constant 0 : i32
    %c0_i32_0 = arith.constant 0 : i32
    %c0_i32_1 = arith.constant 0 : i32
    return %c0_i32, %c0_i32_0 : i32, i32
  }
  func.func @transform_2(%arg0: i32) -> (i32, i32) {
    %c0_i32 = arith.constant 0 : i32
    %c0_i32_0 = arith.constant 0 : i32
    %c0_i32_1 = arith.constant 0 : i32
    return %c0_i32, %c0_i32_0 : i32, i32
  }
  func.func @transform_3(%arg0: i32) -> (i32, i32) {
    %c0_i32 = arith.constant 0 : i32
    %c0_i32_0 = arith.constant 0 : i32
    %c0_i32_1 = arith.constant 0 : i32
    return %c0_i32, %c0_i32_0 : i32, i32
  }
  func.func @transform_4(%arg0: i32) -> (i32, i32) {
    %c0_i32 = arith.constant 0 : i32
    %c0_i32_0 = arith.constant 0 : i32
    %c0_i32_1 = arith.constant 0 : i32
    return %c0_i32, %c0_i32_0 : i32, i32
  }
  func.func @transform_5(%arg0: i32) -> (i32, i32) {
    %c0_i32 = arith.constant 0 : i32
    %c0_i32_0 = arith.constant 0 : i32
    %c0_i32_1 = arith.constant 0 : i32
    return %c0_i32, %c0_i32_0 : i32, i32
  }
  func.func @transform_6(%arg0: i32) -> (i32, i32) {
    %c0_i32 = arith.constant 0 : i32
    %c0_i32_0 = arith.constant 0 : i32
    %c0_i32_1 = arith.constant 0 : i32
    return %c0_i32, %c0_i32_0 : i32, i32
  }
  func.func @transform_7(%arg0: i32) -> (i32, i32) {
    %c0_i32 = arith.constant 0 : i32
    %c0_i32_0 = arith.constant 0 : i32
    %c0_i32_1 = arith.constant 0 : i32
    return %c0_i32, %c0_i32_0 : i32, i32
  }
  func.func @transform_8(%arg0: i32) -> (i32, i32) {
    %c0_i32 = arith.constant 0 : i32
    %c0_i32_0 = arith.constant 0 : i32
    %c0_i32_1 = arith.constant 0 : i32
    return %c0_i32, %c0_i32_0 : i32, i32
  }
  func.func @transform_9(%arg0: i32) -> (i32, i32) {
    %c0_i32 = arith.constant 0 : i32
    %c0_i32_0 = arith.constant 0 : i32
    %c0_i32_1 = arith.constant 0 : i32
    return %c0_i32, %c0_i32_0 : i32, i32
  }
  func.func @transform_10(%arg0: i32) -> (i32, i32) {
    %c0_i32 = arith.constant 0 : i32
    %c0_i32_0 = arith.constant 0 : i32
    %c0_i32_1 = arith.constant 0 : i32
    return %c0_i32, %c0_i32_0 : i32, i32
  }
  func.func @transform_11(%arg0: i32) -> (i32, i32) {
    %c0_i32 = arith.constant 0 : i32
    %c0_i32_0 = arith.constant 0 : i32
    %c0_i32_1 = arith.constant 0 : i32
    return %c0_i32, %c0_i32_0 : i32, i32
  }
  func.func @transform_12(%arg0: i32) -> (i32, i32) {
    %c0_i32 = arith.constant 0 : i32
    %c0_i32_0 = arith.constant 0 : i32
    %c0_i32_1 = arith.constant 0 : i32
    return %c0_i32, %c0_i32_0 : i32, i32
  }
  func.func @transform_13(%arg0: i32) -> (i32, i32, i32) {
    %c0_i32 = arith.constant 0 : i32
    %c0_i32_0 = arith.constant 0 : i32
    %c0_i32_1 = arith.constant 0 : i32
    return %arg0, %c0_i32, %c0_i32_0 : i32, i32, i32
  }
}

</mosaic_0001>

<llo_original>
// kernel: tpu_custom_call.1
$region0: #{tpu_custom_call.1}
  #allocation0 [shape = 'u32[]', space=smem, size = 0x4, offset = 0x4, fixed_abs, tag = 'smem constant byte address 0x4 - core index']
  #allocation1 [shape = 'u32[144,128]{1,0:T(1,128)}', space=vmem, size = 0x12000, scoped, tag = 'internal scratch']
  %s0 = inlined_call_operand.vmem [shape: f32[2,96,32], index: 0, kind: input, shape index: {}]
  %s1 = inlined_call_operand.vmem [shape: f32[32,96], index: 1, kind: input, shape index: {}]
  %s2 = inlined_call_operand.vmem [shape: f32[1,96], index: 2, kind: input, shape index: {}]
  %s3 = inlined_call_operand.vmem [shape: f32[32,32], index: 3, kind: input, shape index: {}]
  %s4 = inlined_call_operand.vmem [shape: f32[1,32], index: 4, kind: input, shape index: {}]
  %s5 = inlined_call_operand.vmem [shape: f32[1,32], index: 5, kind: input, shape index: {}]
  %s6 = inlined_call_operand.vmem [shape: f32[1,32], index: 6, kind: input, shape index: {}]
  %s7 = inlined_call_operand.vmem [shape: f32[32,2048], index: 7, kind: input, shape index: {}]
  %s8 = inlined_call_operand.vmem [shape: f32[1,2048], index: 8, kind: input, shape index: {}]
  %s9 = inlined_call_operand.vmem [shape: f32[2048,32], index: 9, kind: input, shape index: {}]
  %s10 = inlined_call_operand.vmem [shape: f32[1,32], index: 10, kind: input, shape index: {}]
  %s11 = inlined_call_operand.vmem [shape: f32[1,32], index: 11, kind: input, shape index: {}]
  %s12 = inlined_call_operand.vmem [shape: f32[1,32], index: 12, kind: input, shape index: {}]
  %s13 = inlined_call_operand.vmem [shape: f32[2,96,32], index: 13, kind: output, shape index: {}]
  %s14 = sld [smem:[#allocation0]]
  $region85: #{tpu_custom_call.1} parent=0
    _
  %s16 = ssub.s32 1, %s14
  %s17 = scalar_select 0, %s16, %s14
  loop: start=0, step=1, limit=4
  $region2: #{tpu_custom_call.1} parent=0 // loop_pre_header
    _
  $region3: #{tpu_custom_call.1} parent=0 // loop_header
    %s19 = sphi 0, %s23
    %p20 = scmp.ge.s32.totalorder %s19, 4
    %s29 = sphi 0, %s31
    %s32 = sphi 0, %s29
    %s33 = sphi 0, %s32
    %s49 = sphi 0, %s33
    %s53 = sphi 0, %s53
    %s55 = sphi 0, %s53
    %s56 = sphi 0, %s55
    %s70 = sphi 0, %s56
    %s74 = sphi 0, %s74
    %s76 = sphi 0, %s74
    %s77 = sphi 0, %s76
    %s91 = sphi 0, %s77
    %s95 = sphi 0, %s95
    %s97 = sphi 0, %s95
    %s98 = sphi 0, %s97
    %s112 = sphi 0, %s98
    %s116 = sphi 0, %s116
    %s118 = sphi 0, %s116
    %s119 = sphi 0, %s118
    %s133 = sphi 0, %s119
    %s137 = sphi 0, %s137
    %s139 = sphi 0, %s137
    %s140 = sphi 0, %s139
    %s154 = sphi 0, %s140
    %s158 = sphi 0, %s158
    %s160 = sphi 0, %s158
    %s161 = sphi 0, %s160
    %s175 = sphi 0, %s161
    %s179 = sphi 0, %s179
    %s181 = sphi 0, %s179
    %s182 = sphi 0, %s181
    %s196 = sphi 0, %s182
    %s200 = sphi 0, %s200
    %s202 = sphi 0, %s200
    %s203 = sphi 0, %s202
    %s217 = sphi 0, %s203
    %s221 = sphi 0, %s221
    %s223 = sphi 0, %s221
    %s224 = sphi 0, %s223
    %s238 = sphi 0, %s224
    %s242 = sphi 0, %s242
    %s244 = sphi 0, %s242
    %s245 = sphi 0, %s244
    %s259 = sphi 0, %s245
    %s263 = sphi 0, %s263
    %s265 = sphi 0, %s263
    %s266 = sphi 0, %s265
    %s280 = sphi 0, %s266
    %s284 = sphi 0, %s284
    %s286 = sphi 0, %s284
    %s287 = sphi 0, %s286
    %s301 = sphi 0, %s287
    %s307 = sphi 0, %s309
    %s310 = sphi 0, %s307
    %s311 = sphi 0, %s310
    %s327 = sphi 0, %s311
  $region4: #{tpu_custom_call.1} parent=0 // loop_header_branch
    %22 = sbr.rel (%p20) target = $region8
  $region5: #{tpu_custom_call.1} parent=0 // loop_body
    %s24 = ssub.s32 %s19, 1
    %s25 = ssub.s32 %s19, 2
    %s26 = sadd.s32 %s19, 1
    %s27 = ssub.s32 %s19, %s26
    %p28 = scmp.eq.s32.totalorder %s27, 0
    %s30 = sadd.s32 %s29, 1
    %s31 = scalar_select %p28, %s29, %s30
    %p34 = pneg %p28
    %p35 = scmp.eq.s32.totalorder %s19, 1
    %p36 = por %p34, %p35
    %p37 = scmp.ne.s32.totalorder %s29, %s32
    %p38 = scmp.eq.s32.totalorder %s19, 0
    %p39 = por %p37, %p38
    %p40 = scmp.ne.s32.totalorder %s29, %s32
    %p41 = scmp.eq.s32.totalorder %s24, 1
    %p42 = por %p40, %p41
    %p43 = scmp.ne.s32.totalorder %s32, %s33
    %p44 = scmp.eq.s32.totalorder %s24, 0
    %p45 = por %p43, %p44
    %p46 = scmp.ne.s32.totalorder %s32, %s33
    %p47 = scmp.eq.s32.totalorder %s25, 1
    %p48 = por %p46, %p47
    %p50 = scmp.ne.s32.totalorder %s33, %s49
    %p51 = scmp.eq.s32.totalorder %s25, 0
    %p52 = por %p50, %p51
    %s54 = sadd.s32 %s53, 1
    %p57 = scmp.eq.s32.totalorder %s19, 1
    %p58 = scmp.ne.s32.totalorder %s53, %s55
    %p59 = scmp.eq.s32.totalorder %s19, 0
    %p60 = por %p58, %p59
    %p61 = scmp.ne.s32.totalorder %s53, %s55
    %p62 = scmp.eq.s32.totalorder %s24, 1
    %p63 = por %p61, %p62
    %p64 = scmp.ne.s32.totalorder %s55, %s56
    %p65 = scmp.eq.s32.totalorder %s24, 0
    %p66 = por %p64, %p65
    %p67 = scmp.ne.s32.totalorder %s55, %s56
    %p68 = scmp.eq.s32.totalorder %s25, 1
    %p69 = por %p67, %p68
    %p71 = scmp.ne.s32.totalorder %s56, %s70
    %p72 = scmp.eq.s32.totalorder %s25, 0
    %p73 = por %p71, %p72
    %s75 = sadd.s32 %s74, 1
    %p78 = scmp.eq.s32.totalorder %s19, 1
    %p79 = scmp.ne.s32.totalorder %s74, %s76
    %p80 = scmp.eq.s32.totalorder %s19, 0
    %p81 = por %p79, %p80
    %p82 = scmp.ne.s32.totalorder %s74, %s76
    %p83 = scmp.eq.s32.totalorder %s24, 1
    %p84 = por %p82, %p83
    %p85 = scmp.ne.s32.totalorder %s76, %s77
    %p86 = scmp.eq.s32.totalorder %s24, 0
    %p87 = por %p85, %p86
    %p88 = scmp.ne.s32.totalorder %s76, %s77
    %p89 = scmp.eq.s32.totalorder %s25, 1
    %p90 = por %p88, %p89
    %p92 = scmp.ne.s32.totalorder %s77, %s91
    %p93 = scmp.eq.s32.totalorder %s25, 0
    %p94 = por %p92, %p93
    %s96 = sadd.s32 %s95, 1
    %p99 = scmp.eq.s32.totalorder %s19, 1
    %p100 = scmp.ne.s32.totalorder %s95, %s97
    %p101 = scmp.eq.s32.totalorder %s19, 0
    %p102 = por %p100, %p101
    %p103 = scmp.ne.s32.totalorder %s95, %s97
    %p104 = scmp.eq.s32.totalorder %s24, 1
    %p105 = por %p103, %p104
    %p106 = scmp.ne.s32.totalorder %s97, %s98
    %p107 = scmp.eq.s32.totalorder %s24, 0
    %p108 = por %p106, %p107
    %p109 = scmp.ne.s32.totalorder %s97, %s98
    %p110 = scmp.eq.s32.totalorder %s25, 1
    %p111 = por %p109, %p110
    %p113 = scmp.ne.s32.totalorder %s98, %s112
    %p114 = scmp.eq.s32.totalorder %s25, 0
    %p115 = por %p113, %p114
    %s117 = sadd.s32 %s116, 1
    %p120 = scmp.eq.s32.totalorder %s19, 1
    %p121 = scmp.ne.s32.totalorder %s116, %s118
    %p122 = scmp.eq.s32.totalorder %s19, 0
    %p123 = por %p121, %p122
    %p124 = scmp.ne.s32.totalorder %s116, %s118
    %p125 = scmp.eq.s32.totalorder %s24, 1
    %p126 = por %p124, %p125
    %p127 = scmp.ne.s32.totalorder %s118, %s119
    %p128 = scmp.eq.s32.totalorder %s24, 0
    %p129 = por %p127, %p128
    %p130 = scmp.ne.s32.totalorder %s118, %s119
    %p131 = scmp.eq.s32.totalorder %s25, 1
    %p132 = por %p130, %p131
    %p134 = scmp.ne.s32.totalorder %s119, %s133
    %p135 = scmp.eq.s32.totalorder %s25, 0
    %p136 = por %p134, %p135
    %s138 = sadd.s32 %s137, 1
    %p141 = scmp.eq.s32.totalorder %s19, 1
    %p142 = scmp.ne.s32.totalorder %s137, %s139
    %p143 = scmp.eq.s32.totalorder %s19, 0
    %p144 = por %p142, %p143
    %p145 = scmp.ne.s32.totalorder %s137, %s139
    %p146 = scmp.eq.s32.totalorder %s24, 1
    %p147 = por %p145, %p146
    %p148 = scmp.ne.s32.totalorder %s139, %s140
    %p149 = scmp.eq.s32.totalorder %s24, 0
    %p150 = por %p148, %p149
    %p151 = scmp.ne.s32.totalorder %s139, %s140
    %p152 = scmp.eq.s32.totalorder %s25, 1
    %p153 = por %p151, %p152
    %p155 = scmp.ne.s32.totalorder %s140, %s154
    %p156 = scmp.eq.s32.totalorder %s25, 0
    %p157 = por %p155, %p156
    %s159 = sadd.s32 %s158, 1
    %p162 = scmp.eq.s32.totalorder %s19, 1
    %p163 = scmp.ne.s32.totalorder %s158, %s160
    %p164 = scmp.eq.s32.totalorder %s19, 0
    %p165 = por %p163, %p164
    %p166 = scmp.ne.s32.totalorder %s158, %s160
    %p167 = scmp.eq.s32.totalorder %s24, 1
    %p168 = por %p166, %p167
    %p169 = scmp.ne.s32.totalorder %s160, %s161
    %p170 = scmp.eq.s32.totalorder %s24, 0
    %p171 = por %p169, %p170
    %p172 = scmp.ne.s32.totalorder %s160, %s161
    %p173 = scmp.eq.s32.totalorder %s25, 1
    %p174 = por %p172, %p173
    %p176 = scmp.ne.s32.totalorder %s161, %s175
    %p177 = scmp.eq.s32.totalorder %s25, 0
    %p178 = por %p176, %p177
    %s180 = sadd.s32 %s179, 1
    %p183 = scmp.eq.s32.totalorder %s19, 1
    %p184 = scmp.ne.s32.totalorder %s179, %s181
    %p185 = scmp.eq.s32.totalorder %s19, 0
    %p186 = por %p184, %p185
    %p187 = scmp.ne.s32.totalorder %s179, %s181
    %p188 = scmp.eq.s32.totalorder %s24, 1
    %p189 = por %p187, %p188
    %p190 = scmp.ne.s32.totalorder %s181, %s182
    %p191 = scmp.eq.s32.totalorder %s24, 0
    %p192 = por %p190, %p191
    %p193 = scmp.ne.s32.totalorder %s181, %s182
    %p194 = scmp.eq.s32.totalorder %s25, 1
    %p195 = por %p193, %p194
    %p197 = scmp.ne.s32.totalorder %s182, %s196
    %p198 = scmp.eq.s32.totalorder %s25, 0
    %p199 = por %p197, %p198
    %s201 = sadd.s32 %s200, 1
    %p204 = scmp.eq.s32.totalorder %s19, 1
    %p205 = scmp.ne.s32.totalorder %s200, %s202
    %p206 = scmp.eq.s32.totalorder %s19, 0
    %p207 = por %p205, %p206
    %p208 = scmp.ne.s32.totalorder %s200, %s202
    %p209 = scmp.eq.s32.totalorder %s24, 1
    %p210 = por %p208, %p209
    %p211 = scmp.ne.s32.totalorder %s202, %s203
    %p212 = scmp.eq.s32.totalorder %s24, 0
    %p213 = por %p211, %p212
    %p214 = scmp.ne.s32.totalorder %s202, %s203
    %p215 = scmp.eq.s32.totalorder %s25, 1
    %p216 = por %p214, %p215
    %p218 = scmp.ne.s32.totalorder %s203, %s217
    %p219 = scmp.eq.s32.totalorder %s25, 0
    %p220 = por %p218, %p219
    %s222 = sadd.s32 %s221, 1
    %p225 = scmp.eq.s32.totalorder %s19, 1
    %p226 = scmp.ne.s32.totalorder %s221, %s223
    %p227 = scmp.eq.s32.totalorder %s19, 0
    %p228 = por %p226, %p227
    %p229 = scmp.ne.s32.totalorder %s221, %s223
    %p230 = scmp.eq.s32.totalorder %s24, 1
    %p231 = por %p229, %p230
    %p232 = scmp.ne.s32.totalorder %s223, %s224
    %p233 = scmp.eq.s32.totalorder %s24, 0
    %p234 = por %p232, %p233
    %p235 = scmp.ne.s32.totalorder %s223, %s224
    %p236 = scmp.eq.s32.totalorder %s25, 1
    %p237 = por %p235, %p236
    %p239 = scmp.ne.s32.totalorder %s224, %s238
    %p240 = scmp.eq.s32.totalorder %s25, 0
    %p241 = por %p239, %p240
    %s243 = sadd.s32 %s242, 1
    %p246 = scmp.eq.s32.totalorder %s19, 1
    %p247 = scmp.ne.s32.totalorder %s242, %s244
    %p248 = scmp.eq.s32.totalorder %s19, 0
    %p249 = por %p247, %p248
    %p250 = scmp.ne.s32.totalorder %s242, %s244
    %p251 = scmp.eq.s32.totalorder %s24, 1
    %p252 = por %p250, %p251
    %p253 = scmp.ne.s32.totalorder %s244, %s245
    %p254 = scmp.eq.s32.totalorder %s24, 0
    %p255 = por %p253, %p254
    %p256 = scmp.ne.s32.totalorder %s244, %s245
    %p257 = scmp.eq.s32.totalorder %s25, 1
    %p258 = por %p256, %p257
    %p260 = scmp.ne.s32.totalorder %s245, %s259
    %p261 = scmp.eq.s32.totalorder %s25, 0
    %p262 = por %p260, %p261
    %s264 = sadd.s32 %s263, 1
    %p267 = scmp.eq.s32.totalorder %s19, 1
    %p268 = scmp.ne.s32.totalorder %s263, %s265
    %p269 = scmp.eq.s32.totalorder %s19, 0
    %p270 = por %p268, %p269
    %p271 = scmp.ne.s32.totalorder %s263, %s265
    %p272 = scmp.eq.s32.totalorder %s24, 1
    %p273 = por %p271, %p272
    %p274 = scmp.ne.s32.totalorder %s265, %s266
    %p275 = scmp.eq.s32.totalorder %s24, 0
    %p276 = por %p274, %p275
    %p277 = scmp.ne.s32.totalorder %s265, %s266
    %p278 = scmp.eq.s32.totalorder %s25, 1
    %p279 = por %p277, %p278
    %p281 = scmp.ne.s32.totalorder %s266, %s280
    %p282 = scmp.eq.s32.totalorder %s25, 0
    %p283 = por %p281, %p282
    %s285 = sadd.s32 %s284, 1
    %p288 = scmp.eq.s32.totalorder %s19, 1
    %p289 = scmp.ne.s32.totalorder %s284, %s286
    %p290 = scmp.eq.s32.totalorder %s19, 0
    %p291 = por %p289, %p290
    %p292 = scmp.ne.s32.totalorder %s284, %s286
    %p293 = scmp.eq.s32.totalorder %s24, 1
    %p294 = por %p292, %p293
    %p295 = scmp.ne.s32.totalorder %s286, %s287
    %p296 = scmp.eq.s32.totalorder %s24, 0
    %p297 = por %p295, %p296
    %p298 = scmp.ne.s32.totalorder %s286, %s287
    %p299 = scmp.eq.s32.totalorder %s25, 1
    %p300 = por %p298, %p299
    %p302 = scmp.ne.s32.totalorder %s287, %s301
    %p303 = scmp.eq.s32.totalorder %s25, 0
    %p304 = por %p302, %p303
    %s305 = ssub.s32 %s19, %s26
    %p306 = scmp.eq.s32.totalorder %s305, 0
    %s308 = sadd.s32 %s307, 1
    %s309 = scalar_select %p306, %s307, %s308
    %p312 = pneg %p306
    %p313 = scmp.eq.s32.totalorder %s19, 1
    %p314 = por %p312, %p313
    %p315 = scmp.ne.s32.totalorder %s307, %s310
    %p316 = scmp.eq.s32.totalorder %s19, 0
    %p317 = por %p315, %p316
    %p318 = scmp.ne.s32.totalorder %s307, %s310
    %p319 = scmp.eq.s32.totalorder %s24, 1
    %p320 = por %p318, %p319
    %p321 = scmp.ne.s32.totalorder %s310, %s311
    %p322 = scmp.eq.s32.totalorder %s24, 0
    %p323 = por %p321, %p322
    %p324 = scmp.ne.s32.totalorder %s310, %s311
    %p325 = scmp.eq.s32.totalorder %s25, 1
    %p326 = por %p324, %p325
    %p328 = scmp.ne.s32.totalorder %s311, %s327
    %p329 = scmp.eq.s32.totalorder %s25, 0
    %p330 = por %p328, %p329
    %p331 = scmp.le.s32.totalorder 1, %s19
    %p332 = scmp.lt.s32.totalorder %s19, 3
    %p333 = pnand %p331, %p332
    %p334 = pneg %p333
    // Predicated region
    $region9: #{tpu_custom_call.1} parent=5 // pred_check
      _
    $region10: #{tpu_custom_call.1} parent=5 // pred_check_branch
      %336 = sbr.rel (%p333) target = $region12
    $region11: #{tpu_custom_call.1} parent=5 // pred_region
      %s337 = ssub.s32 %s19, 1
      // Predicated region
      $region13: #{tpu_custom_call.1} parent=11 // pred_check
        %p338 = pneg %p66
      $region14: #{tpu_custom_call.1} parent=11 // pred_check_branch
        %340 = sbr.rel (%p338) target = $region16
      $region15: #{tpu_custom_call.1} parent=11 // pred_region
        _
      $region16: #{tpu_custom_call.1} parent=11 // pred_fallthru
        _
      // Predicated region
      $region17: #{tpu_custom_call.1} parent=11 // pred_check
        %p341 = pneg %p87
      $region18: #{tpu_custom_call.1} parent=11 // pred_check_branch
        %343 = sbr.rel (%p341) target = $region20
      $region19: #{tpu_custom_call.1} parent=11 // pred_region
        _
      $region20: #{tpu_custom_call.1} parent=11 // pred_fallthru
        _
      // Predicated region
      $region21: #{tpu_custom_call.1} parent=11 // pred_check
        %p344 = pneg %p108
      $region22: #{tpu_custom_call.1} parent=11 // pred_check_branch
        %346 = sbr.rel (%p344) target = $region24
      $region23: #{tpu_custom_call.1} parent=11 // pred_region
        _
      $region24: #{tpu_custom_call.1} parent=11 // pred_fallthru
        _
      // Predicated region
      $region25: #{tpu_custom_call.1} parent=11 // pred_check
        %p347 = pneg %p129
      $region26: #{tpu_custom_call.1} parent=11 // pred_check_branch
        %349 = sbr.rel (%p347) target = $region28
      $region27: #{tpu_custom_call.1} parent=11 // pred_region
        _
      $region28: #{tpu_custom_call.1} parent=11 // pred_fallthru
        _
      // Predicated region
      $region29: #{tpu_custom_call.1} parent=11 // pred_check
        %p350 = pneg %p150
      $region30: #{tpu_custom_call.1} parent=11 // pred_check_branch
        %352 = sbr.rel (%p350) target = $region32
      $region31: #{tpu_custom_call.1} parent=11 // pred_region
        _
      $region32: #{tpu_custom_call.1} parent=11 // pred_fallthru
        _
      // Predicated region
      $region33: #{tpu_custom_call.1} parent=11 // pred_check
        %p353 = pneg %p171
      $region34: #{tpu_custom_call.1} parent=11 // pred_check_branch
        %355 = sbr.rel (%p353) target = $region36
      $region35: #{tpu_custom_call.1} parent=11 // pred_region
        _
      $region36: #{tpu_custom_call.1} parent=11 // pred_fallthru
        _
      // Predicated region
      $region37: #{tpu_custom_call.1} parent=11 // pred_check
        %p356 = pneg %p192
      $region38: #{tpu_custom_call.1} parent=11 // pred_check_branch
        %358 = sbr.rel (%p356) target = $region40
      $region39: #{tpu_custom_call.1} parent=11 // pred_region
        _
      $region40: #{tpu_custom_call.1} parent=11 // pred_fallthru
        _
      // Predicated region
      $region41: #{tpu_custom_call.1} parent=11 // pred_check
        %p359 = pneg %p213
      $region42: #{tpu_custom_call.1} parent=11 // pred_check_branch
        %361 = sbr.rel (%p359) target = $region44
      $region43: #{tpu_custom_call.1} parent=11 // pred_region
        _
      $region44: #{tpu_custom_call.1} parent=11 // pred_fallthru
        _
      // Predicated region
      $region45: #{tpu_custom_call.1} parent=11 // pred_check
        %p362 = pneg %p234
      $region46: #{tpu_custom_call.1} parent=11 // pred_check_branch
        %364 = sbr.rel (%p362) target = $region48
      $region47: #{tpu_custom_call.1} parent=11 // pred_region
        _
      $region48: #{tpu_custom_call.1} parent=11 // pred_fallthru
        _
      // Predicated region
      $region49: #{tpu_custom_call.1} parent=11 // pred_check
        %p365 = pneg %p255
      $region50: #{tpu_custom_call.1} parent=11 // pred_check_branch
        %367 = sbr.rel (%p365) target = $region52
      $region51: #{tpu_custom_call.1} parent=11 // pred_region
        _
      $region52: #{tpu_custom_call.1} parent=11 // pred_fallthru
        _
      // Predicated region
      $region53: #{tpu_custom_call.1} parent=11 // pred_check
        %p368 = pneg %p276
      $region54: #{tpu_custom_call.1} parent=11 // pred_check_branch
        %370 = sbr.rel (%p368) target = $region56
      $region55: #{tpu_custom_call.1} parent=11 // pred_region
        _
      $region56: #{tpu_custom_call.1} parent=11 // pred_fallthru
        _
      // Predicated region
      $region57: #{tpu_custom_call.1} parent=11 // pred_check
        %p371 = pneg %p297
      $region58: #{tpu_custom_call.1} parent=11 // pred_check_branch
        %373 = sbr.rel (%p371) target = $region60
      $region59: #{tpu_custom_call.1} parent=11 // pred_region
        _
      $region60: #{tpu_custom_call.1} parent=11 // pred_fallthru
        _
    $region12: #{tpu_custom_call.1} parent=5 // pred_fallthru
      _
    %p374 = scmp.lt.s32.totalorder %s19, 2
    // Predicated region
    $region61: #{tpu_custom_call.1} parent=5 // pred_check
      %p375 = pneg %p374
    $region62: #{tpu_custom_call.1} parent=5 // pred_check_branch
      %377 = sbr.rel (%p375) target = $region64
    $region63: #{tpu_custom_call.1} parent=5 // pred_region
      // Predicated region
      $region65: #{tpu_custom_call.1} parent=63 // pred_check
        %p378 = pneg %p39
      $region66: #{tpu_custom_call.1} parent=63 // pred_check_branch
        %380 = sbr.rel (%p378) target = $region68
      $region67: #{tpu_custom_call.1} parent=63 // pred_region
        %p381 = scmp.lt.s32.totalorder %s19, 1
        %s382 = scalar_select %p381, %s19, 1
        %s383 = smul.addr %s382, 12
        %s384 = smul.addr %s383, 8
        %s385 = scalar_lea.vmem %s0, %s384
      $region68: #{tpu_custom_call.1} parent=63 // pred_fallthru
        _
    $region64: #{tpu_custom_call.1} parent=5 // pred_fallthru
      _
    %p386 = scmp.le.s32.totalorder 1, %s19
    %p387 = scmp.lt.s32.totalorder %s19, 3
    %p388 = pnand %p386, %p387
    %p389 = pneg %p388
    // Predicated region
    $region69: #{tpu_custom_call.1} parent=5 // pred_check
      _
    $region70: #{tpu_custom_call.1} parent=5 // pred_check_branch
      %391 = sbr.rel (%p388) target = $region72
    $region71: #{tpu_custom_call.1} parent=5 // pred_region
      %s392 = ssub.s32 %s19, 1
      %p393 = scmp.lt.s32.totalorder %s24, 1
      %s394 = scalar_select %p393, %s24, 1
      %s395 = smul.addr %s394, 12
      %s396 = smul.addr %s395, 8
      %s397 = scalar_lea.vmem %s0, %s396
      %p398 = pneg %p45
      %p399 = pneg %p42
      %p400 = pneg %p66
      %p401 = pneg %p63
      %p402 = pneg %p87
      %p403 = pneg %p84
      %p404 = pneg %p108
      %p405 = pneg %p105
      %p406 = pneg %p129
      %p407 = pneg %p126
      %p408 = pneg %p150
      %p409 = pneg %p147
      %p410 = pneg %p171
      %p411 = pneg %p168
      %p412 = pneg %p192
      %p413 = pneg %p189
      %p414 = pneg %p213
      %p415 = pneg %p210
      %p416 = pneg %p234
      %p417 = pneg %p231
      %p418 = pneg %p255
      %p419 = pneg %p252
      %p420 = pneg %p276
      %p421 = pneg %p273
      %p422 = pneg %p297
      %p423 = pneg %p294
      %p424 = pneg %p323
      %p425 = pneg %p320
      %p426 = scmp.lt.s32.totalorder %s24, 1
      %s427 = scalar_select %p426, %s24, 1
      %s428 = smul.addr %s427, 12
      %s429 = smul.addr %s428, 8
      %s430 = scalar_lea.vmem %s13, %s429
      %p431 = scmp.lt.s32.totalorder %s24, 1
      %s432 = scalar_select %p431, %s24, 1
      %s433 = smul.addr %s432, 12
      %s434 = smul.addr %s433, 8
      %s435 = scalar_lea.vmem %s0, %s434
      %p436 = scmp.lt.s32.totalorder %s24, 1
      %s437 = scalar_select %p436, %s24, 1
      %s438 = smul.addr %s437, 12
      %s439 = smul.addr %s438, 8
      %s440 = scalar_lea.vmem %s13, %s439
      %v441 = vld [vmem:[%s435] sm:$0xff]
      %v442 = vld [vmem:[%s435 + $0x8] sm:$0xff]
      %v443 = vld [vmem:[%s435 + $0x10] sm:$0xff]
      %v444 = vld [vmem:[%s435 + $0x18] sm:$0xff]
      %v445 = vld [vmem:[%s435 + $0x20] sm:$0xff]
      %v446 = vld [vmem:[%s435 + $0x28] sm:$0xff]
      %v447 = vld [vmem:[%s435 + $0x30] sm:$0xff]
      %v448 = vld [vmem:[%s435 + $0x38] sm:$0xff]
      %v449 = vld [vmem:[%s435 + $0x40] sm:$0xff]
      %v450 = vld [vmem:[%s435 + $0x48] sm:$0xff]
      %v451 = vld [vmem:[%s435 + $0x50] sm:$0xff]
      %v452 = vld [vmem:[%s435 + $0x58] sm:$0xff]
      %v453 = vld [vmem:[%s1] sm:$0xff]
      %v454 = vld [vmem:[%s1 + $0x8] sm:$0xff]
      %v455 = vld [vmem:[%s1 + $0x10] sm:$0xff]
      %v456 = vld [vmem:[%s1 + $0x18] sm:$0xff]
      %v457 = vld [vmem:[%s2] sm:$0x1]
      %v459 = vlaneseq
      %v460 = vshrl.u32 %v459, 7
      %v461 = vsub.s32 0, %v460
      %v462 = vrot.slane %v457, %v461
      %vm464 = vcmask 261120
      %v466 = vsel %vm464, %v441, 0
      %v469 = vsel %vm464, %v442, 0
      %v472 = vsel %vm464, %v443, 0
      %v475 = vsel %vm464, %v444, 0
      %v478 = vsel %vm464, %v445, 0
      %v481 = vsel %vm464, %v446, 0
      %v484 = vsel %vm464, %v447, 0
      %v487 = vsel %vm464, %v448, 0
      %v490 = vsel %vm464, %v449, 0
      %v493 = vsel %vm464, %v450, 0
      %v496 = vsel %vm464, %v451, 0
      %v499 = vsel %vm464, %v452, 0
      %501 = vmatprep.subr.mxu0 0.0
      %502 = vmatpush1.msra.mxu0 %v453
      %503 = vmatprep.subr.mxu0 0.0
      %504 = vmatpush1.msra.mxu0 %v454
      %505 = vmatprep.subr.mxu0 0.0
      %506 = vmatpush1.msra.mxu0 %v455
      %507 = vmatprep.subr.mxu0 0.0
      %508 = vmatpush1.msra.mxu0 %v456
      %509 = vmatprep.subr.mxu0 0.0
      %510 = vmatpush1.msra.mxu0 0.0
      %511 = vmatprep.subr.mxu0 0.0
      %512 = vmatpush1.msra.mxu0 0.0
      %513 = vmatprep.subr.mxu0 0.0
      %514 = vmatpush1.msra.mxu0 0.0
      %515 = vmatprep.subr.mxu0 0.0
      %516 = vmatpush1.msra.mxu0 0.0
      %517 = vmatprep.subr.mxu0 0.0
      %518 = vmatpush1.msra.mxu0 0.0
      %519 = vmatprep.subr.mxu0 0.0
      %520 = vmatpush1.msra.mxu0 0.0
      %521 = vmatprep.subr.mxu0 0.0
      %522 = vmatpush1.msra.mxu0 0.0
      %523 = vmatprep.subr.mxu0 0.0
      %524 = vmatpush1.msra.mxu0 0.0
      %525 = vmatprep.subr.mxu0 0.0
      %526 = vmatpush1.msra.mxu0 0.0
      %527 = vmatprep.subr.mxu0 0.0
      %528 = vmatpush1.msra.mxu0 0.0
      %529 = vmatprep.subr.mxu0 0.0
      %530 = vmatpush1.msra.mxu0 0.0
      %531 = vmatprep.subr.mxu0 0.0
      %532 = vmatpush1.msra.mxu0 0.0
      %533 = vmatprep.subr.mxu0 0.0
      %534 = vmatpush1.msra.mxu0 0.0
      %535 = vmatprep.subr.mxu0 0.0
      %536 = vmatpush1.msra.mxu0 0.0
      %537 = vmatprep.subr.mxu0 0.0
      %538 = vmatpush1.msra.mxu0 0.0
      %539 = vmatprep.subr.mxu0 0.0
      %540 = vmatpush1.msra.mxu0 0.0
      %541 = vmatprep.subr.mxu0 0.0
      %542 = vmatpush1.msra.mxu0 0.0
      %543 = vmatprep.subr.mxu0 0.0
      %544 = vmatpush1.msra.mxu0 0.0
      %545 = vmatprep.subr.mxu0 0.0
      %546 = vmatpush1.msra.mxu0 0.0
      %547 = vmatprep.subr.mxu0 0.0
      %548 = vmatpush1.msra.mxu0 0.0
      %549 = vmatprep.subr.mxu0 0.0
      %550 = vmatpush1.msra.mxu0 0.0
      %551 = vmatprep.subr.mxu0 0.0
      %552 = vmatpush1.msra.mxu0 0.0
      %553 = vmatprep.subr.mxu0 0.0
      %554 = vmatpush1.msra.mxu0 0.0
      %555 = vmatprep.subr.mxu0 0.0
      %556 = vmatpush1.msra.mxu0 0.0
      %557 = vmatprep.subr.mxu0 0.0
      %558 = vmatpush1.msra.mxu0 0.0
      %559 = vmatprep.subr.mxu0 0.0
      %560 = vmatpush1.msra.mxu0 0.0
      %561 = vmatprep.subr.mxu0 0.0
      %562 = vmatpush1.msra.mxu0 0.0
      %563 = vmatprep.subr.mxu0 0.0
      %564 = vmatpush1.msra.mxu0 0.0
      %565 = vmatprep.mubr.f32.mxu0 0.0
      %566 = vmatmul.mubr.f32.gmra.mrb[0].mxu0 %v466
      %v567 = vpop.f32.mrb[0].mxu0
      %v568 = vadd.f32 %v462, %v567
      %v569 = vpop.f32.mrb[0].mxu0
      %570 = vmatprep.mubr.f32.mxu0 0.0
      %571 = vmatmul.mubr.f32.gmra.mrb[0].mxu0 %v469
      %v572 = vpop.f32.mrb[0].mxu0
      %v573 = vadd.f32 %v462, %v572
      %v574 = vpop.f32.mrb[0].mxu0
      %575 = vmatprep.mubr.f32.mxu0 0.0
      %576 = vmatmul.mubr.f32.gmra.mrb[0].mxu0 %v472
      %v577 = vpop.f32.mrb[0].mxu0
      %v578 = vadd.f32 %v462, %v577
      %v579 = vpop.f32.mrb[0].mxu0
      %580 = vmatprep.mubr.f32.mxu0 0.0
      %581 = vmatmul.mubr.f32.gmra.mrb[0].mxu0 %v475
      %v582 = vpop.f32.mrb[0].mxu0
      %v583 = vadd.f32 %v462, %v582
      %v584 = vpop.f32.mrb[0].mxu0
      %585 = vmatprep.mubr.f32.mxu0 0.0
      %586 = vmatmul.mubr.f32.gmra.mrb[0].mxu0 %v478
      %v587 = vpop.f32.mrb[0].mxu0
      %v588 = vadd.f32 %v462, %v587
      %v589 = vpop.f32.mrb[0].mxu0
      %590 = vmatprep.mubr.f32.mxu0 0.0
      %591 = vmatmul.mubr.f32.gmra.mrb[0].mxu0 %v481
      %v592 = vpop.f32.mrb[0].mxu0
      %v593 = vadd.f32 %v462, %v592
      %v594 = vpop.f32.mrb[0].mxu0
      %595 = vmatprep.mubr.f32.mxu0 0.0
      %596 = vmatmul.mubr.f32.gmra.mrb[0].mxu0 %v484
      %v597 = vpop.f32.mrb[0].mxu0
      %v598 = vadd.f32 %v462, %v597
      %v599 = vpop.f32.mrb[0].mxu0
      %600 = vmatprep.mubr.f32.mxu0 0.0
      %601 = vmatmul.mubr.f32.gmra.mrb[0].mxu0 %v487
      %v602 = vpop.f32.mrb[0].mxu0
      %v603 = vadd.f32 %v462, %v602
      %v604 = vpop.f32.mrb[0].mxu0
      %605 = vmatprep.mubr.f32.mxu0 0.0
      %606 = vmatmul.mubr.f32.gmra.mrb[0].mxu0 %v490
      %v607 = vpop.f32.mrb[0].mxu0
      %v608 = vadd.f32 %v462, %v607
      %v609 = vpop.f32.mrb[0].mxu0
      %610 = vmatprep.mubr.f32.mxu0 0.0
      %611 = vmatmul.mubr.f32.gmra.mrb[0].mxu0 %v493
      %v612 = vpop.f32.mrb[0].mxu0
      %v613 = vadd.f32 %v462, %v612
      %v614 = vpop.f32.mrb[0].mxu0
      %615 = vmatprep.mubr.f32.mxu0 0.0
      %616 = vmatmul.mubr.f32.gmra.mrb[0].mxu0 %v496
      %v617 = vpop.f32.mrb[0].mxu0
      %v618 = vadd.f32 %v462, %v617
      %v619 = vpop.f32.mrb[0].mxu0
      %620 = vmatprep.mubr.f32.mxu0 0.0
      %621 = vmatmul.mubr.f32.gmra.mrb[0].mxu0 %v499
      %v622 = vpop.f32.mrb[0].mxu0
      %v623 = vadd.f32 %v462, %v622
      %v624 = vpop.f32.mrb[0].mxu0
      %625 = vdwg.mxu0
      %638 = vrot.lane.b32.xlu0 %v568, 96
      %v639 = vpop.permute.xlu0 %638
      %640 = vrot.lane.b32.xlu0 %v573, 96
      %v641 = vpop.permute.xlu0 %640
      %642 = vrot.lane.b32.xlu0 %v578, 96
      %v643 = vpop.permute.xlu0 %642
      %644 = vrot.lane.b32.xlu0 %v583, 96
      %v645 = vpop.permute.xlu0 %644
      %646 = vrot.lane.b32.xlu0 %v588, 96
      %v647 = vpop.permute.xlu0 %646
      %648 = vrot.lane.b32.xlu0 %v593, 96
      %v649 = vpop.permute.xlu0 %648
      %650 = vrot.lane.b32.xlu0 %v598, 96
      %v651 = vpop.permute.xlu0 %650
      %652 = vrot.lane.b32.xlu0 %v603, 96
      %v653 = vpop.permute.xlu0 %652
      %654 = vrot.lane.b32.xlu0 %v608, 96
      %v655 = vpop.permute.xlu0 %654
      %656 = vrot.lane.b32.xlu0 %v613, 96
      %v657 = vpop.permute.xlu0 %656
      %658 = vrot.lane.b32.xlu0 %v618, 96
      %v659 = vpop.permute.xlu0 %658
      %660 = vrot.lane.b32.xlu0 %v623, 96
      %v661 = vpop.permute.xlu0 %660
      %vm662 = vcmask 130048
      %v663 = vsel %vm662, %v568, 0
      %v665 = vsel %vm662, %v573, 0
      %v667 = vsel %vm662, %v578, 0
      %v669 = vsel %vm662, %v583, 0
      %v671 = vsel %vm662, %v588, 0
      %v673 = vsel %vm662, %v593, 0
      %v675 = vsel %vm662, %v598, 0
      %v677 = vsel %vm662, %v603, 0
      %v679 = vsel %vm662, %v608, 0
      %v681 = vsel %vm662, %v613, 0
      %v683 = vsel %vm662, %v618, 0
      %v685 = vsel %vm662, %v623, 0
      %v687 = vsel %vm662, %v639, 0
      %v689 = vsel %vm662, %v641, 0
      %v691 = vsel %vm662, %v643, 0
      %v693 = vsel %vm662, %v645, 0
      %v695 = vsel %vm662, %v647, 0
      %v697 = vsel %vm662, %v649, 0
      %v699 = vsel %vm662, %v651, 0
      %v701 = vsel %vm662, %v653, 0
      %v703 = vsel %vm662, %v655, 0
      %v705 = vsel %vm662, %v657, 0
      %v707 = vsel %vm662, %v659, 0
      %v709 = vsel %vm662, %v661, 0
      %711 = vmatprep.subr.mxu0 0.0
      %712 = vmatpush1.xpose.msra.mxu0 %v687
      %713 = vmatprep.subr.mxu0 0.0
      %714 = vmatpush1.xpose.msra.mxu0 %v689
      %715 = vmatprep.subr.mxu0 0.0
      %716 = vmatpush1.xpose.msra.mxu0 %v691
      %717 = vmatprep.subr.mxu0 0.0
      %718 = vmatpush1.xpose.msra.mxu0 %v693
      %719 = vmatprep.subr.mxu0 0.0
      %720 = vmatpush1.xpose.msra.mxu0 %v695
      %721 = vmatprep.subr.mxu0 0.0
      %722 = vmatpush1.xpose.msra.mxu0 %v697
      %723 = vmatprep.subr.mxu0 0.0
      %724 = vmatpush1.xpose.msra.mxu0 %v699
      %725 = vmatprep.subr.mxu0 0.0
      %726 = vmatpush1.xpose.msra.mxu0 %v701
      %727 = vmatprep.subr.mxu0 0.0
      %728 = vmatpush1.xpose.msra.mxu0 %v703
      %729 = vmatprep.subr.mxu0 0.0
      %730 = vmatpush1.xpose.msra.mxu0 %v705
      %731 = vmatprep.subr.mxu0 0.0
      %732 = vmatpush1.xpose.msra.mxu0 %v707
      %733 = vmatprep.subr.mxu0 0.0
      %734 = vmatpush1.xpose.msra.mxu0 %v709
      %735 = vmatprep.subr.mxu0 0.0
      %736 = vmatpush1.xpose.msra.mxu0 0.0
      %737 = vmatprep.subr.mxu0 0.0
      %738 = vmatpush1.xpose.msra.mxu0 0.0
      %739 = vmatprep.subr.mxu0 0.0
      %740 = vmatpush1.xpose.msra.mxu0 0.0
      %741 = vmatprep.subr.mxu0 0.0
      %742 = vmatpush1.xpose.msra.mxu0 0.0
      %743 = vmatprep.subr.mxu0 0.0
      %744 = vmatpush1.xpose.msra.mxu0 0.0
      %745 = vmatprep.subr.mxu0 0.0
      %746 = vmatpush1.xpose.msra.mxu0 0.0
      %747 = vmatprep.subr.mxu0 0.0
      %748 = vmatpush1.xpose.msra.mxu0 0.0
      %749 = vmatprep.subr.mxu0 0.0
      %750 = vmatpush1.xpose.msra.mxu0 0.0
      %751 = vmatprep.subr.mxu0 0.0
      %752 = vmatpush1.xpose.msra.mxu0 0.0
      %753 = vmatprep.subr.mxu0 0.0
      %754 = vmatpush1.xpose.msra.mxu0 0.0
      %755 = vmatprep.subr.mxu0 0.0
      %756 = vmatpush1.xpose.msra.mxu0 0.0
      %757 = vmatprep.subr.mxu0 0.0
      %758 = vmatpush1.xpose.msra.mxu0 0.0
      %759 = vmatprep.subr.mxu0 0.0
      %760 = vmatpush1.xpose.msra.mxu0 0.0
      %761 = vmatprep.subr.mxu0 0.0
      %762 = vmatpush1.xpose.msra.mxu0 0.0
      %763 = vmatprep.subr.mxu0 0.0
      %764 = vmatpush1.xpose.msra.mxu0 0.0
      %765 = vmatprep.subr.mxu0 0.0
      %766 = vmatpush1.xpose.msra.mxu0 0.0
      %767 = vmatprep.subr.mxu0 0.0
      %768 = vmatpush1.xpose.msra.mxu0 0.0
      %769 = vmatprep.subr.mxu0 0.0
      %770 = vmatpush1.xpose.msra.mxu0 0.0
      %771 = vmatprep.subr.mxu0 0.0
      %772 = vmatpush1.xpose.msra.mxu0 0.0
      %773 = vmatprep.subr.mxu0 0.0
      %774 = vmatpush1.xpose.msra.mxu0 0.0
      %775 = vmatprep.mubr.f32.mxu0 0.0
      %776 = vmatmul.mubr.f32.gmra.mrb[0].mxu0 %v663
      %v777 = vpop.f32.mrb[0].mxu0
      %v778 = vadd.f32 0.0, %v777
      %v779 = vpop.f32.mrb[0].mxu0
      %780 = vmatprep.mubr.f32.mxu0 0.0
      %781 = vmatmul.mubr.f32.gmra.mrb[0].mxu0 %v665
      %v782 = vpop.f32.mrb[0].mxu0
      %v783 = vadd.f32 0.0, %v782
      %v784 = vpop.f32.mrb[0].mxu0
      %785 = vmatprep.mubr.f32.mxu0 0.0
      %786 = vmatmul.mubr.f32.gmra.mrb[0].mxu0 %v667
      %v787 = vpop.f32.mrb[0].mxu0
      %v788 = vadd.f32 0.0, %v787
      %v789 = vpop.f32.mrb[0].mxu0
      %790 = vmatprep.mubr.f32.mxu0 0.0
      %791 = vmatmul.mubr.f32.gmra.mrb[0].mxu0 %v669
      %v792 = vpop.f32.mrb[0].mxu0
      %v793 = vadd.f32 0.0, %v792
      %v794 = vpop.f32.mrb[0].mxu0
      %795 = vmatprep.mubr.f32.mxu0 0.0
      %796 = vmatmul.mubr.f32.gmra.mrb[0].mxu0 %v671
      %v797 = vpop.f32.mrb[0].mxu0
      %v798 = vadd.f32 0.0, %v797
      %v799 = vpop.f32.mrb[0].mxu0
      %800 = vmatprep.mubr.f32.mxu0 0.0
      %801 = vmatmul.mubr.f32.gmra.mrb[0].mxu0 %v673
      %v802 = vpop.f32.mrb[0].mxu0
      %v803 = vadd.f32 0.0, %v802
      %v804 = vpop.f32.mrb[0].mxu0
      %805 = vmatprep.mubr.f32.mxu0 0.0
      %806 = vmatmul.mubr.f32.gmra.mrb[0].mxu0 %v675
      %v807 = vpop.f32.mrb[0].mxu0
      %v808 = vadd.f32 0.0, %v807
      %v809 = vpop.f32.mrb[0].mxu0
      %810 = vmatprep.mubr.f32.mxu0 0.0
      %811 = vmatmul.mubr.f32.gmra.mrb[0].mxu0 %v677
      %v812 = vpop.f32.mrb[0].mxu0
      %v813 = vadd.f32 0.0, %v812
      %v814 = vpop.f32.mrb[0].mxu0
      %815 = vmatprep.mubr.f32.mxu0 0.0
      %816 = vmatmul.mubr.f32.gmra.mrb[0].mxu0 %v679
      %v817 = vpop.f32.mrb[0].mxu0
      %v818 = vadd.f32 0.0, %v817
      %v819 = vpop.f32.mrb[0].mxu0
      %820 = vmatprep.mubr.f32.mxu0 0.0
      %821 = vmatmul.mubr.f32.gmra.mrb[0].mxu0 %v681
      %v822 = vpop.f32.mrb[0].mxu0
      %v823 = vadd.f32 0.0, %v822
      %v824 = vpop.f32.mrb[0].mxu0
      %825 = vmatprep.mubr.f32.mxu0 0.0
      %826 = vmatmul.mubr.f32.gmra.mrb[0].mxu0 %v683
      %v827 = vpop.f32.mrb[0].mxu0
      %v828 = vadd.f32 0.0, %v827
      %v829 = vpop.f32.mrb[0].mxu0
      %830 = vmatprep.mubr.f32.mxu0 0.0
      %831 = vmatmul.mubr.f32.gmra.mrb[0].mxu0 %v685
      %v832 = vpop.f32.mrb[0].mxu0
      %v833 = vadd.f32 0.0, %v832
      %v834 = vpop.f32.mrb[0].mxu0
      %835 = vdwg.mxu0
      %v836 = vmul.f32 %v778, 0.25
      %v837 = vmul.f32 %v783, 0.25
      %v838 = vmul.f32 %v788, 0.25
      %v839 = vmul.f32 %v793, 0.25
      %v840 = vmul.f32 %v798, 0.25
      %v841 = vmul.f32 %v803, 0.25
      %v842 = vmul.f32 %v808, 0.25
      %v843 = vmul.f32 %v813, 0.25
      %v844 = vmul.f32 %v818, 0.25
      %v845 = vmul.f32 %v823, 0.25
      %v846 = vmul.f32 %v828, 0.25
      %v847 = vmul.f32 %v833, 0.25
      %vm848 = vcmask 785408
      %v849 = vsel %vm848, %v836, -inf
      %850 = vmax.xlane.f32.xlu0 %v849
      %v851 = vpop.xlane.xlu0 %850
      %v852 = vsel %vm848, %v837, -inf
      %853 = vmax.xlane.f32.xlu0 %v852
      %v854 = vpop.xlane.xlu0 %853
      %v855 = vsel %vm848, %v838, -inf
      %856 = vmax.xlane.f32.xlu0 %v855
      %v857 = vpop.xlane.xlu0 %856
      %v858 = vsel %vm848, %v839, -inf
      %859 = vmax.xlane.f32.xlu0 %v858
      %v860 = vpop.xlane.xlu0 %859
      %v861 = vsel %vm848, %v840, -inf
      %862 = vmax.xlane.f32.xlu0 %v861
      %v863 = vpop.xlane.xlu0 %862
      %v864 = vsel %vm848, %v841, -inf
      %865 = vmax.xlane.f32.xlu0 %v864
      %v866 = vpop.xlane.xlu0 %865
      %v867 = vsel %vm848, %v842, -inf
      %868 = vmax.xlane.f32.xlu0 %v867
      %v869 = vpop.xlane.xlu0 %868
      %v870 = vsel %vm848, %v843, -inf
      %871 = vmax.xlane.f32.xlu0 %v870
      %v872 = vpop.xlane.xlu0 %871
      %v873 = vsel %vm848, %v844, -inf
      %874 = vmax.xlane.f32.xlu0 %v873
      %v875 = vpop.xlane.xlu0 %874
      %v876 = vsel %vm848, %v845, -inf
      %877 = vmax.xlane.f32.xlu0 %v876
      %v878 = vpop.xlane.xlu0 %877
      %v879 = vsel %vm848, %v846, -inf
      %880 = vmax.xlane.f32.xlu0 %v879
      %v881 = vpop.xlane.xlu0 %880
      %v882 = vsel %vm848, %v847, -inf
      %883 = vmax.xlane.f32.xlu0 %v882
      %v884 = vpop.xlane.xlu0 %883
      %v885 = vsub.f32 %v836, %v851
      %v886 = vsub.f32 %v837, %v854
      %v887 = vsub.f32 %v838, %v857
      %v888 = vsub.f32 %v839, %v860
      %v889 = vsub.f32 %v840, %v863
      %v890 = vsub.f32 %v841, %v866
      %v891 = vsub.f32 %v842, %v869
      %v892 = vsub.f32 %v843, %v872
      %v893 = vsub.f32 %v844, %v875
      %v894 = vsub.f32 %v845, %v878
      %v895 = vsub.f32 %v846, %v881
      %v896 = vsub.f32 %v847, %v884
      %v897 = vmul.f32 %v885, 1.442695
      %v898 = vpow.pop %v897
      %v899 = vmul.f32 %v886, 1.442695
      %v900 = vpow.pop %v899
      %v901 = vmul.f32 %v887, 1.442695
      %v902 = vpow.pop %v901
      %v903 = vmul.f32 %v888, 1.442695
      %v904 = vpow.pop %v903
      %v905 = vmul.f32 %v889, 1.442695
      %v906 = vpow.pop %v905
      %v907 = vmul.f32 %v890, 1.442695
      %v908 = vpow.pop %v907
      %v909 = vmul.f32 %v891, 1.442695
      %v910 = vpow.pop %v909
      %v911 = vmul.f32 %v892, 1.442695
      %v912 = vpow.pop %v911
      %v913 = vmul.f32 %v893, 1.442695
      %v914 = vpow.pop %v913
      %v915 = vmul.f32 %v894, 1.442695
      %v916 = vpow.pop %v915
      %v917 = vmul.f32 %v895, 1.442695
      %v918 = vpow.pop %v917
      %v919 = vmul.f32 %v896, 1.442695
      %v920 = vpow.pop %v919
      %v921 = vsel %vm848, %v898, 0.0
      %922 = vadd.xlane.f32.xlu0 %v921
      %v923 = vpop.xlane.xlu0 %922
      %v924 = vsel %vm848, %v900, 0.0
      %925 = vadd.xlane.f32.xlu0 %v924
      %v926 = vpop.xlane.xlu0 %925
      %v927 = vsel %vm848, %v902, 0.0
      %928 = vadd.xlane.f32.xlu0 %v927
      %v929 = vpop.xlane.xlu0 %928
      %v930 = vsel %vm848, %v904, 0.0
      %931 = vadd.xlane.f32.xlu0 %v930
      %v932 = vpop.xlane.xlu0 %931
      %v933 = vsel %vm848, %v906, 0.0
      %934 = vadd.xlane.f32.xlu0 %v933
      %v935 = vpop.xlane.xlu0 %934
      %v936 = vsel %vm848, %v908, 0.0
      %937 = vadd.xlane.f32.xlu0 %v936
      %v938 = vpop.xlane.xlu0 %937
      %v939 = vsel %vm848, %v910, 0.0
      %940 = vadd.xlane.f32.xlu0 %v939
      %v941 = vpop.xlane.xlu0 %940
      %v942 = vsel %vm848, %v912, 0.0
      %943 = vadd.xlane.f32.xlu0 %v942
      %v944 = vpop.xlane.xlu0 %943
      %v945 = vsel %vm848, %v914, 0.0
      %946 = vadd.xlane.f32.xlu0 %v945
      %v947 = vpop.xlane.xlu0 %946
      %v948 = vsel %vm848, %v916, 0.0
      %949 = vadd.xlane.f32.xlu0 %v948
      %v950 = vpop.xlane.xlu0 %949
      %v951 = vsel %vm848, %v918, 0.0
      %952 = vadd.xlane.f32.xlu0 %v951
      %v953 = vpop.xlane.xlu0 %952
      %v954 = vsel %vm848, %v920, 0.0
      %955 = vadd.xlane.f32.xlu0 %v954
      %v956 = vpop.xlane.xlu0 %955
      %v957 = vrcp.pop %v923
      %v958 = vrcp.pop %v926
      %v959 = vrcp.pop %v929
      %v960 = vrcp.pop %v932
      %v961 = vrcp.pop %v935
      %v962 = vrcp.pop %v938
      %v963 = vrcp.pop %v941
      %v964 = vrcp.pop %v944
      %v965 = vrcp.pop %v947
      %v966 = vrcp.pop %v950
      %v967 = vrcp.pop %v953
      %v968 = vrcp.pop %v956
      %v969 = vmul.f32 %v898, %v957
      %v970 = vmul.f32 %v900, %v958
      %v971 = vmul.f32 %v902, %v959
      %v972 = vmul.f32 %v904, %v960
      %v973 = vmul.f32 %v906, %v961
      %v974 = vmul.f32 %v908, %v962
      %v975 = vmul.f32 %v910, %v963
      %v976 = vmul.f32 %v912, %v964
      %v977 = vmul.f32 %v914, %v965
      %v978 = vmul.f32 %v916, %v966
      %v979 = vmul.f32 %v918, %v967
      %v980 = vmul.f32 %v920, %v968
      %981 = vrot.lane.b32.xlu0 %v568, 64
      %v982 = vpop.permute.xlu0 %981
      %983 = vrot.lane.b32.xlu0 %v573, 64
      %v984 = vpop.permute.xlu0 %983
      %985 = vrot.lane.b32.xlu0 %v578, 64
      %v986 = vpop.permute.xlu0 %985
      %987 = vrot.lane.b32.xlu0 %v583, 64
      %v988 = vpop.permute.xlu0 %987
      %989 = vrot.lane.b32.xlu0 %v588, 64
      %v990 = vpop.permute.xlu0 %989
      %991 = vrot.lane.b32.xlu0 %v593, 64
      %v992 = vpop.permute.xlu0 %991
      %993 = vrot.lane.b32.xlu0 %v598, 64
      %v994 = vpop.permute.xlu0 %993
      %995 = vrot.lane.b32.xlu0 %v603, 64
      %v996 = vpop.permute.xlu0 %995
      %997 = vrot.lane.b32.xlu0 %v608, 64
      %v998 = vpop.permute.xlu0 %997
      %999 = vrot.lane.b32.xlu0 %v613, 64
      %v1000 = vpop.permute.xlu0 %999
      %1001 = vrot.lane.b32.xlu0 %v618, 64
      %v1002 = vpop.permute.xlu0 %1001
      %1003 = vrot.lane.b32.xlu0 %v623, 64
      %v1004 = vpop.permute.xlu0 %1003
      %v1018 = vsel %vm848, %v969, 0
      %v1021 = vsel %vm848, %v970, 0
      %v1024 = vsel %vm848, %v971, 0
      %v1027 = vsel %vm848, %v972, 0
      %v1030 = vsel %vm848, %v973, 0
      %v1033 = vsel %vm848, %v974, 0
      %v1036 = vsel %vm848, %v975, 0
      %v1039 = vsel %vm848, %v976, 0
      %v1042 = vsel %vm848, %v977, 0
      %v1045 = vsel %vm848, %v978, 0
      %v1048 = vsel %vm848, %v979, 0
      %v1051 = vsel %vm848, %v980, 0
      %1053 = vmatprep.subr.mxu0 0.0
      %1054 = vmatpush1.msra.mxu0 %v982
      %1055 = vmatprep.subr.mxu0 0.0
      %1056 = vmatpush1.msra.mxu0 %v984
      %1057 = vmatprep.subr.mxu0 0.0
      %1058 = vmatpush1.msra.mxu0 %v986
      %1059 = vmatprep.subr.mxu0 0.0
      %1060 = vmatpush1.msra.mxu0 %v988
      %1061 = vmatprep.subr.mxu0 0.0
      %1062 = vmatpush1.msra.mxu0 %v990
      %1063 = vmatprep.subr.mxu0 0.0
      %1064 = vmatpush1.msra.mxu0 %v992
      %1065 = vmatprep.subr.mxu0 0.0
      %1066 = vmatpush1.msra.mxu0 %v994
      %1067 = vmatprep.subr.mxu0 0.0
      %1068 = vmatpush1.msra.mxu0 %v996
      %1069 = vmatprep.subr.mxu0 0.0
      %1070 = vmatpush1.msra.mxu0 %v998
      %1071 = vmatprep.subr.mxu0 0.0
      %1072 = vmatpush1.msra.mxu0 %v1000
      %1073 = vmatprep.subr.mxu0 0.0
      %1074 = vmatpush1.msra.mxu0 %v1002
      %1075 = vmatprep.subr.mxu0 0.0
      %1076 = vmatpush1.msra.mxu0 %v1004
      %1077 = vmatprep.subr.mxu0 0.0
      %1078 = vmatpush1.msra.mxu0 0.0
      %1079 = vmatprep.subr.mxu0 0.0
      %1080 = vmatpush1.msra.mxu0 0.0
      %1081 = vmatprep.subr.mxu0 0.0
      %1082 = vmatpush1.msra.mxu0 0.0
      %1083 = vmatprep.subr.mxu0 0.0
      %1084 = vmatpush1.msra.mxu0 0.0
      %1085 = vmatprep.subr.mxu0 0.0
      %1086 = vmatpush1.msra.mxu0 0.0
      %1087 = vmatprep.subr.mxu0 0.0
      %1088 = vmatpush1.msra.mxu0 0.0
      %1089 = vmatprep.subr.mxu0 0.0
      %1090 = vmatpush1.msra.mxu0 0.0
      %1091 = vmatprep.subr.mxu0 0.0
      %1092 = vmatpush1.msra.mxu0 0.0
      %1093 = vmatprep.subr.mxu0 0.0
      %1094 = vmatpush1.msra.mxu0 0.0
      %1095 = vmatprep.subr.mxu0 0.0
      %1096 = vmatpush1.msra.mxu0 0.0
      %1097 = vmatprep.subr.mxu0 0.0
      %1098 = vmatpush1.msra.mxu0 0.0
      %1099 = vmatprep.subr.mxu0 0.0
      %1100 = vmatpush1.msra.mxu0 0.0
      %1101 = vmatprep.subr.mxu0 0.0
      %1102 = vmatpush1.msra.mxu0 0.0
      %1103 = vmatprep.subr.mxu0 0.0
      %1104 = vmatpush1.msra.mxu0 0.0
      %1105 = vmatprep.subr.mxu0 0.0
      %1106 = vmatpush1.msra.mxu0 0.0
      %1107 = vmatprep.subr.mxu0 0.0
      %1108 = vmatpush1.msra.mxu0 0.0
      %1109 = vmatprep.subr.mxu0 0.0
      %1110 = vmatpush1.msra.mxu0 0.0
      %1111 = vmatprep.subr.mxu0 0.0
      %1112 = vmatpush1.msra.mxu0 0.0
      %1113 = vmatprep.subr.mxu0 0.0
      %1114 = vmatpush1.msra.mxu0 0.0
      %1115 = vmatprep.subr.mxu0 0.0
      %1116 = vmatpush1.msra.mxu0 0.0
      %1117 = vmatprep.mubr.f32.mxu0 0.0
      %1118 = vmatmul.mubr.f32.gmra.mrb[0].mxu0 %v1018
      %v1119 = vpop.f32.mrb[0].mxu0
      %v1120 = vadd.f32 0.0, %v1119
      %v1121 = vpop.f32.mrb[0].mxu0
      %1122 = vmatprep.mubr.f32.mxu0 0.0
      %1123 = vmatmul.mubr.f32.gmra.mrb[0].mxu0 %v1021
      %v1124 = vpop.f32.mrb[0].mxu0
      %v1125 = vadd.f32 0.0, %v1124
      %v1126 = vpop.f32.mrb[0].mxu0
      %1127 = vmatprep.mubr.f32.mxu0 0.0
      %1128 = vmatmul.mubr.f32.gmra.mrb[0].mxu0 %v1024
      %v1129 = vpop.f32.mrb[0].mxu0
      %v1130 = vadd.f32 0.0, %v1129
      %v1131 = vpop.f32.mrb[0].mxu0
      %1132 = vmatprep.mubr.f32.mxu0 0.0
      %1133 = vmatmul.mubr.f32.gmra.mrb[0].mxu0 %v1027
      %v1134 = vpop.f32.mrb[0].mxu0
      %v1135 = vadd.f32 0.0, %v1134
      %v1136 = vpop.f32.mrb[0].mxu0
      %1137 = vmatprep.mubr.f32.mxu0 0.0
      %1138 = vmatmul.mubr.f32.gmra.mrb[0].mxu0 %v1030
      %v1139 = vpop.f32.mrb[0].mxu0
      %v1140 = vadd.f32 0.0, %v1139
      %v1141 = vpop.f32.mrb[0].mxu0
      %1142 = vmatprep.mubr.f32.mxu0 0.0
      %1143 = vmatmul.mubr.f32.gmra.mrb[0].mxu0 %v1033
      %v1144 = vpop.f32.mrb[0].mxu0
      %v1145 = vadd.f32 0.0, %v1144
      %v1146 = vpop.f32.mrb[0].mxu0
      %1147 = vmatprep.mubr.f32.mxu0 0.0
      %1148 = vmatmul.mubr.f32.gmra.mrb[0].mxu0 %v1036
      %v1149 = vpop.f32.mrb[0].mxu0
      %v1150 = vadd.f32 0.0, %v1149
      %v1151 = vpop.f32.mrb[0].mxu0
      %1152 = vmatprep.mubr.f32.mxu0 0.0
      %1153 = vmatmul.mubr.f32.gmra.mrb[0].mxu0 %v1039
      %v1154 = vpop.f32.mrb[0].mxu0
      %v1155 = vadd.f32 0.0, %v1154
      %v1156 = vpop.f32.mrb[0].mxu0
      %1157 = vmatprep.mubr.f32.mxu0 0.0
      %1158 = vmatmul.mubr.f32.gmra.mrb[0].mxu0 %v1042
      %v1159 = vpop.f32.mrb[0].mxu0
      %v1160 = vadd.f32 0.0, %v1159
      %v1161 = vpop.f32.mrb[0].mxu0
      %1162 = vmatprep.mubr.f32.mxu0 0.0
      %1163 = vmatmul.mubr.f32.gmra.mrb[0].mxu0 %v1045
      %v1164 = vpop.f32.mrb[0].mxu0
      %v1165 = vadd.f32 0.0, %v1164
      %v1166 = vpop.f32.mrb[0].mxu0
      %1167 = vmatprep.mubr.f32.mxu0 0.0
      %1168 = vmatmul.mubr.f32.gmra.mrb[0].mxu0 %v1048
      %v1169 = vpop.f32.mrb[0].mxu0
      %v1170 = vadd.f32 0.0, %v1169
      %v1171 = vpop.f32.mrb[0].mxu0
      %1172 = vmatprep.mubr.f32.mxu0 0.0
      %1173 = vmatmul.mubr.f32.gmra.mrb[0].mxu0 %v1051
      %v1174 = vpop.f32.mrb[0].mxu0
      %v1175 = vadd.f32 0.0, %v1174
      %v1176 = vpop.f32.mrb[0].mxu0
      %1177 = vdwg.mxu0
      %1178 = vrot.lane.b32.xlu0 %v568, 112
      %v1179 = vpop.permute.xlu0 %1178
      %1180 = vrot.lane.b32.xlu0 %v573, 112
      %v1181 = vpop.permute.xlu0 %1180
      %1182 = vrot.lane.b32.xlu0 %v578, 112
      %v1183 = vpop.permute.xlu0 %1182
      %1184 = vrot.lane.b32.xlu0 %v583, 112
      %v1185 = vpop.permute.xlu0 %1184
      %1186 = vrot.lane.b32.xlu0 %v588, 112
      %v1187 = vpop.permute.xlu0 %1186
      %1188 = vrot.lane.b32.xlu0 %v593, 112
      %v1189 = vpop.permute.xlu0 %1188
      %1190 = vrot.lane.b32.xlu0 %v598, 112
      %v1191 = vpop.permute.xlu0 %1190
      %1192 = vrot.lane.b32.xlu0 %v603, 112
      %v1193 = vpop.permute.xlu0 %1192
      %1194 = vrot.lane.b32.xlu0 %v608, 112
      %v1195 = vpop.permute.xlu0 %1194
      %1196 = vrot.lane.b32.xlu0 %v613, 112
      %v1197 = vpop.permute.xlu0 %1196
      %1198 = vrot.lane.b32.xlu0 %v618, 112
      %v1199 = vpop.permute.xlu0 %1198
      %1200 = vrot.lane.b32.xlu0 %v623, 112
      %v1201 = vpop.permute.xlu0 %1200
      %1202 = vrot.lane.b32.xlu0 %v568, 80
      %v1203 = vpop.permute.xlu0 %1202
      %1204 = vrot.lane.b32.xlu0 %v573, 80
      %v1205 = vpop.permute.xlu0 %1204
      %1206 = vrot.lane.b32.xlu0 %v578, 80
      %v1207 = vpop.permute.xlu0 %1206
      %1208 = vrot.lane.b32.xlu0 %v583, 80
      %v1209 = vpop.permute.xlu0 %1208
      %1210 = vrot.lane.b32.xlu0 %v588, 80
      %v1211 = vpop.permute.xlu0 %1210
      %1212 = vrot.lane.b32.xlu0 %v593, 80
      %v1213 = vpop.permute.xlu0 %1212
      %1214 = vrot.lane.b32.xlu0 %v598, 80
      %v1215 = vpop.permute.xlu0 %1214
      %1216 = vrot.lane.b32.xlu0 %v603, 80
      %v1217 = vpop.permute.xlu0 %1216
      %1218 = vrot.lane.b32.xlu0 %v608, 80
      %v1219 = vpop.permute.xlu0 %1218
      %1220 = vrot.lane.b32.xlu0 %v613, 80
      %v1221 = vpop.permute.xlu0 %1220
      %1222 = vrot.lane.b32.xlu0 %v618, 80
      %v1223 = vpop.permute.xlu0 %1222
      %1224 = vrot.lane.b32.xlu0 %v623, 80
      %v1225 = vpop.permute.xlu0 %1224
      %v1226 = vsel %vm662, %v1179, 0
      %v1228 = vsel %vm662, %v1181, 0
      %v1230 = vsel %vm662, %v1183, 0
      %v1232 = vsel %vm662, %v1185, 0
      %v1234 = vsel %vm662, %v1187, 0
      %v1236 = vsel %vm662, %v1189, 0
      %v1238 = vsel %vm662, %v1191, 0
      %v1240 = vsel %vm662, %v1193, 0
      %v1242 = vsel %vm662, %v1195, 0
      %v1244 = vsel %vm662, %v1197, 0
      %v1246 = vsel %vm662, %v1199, 0
      %v1248 = vsel %vm662, %v1201, 0
      %v1250 = vsel %vm662, %v1203, 0
      %v1252 = vsel %vm662, %v1205, 0
      %v1254 = vsel %vm662, %v1207, 0
      %v1256 = vsel %vm662, %v1209, 0
      %v1258 = vsel %vm662, %v1211, 0
      %v1260 = vsel %vm662, %v1213, 0
      %v1262 = vsel %vm662, %v1215, 0
      %v1264 = vsel %vm662, %v1217, 0
      %v1266 = vsel %vm662, %v1219, 0
      %v1268 = vsel %vm662, %v1221, 0
      %v1270 = vsel %vm662, %v1223, 0
      %v1272 = vsel %vm662, %v1225, 0
      %1274 = vmatprep.subr.mxu0 0.0
      %1275 = vmatpush1.xpose.msra.mxu0 %v1250
      %1276 = vmatprep.subr.mxu0 0.0
      %1277 = vmatpush1.xpose.msra.mxu0 %v1252
      %1278 = vmatprep.subr.mxu0 0.0
      %1279 = vmatpush1.xpose.msra.mxu0 %v1254
      %1280 = vmatprep.subr.mxu0 0.0
      %1281 = vmatpush1.xpose.msra.mxu0 %v1256
      %1282 = vmatprep.subr.mxu0 0.0
      %1283 = vmatpush1.xpose.msra.mxu0 %v1258
      %1284 = vmatprep.subr.mxu0 0.0
      %1285 = vmatpush1.xpose.msra.mxu0 %v1260
      %1286 = vmatprep.subr.mxu0 0.0
      %1287 = vmatpush1.xpose.msra.mxu0 %v1262
      %1288 = vmatprep.subr.mxu0 0.0
      %1289 = vmatpush1.xpose.msra.mxu0 %v1264
      %1290 = vmatprep.subr.mxu0 0.0
      %1291 = vmatpush1.xpose.msra.mxu0 %v1266
      %1292 = vmatprep.subr.mxu0 0.0
      %1293 = vmatpush1.xpose.msra.mxu0 %v1268
      %1294 = vmatprep.subr.mxu0 0.0
      %1295 = vmatpush1.xpose.msra.mxu0 %v1270
      %1296 = vmatprep.subr.mxu0 0.0
      %1297 = vmatpush1.xpose.msra.mxu0 %v1272
      %1298 = vmatprep.subr.mxu0 0.0
      %1299 = vmatpush1.xpose.msra.mxu0 0.0
      %1300 = vmatprep.subr.mxu0 0.0
      %1301 = vmatpush1.xpose.msra.mxu0 0.0
      %1302 = vmatprep.subr.mxu0 0.0
      %1303 = vmatpush1.xpose.msra.mxu0 0.0
      %1304 = vmatprep.subr.mxu0 0.0
      %1305 = vmatpush1.xpose.msra.mxu0 0.0
      %1306 = vmatprep.subr.mxu0 0.0
      %1307 = vmatpush1.xpose.msra.mxu0 0.0
      %1308 = vmatprep.subr.mxu0 0.0
      %1309 = vmatpush1.xpose.msra.mxu0 0.0
      %1310 = vmatprep.subr.mxu0 0.0
      %1311 = vmatpush1.xpose.msra.mxu0 0.0
      %1312 = vmatprep.subr.mxu0 0.0
      %1313 = vmatpush1.xpose.msra.mxu0 0.0
      %1314 = vmatprep.subr.mxu0 0.0
      %1315 = vmatpush1.xpose.msra.mxu0 0.0
      %1316 = vmatprep.subr.mxu0 0.0
      %1317 = vmatpush1.xpose.msra.mxu0 0.0
      %1318 = vmatprep.subr.mxu0 0.0
      %1319 = vmatpush1.xpose.msra.mxu0 0.0
      %1320 = vmatprep.subr.mxu0 0.0
      %1321 = vmatpush1.xpose.msra.mxu0 0.0
      %1322 = vmatprep.subr.mxu0 0.0
      %1323 = vmatpush1.xpose.msra.mxu0 0.0
      %1324 = vmatprep.subr.mxu0 0.0
      %1325 = vmatpush1.xpose.msra.mxu0 0.0
      %1326 = vmatprep.subr.mxu0 0.0
      %1327 = vmatpush1.xpose.msra.mxu0 0.0
      %1328 = vmatprep.subr.mxu0 0.0
      %1329 = vmatpush1.xpose.msra.mxu0 0.0
      %1330 = vmatprep.subr.mxu0 0.0
      %1331 = vmatpush1.xpose.msra.mxu0 0.0
      %1332 = vmatprep.subr.mxu0 0.0
      %1333 = vmatpush1.xpose.msra.mxu0 0.0
      %1334 = vmatprep.subr.mxu0 0.0
      %1335 = vmatpush1.xpose.msra.mxu0 0.0
      %1336 = vmatprep.subr.mxu0 0.0
      %1337 = vmatpush1.xpose.msra.mxu0 0.0
      %1338 = vmatprep.mubr.f32.mxu0 0.0
      %1339 = vmatmul.mubr.f32.gmra.mrb[0].mxu0 %v1226
      %v1340 = vpop.f32.mrb[0].mxu0
      %v1341 = vadd.f32 0.0, %v1340
      %v1342 = vpop.f32.mrb[0].mxu0
      %1343 = vmatprep.mubr.f32.mxu0 0.0
      %1344 = vmatmul.mubr.f32.gmra.mrb[0].mxu0 %v1228
      %v1345 = vpop.f32.mrb[0].mxu0
      %v1346 = vadd.f32 0.0, %v1345
      %v1347 = vpop.f32.mrb[0].mxu0
      %1348 = vmatprep.mubr.f32.mxu0 0.0
      %1349 = vmatmul.mubr.f32.gmra.mrb[0].mxu0 %v1230
      %v1350 = vpop.f32.mrb[0].mxu0
      %v1351 = vadd.f32 0.0, %v1350
      %v1352 = vpop.f32.mrb[0].mxu0
      %1353 = vmatprep.mubr.f32.mxu0 0.0
      %1354 = vmatmul.mubr.f32.gmra.mrb[0].mxu0 %v1232
      %v1355 = vpop.f32.mrb[0].mxu0
      %v1356 = vadd.f32 0.0, %v1355
      %v1357 = vpop.f32.mrb[0].mxu0
      %1358 = vmatprep.mubr.f32.mxu0 0.0
      %1359 = vmatmul.mubr.f32.gmra.mrb[0].mxu0 %v1234
      %v1360 = vpop.f32.mrb[0].mxu0
      %v1361 = vadd.f32 0.0, %v1360
      %v1362 = vpop.f32.mrb[0].mxu0
      %1363 = vmatprep.mubr.f32.mxu0 0.0
      %1364 = vmatmul.mubr.f32.gmra.mrb[0].mxu0 %v1236
      %v1365 = vpop.f32.mrb[0].mxu0
      %v1366 = vadd.f32 0.0, %v1365
      %v1367 = vpop.f32.mrb[0].mxu0
      %1368 = vmatprep.mubr.f32.mxu0 0.0
      %1369 = vmatmul.mubr.f32.gmra.mrb[0].mxu0 %v1238
      %v1370 = vpop.f32.mrb[0].mxu0
      %v1371 = vadd.f32 0.0, %v1370
      %v1372 = vpop.f32.mrb[0].mxu0
      %1373 = vmatprep.mubr.f32.mxu0 0.0
      %1374 = vmatmul.mubr.f32.gmra.mrb[0].mxu0 %v1240
      %v1375 = vpop.f32.mrb[0].mxu0
      %v1376 = vadd.f32 0.0, %v1375
      %v1377 = vpop.f32.mrb[0].mxu0
      %1378 = vmatprep.mubr.f32.mxu0 0.0
      %1379 = vmatmul.mubr.f32.gmra.mrb[0].mxu0 %v1242
      %v1380 = vpop.f32.mrb[0].mxu0
      %v1381 = vadd.f32 0.0, %v1380
      %v1382 = vpop.f32.mrb[0].mxu0
      %1383 = vmatprep.mubr.f32.mxu0 0.0
      %1384 = vmatmul.mubr.f32.gmra.mrb[0].mxu0 %v1244
      %v1385 = vpop.f32.mrb[0].mxu0
      %v1386 = vadd.f32 0.0, %v1385
      %v1387 = vpop.f32.mrb[0].mxu0
      %1388 = vmatprep.mubr.f32.mxu0 0.0
      %1389 = vmatmul.mubr.f32.gmra.mrb[0].mxu0 %v1246
      %v1390 = vpop.f32.mrb[0].mxu0
      %v1391 = vadd.f32 0.0, %v1390
      %v1392 = vpop.f32.mrb[0].mxu0
      %1393 = vmatprep.mubr.f32.mxu0 0.0
      %1394 = vmatmul.mubr.f32.gmra.mrb[0].mxu0 %v1248
      %v1395 = vpop.f32.mrb[0].mxu0
      %v1396 = vadd.f32 0.0, %v1395
      %v1397 = vpop.f32.mrb[0].mxu0
      %1398 = vdwg.mxu0
      %v1399 = vmul.f32 %v1341, 0.25
      %v1400 = vmul.f32 %v1346, 0.25
      %v1401 = vmul.f32 %v1351, 0.25
      %v1402 = vmul.f32 %v1356, 0.25
      %v1403 = vmul.f32 %v1361, 0.25
      %v1404 = vmul.f32 %v1366, 0.25
      %v1405 = vmul.f32 %v1371, 0.25
      %v1406 = vmul.f32 %v1376, 0.25
      %v1407 = vmul.f32 %v1381, 0.25
      %v1408 = vmul.f32 %v1386, 0.25
      %v1409 = vmul.f32 %v1391, 0.25
      %v1410 = vmul.f32 %v1396, 0.25
      %v1411 = vsel %vm848, %v1399, -inf
      %1412 = vmax.xlane.f32.xlu0 %v1411
      %v1413 = vpop.xlane.xlu0 %1412
      %v1414 = vsel %vm848, %v1400, -inf
      %1415 = vmax.xlane.f32.xlu0 %v1414
      %v1416 = vpop.xlane.xlu0 %1415
      %v1417 = vsel %vm848, %v1401, -inf
      %1418 = vmax.xlane.f32.xlu0 %v1417
      %v1419 = vpop.xlane.xlu0 %1418
      %v1420 = vsel %vm848, %v1402, -inf
      %1421 = vmax.xlane.f32.xlu0 %v1420
      %v1422 = vpop.xlane.xlu0 %1421
      %v1423 = vsel %vm848, %v1403, -inf
      %1424 = vmax.xlane.f32.xlu0 %v1423
      %v1425 = vpop.xlane.xlu0 %1424
      %v1426 = vsel %vm848, %v1404, -inf
      %1427 = vmax.xlane.f32.xlu0 %v1426
      %v1428 = vpop.xlane.xlu0 %1427
      %v1429 = vsel %vm848, %v1405, -inf
      %1430 = vmax.xlane.f32.xlu0 %v1429
      %v1431 = vpop.xlane.xlu0 %1430
      %v1432 = vsel %vm848, %v1406, -inf
      %1433 = vmax.xlane.f32.xlu0 %v1432
      %v1434 = vpop.xlane.xlu0 %1433
      %v1435 = vsel %vm848, %v1407, -inf
      %1436 = vmax.xlane.f32.xlu0 %v1435
      %v1437 = vpop.xlane.xlu0 %1436
      %v1438 = vsel %vm848, %v1408, -inf
      %1439 = vmax.xlane.f32.xlu0 %v1438
      %v1440 = vpop.xlane.xlu0 %1439
      %v1441 = vsel %vm848, %v1409, -inf
      %1442 = vmax.xlane.f32.xlu0 %v1441
      %v1443 = vpop.xlane.xlu0 %1442
      %v1444 = vsel %vm848, %v1410, -inf
      %1445 = vmax.xlane.f32.xlu0 %v1444
      %v1446 = vpop.xlane.xlu0 %1445
      %v1447 = vsub.f32 %v1399, %v1413
      %v1448 = vsub.f32 %v1400, %v1416
      %v1449 = vsub.f32 %v1401, %v1419
      %v1450 = vsub.f32 %v1402, %v1422
      %v1451 = vsub.f32 %v1403, %v1425
      %v1452 = vsub.f32 %v1404, %v1428
      %v1453 = vsub.f32 %v1405, %v1431
      %v1454 = vsub.f32 %v1406, %v1434
      %v1455 = vsub.f32 %v1407, %v1437
      %v1456 = vsub.f32 %v1408, %v1440
      %v1457 = vsub.f32 %v1409, %v1443
      %v1458 = vsub.f32 %v1410, %v1446
      %v1459 = vmul.f32 %v1447, 1.442695
      %v1460 = vpow.pop %v1459
      %v1461 = vmul.f32 %v1448, 1.442695
      %v1462 = vpow.pop %v1461
      %v1463 = vmul.f32 %v1449, 1.442695
      %v1464 = vpow.pop %v1463
      %v1465 = vmul.f32 %v1450, 1.442695
      %v1466 = vpow.pop %v1465
      %v1467 = vmul.f32 %v1451, 1.442695
      %v1468 = vpow.pop %v1467
      %v1469 = vmul.f32 %v1452, 1.442695
      %v1470 = vpow.pop %v1469
      %v1471 = vmul.f32 %v1453, 1.442695
      %v1472 = vpow.pop %v1471
      %v1473 = vmul.f32 %v1454, 1.442695
      %v1474 = vpow.pop %v1473
      %v1475 = vmul.f32 %v1455, 1.442695
      %v1476 = vpow.pop %v1475
      %v1477 = vmul.f32 %v1456, 1.442695
      %v1478 = vpow.pop %v1477
      %v1479 = vmul.f32 %v1457, 1.442695
      %v1480 = vpow.pop %v1479
      %v1481 = vmul.f32 %v1458, 1.442695
      %v1482 = vpow.pop %v1481
      %v1483 = vsel %vm848, %v1460, 0.0
      %1484 = vadd.xlane.f32.xlu0 %v1483
      %v1485 = vpop.xlane.xlu0 %1484
      %v1486 = vsel %vm848, %v1462, 0.0
      %1487 = vadd.xlane.f32.xlu0 %v1486
      %v1488 = vpop.xlane.xlu0 %1487
      %v1489 = vsel %vm848, %v1464, 0.0
      %1490 = vadd.xlane.f32.xlu0 %v1489
      %v1491 = vpop.xlane.xlu0 %1490
      %v1492 = vsel %vm848, %v1466, 0.0
      %1493 = vadd.xlane.f32.xlu0 %v1492
      %v1494 = vpop.xlane.xlu0 %1493
      %v1495 = vsel %vm848, %v1468, 0.0
      %1496 = vadd.xlane.f32.xlu0 %v1495
      %v1497 = vpop.xlane.xlu0 %1496
      %v1498 = vsel %vm848, %v1470, 0.0
      %1499 = vadd.xlane.f32.xlu0 %v1498
      %v1500 = vpop.xlane.xlu0 %1499
      %v1501 = vsel %vm848, %v1472, 0.0
      %1502 = vadd.xlane.f32.xlu0 %v1501
      %v1503 = vpop.xlane.xlu0 %1502
      %v1504 = vsel %vm848, %v1474, 0.0
      %1505 = vadd.xlane.f32.xlu0 %v1504
      %v1506 = vpop.xlane.xlu0 %1505
      %v1507 = vsel %vm848, %v1476, 0.0
      %1508 = vadd.xlane.f32.xlu0 %v1507
      %v1509 = vpop.xlane.xlu0 %1508
      %v1510 = vsel %vm848, %v1478, 0.0
      %1511 = vadd.xlane.f32.xlu0 %v1510
      %v1512 = vpop.xlane.xlu0 %1511
      %v1513 = vsel %vm848, %v1480, 0.0
      %1514 = vadd.xlane.f32.xlu0 %v1513
      %v1515 = vpop.xlane.xlu0 %1514
      %v1516 = vsel %vm848, %v1482, 0.0
      %1517 = vadd.xlane.f32.xlu0 %v1516
      %v1518 = vpop.xlane.xlu0 %1517
      %v1519 = vrcp.pop %v1485
      %v1520 = vrcp.pop %v1488
      %v1521 = vrcp.pop %v1491
      %v1522 = vrcp.pop %v1494
      %v1523 = vrcp.pop %v1497
      %v1524 = vrcp.pop %v1500
      %v1525 = vrcp.pop %v1503
      %v1526 = vrcp.pop %v1506
      %v1527 = vrcp.pop %v1509
      %v1528 = vrcp.pop %v1512
      %v1529 = vrcp.pop %v1515
      %v1530 = vrcp.pop %v1518
      %v1531 = vmul.f32 %v1460, %v1519
      %v1532 = vmul.f32 %v1462, %v1520
      %v1533 = vmul.f32 %v1464, %v1521
      %v1534 = vmul.f32 %v1466, %v1522
      %v1535 = vmul.f32 %v1468, %v1523
      %v1536 = vmul.f32 %v1470, %v1524
      %v1537 = vmul.f32 %v1472, %v1525
      %v1538 = vmul.f32 %v1474, %v1526
      %v1539 = vmul.f32 %v1476, %v1527
      %v1540 = vmul.f32 %v1478, %v1528
      %v1541 = vmul.f32 %v1480, %v1529
      %v1542 = vmul.f32 %v1482, %v1530
      %1543 = vrot.lane.b32.xlu0 %v568, 48
      %v1544 = vpop.permute.xlu0 %1543
      %1545 = vrot.lane.b32.xlu0 %v573, 48
      %v1546 = vpop.permute.xlu0 %1545
      %1547 = vrot.lane.b32.xlu0 %v578, 48
      %v1548 = vpop.permute.xlu0 %1547
      %1549 = vrot.lane.b32.xlu0 %v583, 48
      %v1550 = vpop.permute.xlu0 %1549
      %1551 = vrot.lane.b32.xlu0 %v588, 48
      %v1552 = vpop.permute.xlu0 %1551
      %1553 = vrot.lane.b32.xlu0 %v593, 48
      %v1554 = vpop.permute.xlu0 %1553
      %1555 = vrot.lane.b32.xlu0 %v598, 48
      %v1556 = vpop.permute.xlu0 %1555
      %1557 = vrot.lane.b32.xlu0 %v603, 48
      %v1558 = vpop.permute.xlu0 %1557
      %1559 = vrot.lane.b32.xlu0 %v608, 48
      %v1560 = vpop.permute.xlu0 %1559
      %1561 = vrot.lane.b32.xlu0 %v613, 48
      %v1562 = vpop.permute.xlu0 %1561
      %1563 = vrot.lane.b32.xlu0 %v618, 48
      %v1564 = vpop.permute.xlu0 %1563
      %1565 = vrot.lane.b32.xlu0 %v623, 48
      %v1566 = vpop.permute.xlu0 %1565
      %v1580 = vsel %vm848, %v1531, 0
      %v1583 = vsel %vm848, %v1532, 0
      %v1586 = vsel %vm848, %v1533, 0
      %v1589 = vsel %vm848, %v1534, 0
      %v1592 = vsel %vm848, %v1535, 0
      %v1595 = vsel %vm848, %v1536, 0
      %v1598 = vsel %vm848, %v1537, 0
      %v1601 = vsel %vm848, %v1538, 0
      %v1604 = vsel %vm848, %v1539, 0
      %v1607 = vsel %vm848, %v1540, 0
      %v1610 = vsel %vm848, %v1541, 0
      %v1613 = vsel %vm848, %v1542, 0
      %1615 = vmatprep.subr.mxu0 0.0
      %1616 = vmatpush1.msra.mxu0 %v1544
      %1617 = vmatprep.subr.mxu0 0.0
      %1618 = vmatpush1.msra.mxu0 %v1546
      %1619 = vmatprep.subr.mxu0 0.0
      %1620 = vmatpush1.msra.mxu0 %v1548
      %1621 = vmatprep.subr.mxu0 0.0
      %1622 = vmatpush1.msra.mxu0 %v1550
      %1623 = vmatprep.subr.mxu0 0.0
      %1624 = vmatpush1.msra.mxu0 %v1552
      %1625 = vmatprep.subr.mxu0 0.0
      %1626 = vmatpush1.msra.mxu0 %v1554
      %1627 = vmatprep.subr.mxu0 0.0
      %1628 = vmatpush1.msra.mxu0 %v1556
      %1629 = vmatprep.subr.mxu0 0.0
      %1630 = vmatpush1.msra.mxu0 %v1558
      %1631 = vmatprep.subr.mxu0 0.0
      %1632 = vmatpush1.msra.mxu0 %v1560
      %1633 = vmatprep.subr.mxu0 0.0
      %1634 = vmatpush1.msra.mxu0 %v1562
      %1635 = vmatprep.subr.mxu0 0.0
      %1636 = vmatpush1.msra.mxu0 %v1564
      %1637 = vmatprep.subr.mxu0 0.0
      %1638 = vmatpush1.msra.mxu0 %v1566
      %1639 = vmatprep.subr.mxu0 0.0
      %1640 = vmatpush1.msra.mxu0 0.0
      %1641 = vmatprep.subr.mxu0 0.0
      %1642 = vmatpush1.msra.mxu0 0.0
      %1643 = vmatprep.subr.mxu0 0.0
      %1644 = vmatpush1.msra.mxu0 0.0
      %1645 = vmatprep.subr.mxu0 0.0
      %1646 = vmatpush1.msra.mxu0 0.0
      %1647 = vmatprep.subr.mxu0 0.0
      %1648 = vmatpush1.msra.mxu0 0.0
      %1649 = vmatprep.subr.mxu0 0.0
      %1650 = vmatpush1.msra.mxu0 0.0
      %1651 = vmatprep.subr.mxu0 0.0
      %1652 = vmatpush1.msra.mxu0 0.0
      %1653 = vmatprep.subr.mxu0 0.0
      %1654 = vmatpush1.msra.mxu0 0.0
      %1655 = vmatprep.subr.mxu0 0.0
      %1656 = vmatpush1.msra.mxu0 0.0
      %1657 = vmatprep.subr.mxu0 0.0
      %1658 = vmatpush1.msra.mxu0 0.0
      %1659 = vmatprep.subr.mxu0 0.0
      %1660 = vmatpush1.msra.mxu0 0.0
      %1661 = vmatprep.subr.mxu0 0.0
      %1662 = vmatpush1.msra.mxu0 0.0
      %1663 = vmatprep.subr.mxu0 0.0
      %1664 = vmatpush1.msra.mxu0 0.0
      %1665 = vmatprep.subr.mxu0 0.0
      %1666 = vmatpush1.msra.mxu0 0.0
      %1667 = vmatprep.subr.mxu0 0.0
      %1668 = vmatpush1.msra.mxu0 0.0
      %1669 = vmatprep.subr.mxu0 0.0
      %1670 = vmatpush1.msra.mxu0 0.0
      %1671 = vmatprep.subr.mxu0 0.0
      %1672 = vmatpush1.msra.mxu0 0.0
      %1673 = vmatprep.subr.mxu0 0.0
      %1674 = vmatpush1.msra.mxu0 0.0
      %1675 = vmatprep.subr.mxu0 0.0
      %1676 = vmatpush1.msra.mxu0 0.0
      %1677 = vmatprep.subr.mxu0 0.0
      %1678 = vmatpush1.msra.mxu0 0.0
      %1679 = vmatprep.mubr.f32.mxu0 0.0
      %1680 = vmatmul.mubr.f32.gmra.mrb[0].mxu0 %v1580
      %v1681 = vpop.f32.mrb[0].mxu0
      %v1682 = vadd.f32 0.0, %v1681
      %v1683 = vpop.f32.mrb[0].mxu0
      %1684 = vmatprep.mubr.f32.mxu0 0.0
      %1685 = vmatmul.mubr.f32.gmra.mrb[0].mxu0 %v1583
      %v1686 = vpop.f32.mrb[0].mxu0
      %v1687 = vadd.f32 0.0, %v1686
      %v1688 = vpop.f32.mrb[0].mxu0
      %1689 = vmatprep.mubr.f32.mxu0 0.0
      %1690 = vmatmul.mubr.f32.gmra.mrb[0].mxu0 %v1586
      %v1691 = vpop.f32.mrb[0].mxu0
      %v1692 = vadd.f32 0.0, %v1691
      %v1693 = vpop.f32.mrb[0].mxu0
      %1694 = vmatprep.mubr.f32.mxu0 0.0
      %1695 = vmatmul.mubr.f32.gmra.mrb[0].mxu0 %v1589
      %v1696 = vpop.f32.mrb[0].mxu0
      %v1697 = vadd.f32 0.0, %v1696
      %v1698 = vpop.f32.mrb[0].mxu0
      %1699 = vmatprep.mubr.f32.mxu0 0.0
      %1700 = vmatmul.mubr.f32.gmra.mrb[0].mxu0 %v1592
      %v1701 = vpop.f32.mrb[0].mxu0
      %v1702 = vadd.f32 0.0, %v1701
      %v1703 = vpop.f32.mrb[0].mxu0
      %1704 = vmatprep.mubr.f32.mxu0 0.0
      %1705 = vmatmul.mubr.f32.gmra.mrb[0].mxu0 %v1595
      %v1706 = vpop.f32.mrb[0].mxu0
      %v1707 = vadd.f32 0.0, %v1706
      %v1708 = vpop.f32.mrb[0].mxu0
      %1709 = vmatprep.mubr.f32.mxu0 0.0
      %1710 = vmatmul.mubr.f32.gmra.mrb[0].mxu0 %v1598
      %v1711 = vpop.f32.mrb[0].mxu0
      %v1712 = vadd.f32 0.0, %v1711
      %v1713 = vpop.f32.mrb[0].mxu0
      %1714 = vmatprep.mubr.f32.mxu0 0.0
      %1715 = vmatmul.mubr.f32.gmra.mrb[0].mxu0 %v1601
      %v1716 = vpop.f32.mrb[0].mxu0
      %v1717 = vadd.f32 0.0, %v1716
      %v1718 = vpop.f32.mrb[0].mxu0
      %1719 = vmatprep.mubr.f32.mxu0 0.0
      %1720 = vmatmul.mubr.f32.gmra.mrb[0].mxu0 %v1604
      %v1721 = vpop.f32.mrb[0].mxu0
      %v1722 = vadd.f32 0.0, %v1721
      %v1723 = vpop.f32.mrb[0].mxu0
      %1724 = vmatprep.mubr.f32.mxu0 0.0
      %1725 = vmatmul.mubr.f32.gmra.mrb[0].mxu0 %v1607
      %v1726 = vpop.f32.mrb[0].mxu0
      %v1727 = vadd.f32 0.0, %v1726
      %v1728 = vpop.f32.mrb[0].mxu0
      %1729 = vmatprep.mubr.f32.mxu0 0.0
      %1730 = vmatmul.mubr.f32.gmra.mrb[0].mxu0 %v1610
      %v1731 = vpop.f32.mrb[0].mxu0
      %v1732 = vadd.f32 0.0, %v1731
      %v1733 = vpop.f32.mrb[0].mxu0
      %1734 = vmatprep.mubr.f32.mxu0 0.0
      %1735 = vmatmul.mubr.f32.gmra.mrb[0].mxu0 %v1613
      %v1736 = vpop.f32.mrb[0].mxu0
      %v1737 = vadd.f32 0.0, %v1736
      %v1738 = vpop.f32.mrb[0].mxu0
      %1739 = vdwg.mxu0
      %1752 = vrot.lane.b32.xlu0 %v1682, 16
      %v1753 = vpop.permute.xlu0 %1752
      %1754 = vrot.lane.b32.xlu0 %v1687, 16
      %v1755 = vpop.permute.xlu0 %1754
      %1756 = vrot.lane.b32.xlu0 %v1692, 16
      %v1757 = vpop.permute.xlu0 %1756
      %1758 = vrot.lane.b32.xlu0 %v1697, 16
      %v1759 = vpop.permute.xlu0 %1758
      %1760 = vrot.lane.b32.xlu0 %v1702, 16
      %v1761 = vpop.permute.xlu0 %1760
      %1762 = vrot.lane.b32.xlu0 %v1707, 16
      %v1763 = vpop.permute.xlu0 %1762
      %1764 = vrot.lane.b32.xlu0 %v1712, 16
      %v1765 = vpop.permute.xlu0 %1764
      %1766 = vrot.lane.b32.xlu0 %v1717, 16
      %v1767 = vpop.permute.xlu0 %1766
      %1768 = vrot.lane.b32.xlu0 %v1722, 16
      %v1769 = vpop.permute.xlu0 %1768
      %1770 = vrot.lane.b32.xlu0 %v1727, 16
      %v1771 = vpop.permute.xlu0 %1770
      %1772 = vrot.lane.b32.xlu0 %v1732, 16
      %v1773 = vpop.permute.xlu0 %1772
      %1774 = vrot.lane.b32.xlu0 %v1737, 16
      %v1775 = vpop.permute.xlu0 %1774
      %v1788 = vsel %vm662, %v1120, %v1753
      %v1789 = vsel %vm662, %v1125, %v1755
      %v1790 = vsel %vm662, %v1130, %v1757
      %v1791 = vsel %vm662, %v1135, %v1759
      %v1792 = vsel %vm662, %v1140, %v1761
      %v1793 = vsel %vm662, %v1145, %v1763
      %v1794 = vsel %vm662, %v1150, %v1765
      %v1795 = vsel %vm662, %v1155, %v1767
      %v1796 = vsel %vm662, %v1160, %v1769
      %v1797 = vsel %vm662, %v1165, %v1771
      %v1798 = vsel %vm662, %v1170, %v1773
      %v1799 = vsel %vm662, %v1175, %v1775
      %v1800 = vld [vmem:[%s3] sm:$0xff]
      %v1801 = vld [vmem:[%s3 + $0x8] sm:$0xff]
      %v1802 = vld [vmem:[%s3 + $0x10] sm:$0xff]
      %v1803 = vld [vmem:[%s3 + $0x18] sm:$0xff]
      %v1804 = vld [vmem:[%s4] sm:$0x1]
      %v1806 = vlaneseq
      %v1807 = vshrl.u32 %v1806, 7
      %v1808 = vsub.s32 0, %v1807
      %v1809 = vrot.slane %v1804, %v1808
      %v1812 = vsel %vm464, %v1788, 0
      %v1815 = vsel %vm464, %v1789, 0
      %v1818 = vsel %vm464, %v1790, 0
      %v1821 = vsel %vm464, %v1791, 0
      %v1824 = vsel %vm464, %v1792, 0
      %v1827 = vsel %vm464, %v1793, 0
      %v1830 = vsel %vm464, %v1794, 0
      %v1833 = vsel %vm464, %v1795, 0
      %v1836 = vsel %vm464, %v1796, 0
      %v1839 = vsel %vm464, %v1797, 0
      %v1842 = vsel %vm464, %v1798, 0
      %v1845 = vsel %vm464, %v1799, 0
      %1847 = vmatprep.subr.mxu0 0.0
      %1848 = vmatpush1.msra.mxu0 %v1800
      %1849 = vmatprep.subr.mxu0 0.0
      %1850 = vmatpush1.msra.mxu0 %v1801
      %1851 = vmatprep.subr.mxu0 0.0
      %1852 = vmatpush1.msra.mxu0 %v1802
      %1853 = vmatprep.subr.mxu0 0.0
      %1854 = vmatpush1.msra.mxu0 %v1803
      %1855 = vmatprep.subr.mxu0 0.0
      %1856 = vmatpush1.msra.mxu0 0.0
      %1857 = vmatprep.subr.mxu0 0.0
      %1858 = vmatpush1.msra.mxu0 0.0
      %1859 = vmatprep.subr.mxu0 0.0
      %1860 = vmatpush1.msra.mxu0 0.0
      %1861 = vmatprep.subr.mxu0 0.0
      %1862 = vmatpush1.msra.mxu0 0.0
      %1863 = vmatprep.subr.mxu0 0.0
      %1864 = vmatpush1.msra.mxu0 0.0
      %1865 = vmatprep.subr.mxu0 0.0
      %1866 = vmatpush1.msra.mxu0 0.0
      %1867 = vmatprep.subr.mxu0 0.0
      %1868 = vmatpush1.msra.mxu0 0.0
      %1869 = vmatprep.subr.mxu0 0.0
      %1870 = vmatpush1.msra.mxu0 0.0
      %1871 = vmatprep.subr.mxu0 0.0
      %1872 = vmatpush1.msra.mxu0 0.0
      %1873 = vmatprep.subr.mxu0 0.0
      %1874 = vmatpush1.msra.mxu0 0.0
      %1875 = vmatprep.subr.mxu0 0.0
      %1876 = vmatpush1.msra.mxu0 0.0
      %1877 = vmatprep.subr.mxu0 0.0
      %1878 = vmatpush1.msra.mxu0 0.0
      %1879 = vmatprep.subr.mxu0 0.0
      %1880 = vmatpush1.msra.mxu0 0.0
      %1881 = vmatprep.subr.mxu0 0.0
      %1882 = vmatpush1.msra.mxu0 0.0
      %1883 = vmatprep.subr.mxu0 0.0
      %1884 = vmatpush1.msra.mxu0 0.0
      %1885 = vmatprep.subr.mxu0 0.0
      %1886 = vmatpush1.msra.mxu0 0.0
      %1887 = vmatprep.subr.mxu0 0.0
      %1888 = vmatpush1.msra.mxu0 0.0
      %1889 = vmatprep.subr.mxu0 0.0
      %1890 = vmatpush1.msra.mxu0 0.0
      %1891 = vmatprep.subr.mxu0 0.0
      %1892 = vmatpush1.msra.mxu0 0.0
      %1893 = vmatprep.subr.mxu0 0.0
      %1894 = vmatpush1.msra.mxu0 0.0
      %1895 = vmatprep.subr.mxu0 0.0
      %1896 = vmatpush1.msra.mxu0 0.0
      %1897 = vmatprep.subr.mxu0 0.0
      %1898 = vmatpush1.msra.mxu0 0.0
      %1899 = vmatprep.subr.mxu0 0.0
      %1900 = vmatpush1.msra.mxu0 0.0
      %1901 = vmatprep.subr.mxu0 0.0
      %1902 = vmatpush1.msra.mxu0 0.0
      %1903 = vmatprep.subr.mxu0 0.0
      %1904 = vmatpush1.msra.mxu0 0.0
      %1905 = vmatprep.subr.mxu0 0.0
      %1906 = vmatpush1.msra.mxu0 0.0
      %1907 = vmatprep.subr.mxu0 0.0
      %1908 = vmatpush1.msra.mxu0 0.0
      %1909 = vmatprep.subr.mxu0 0.0
      %1910 = vmatpush1.msra.mxu0 0.0
      %1911 = vmatprep.mubr.f32.mxu0 0.0
      %1912 = vmatmul.mubr.f32.gmra.mrb[0].mxu0 %v1812
      %v1913 = vpop.f32.mrb[0].mxu0
      %v1914 = vadd.f32 %v1809, %v1913
      %v1915 = vpop.f32.mrb[0].mxu0
      %1916 = vmatprep.mubr.f32.mxu0 0.0
      %1917 = vmatmul.mubr.f32.gmra.mrb[0].mxu0 %v1815
      %v1918 = vpop.f32.mrb[0].mxu0
      %v1919 = vadd.f32 %v1809, %v1918
      %v1920 = vpop.f32.mrb[0].mxu0
      %1921 = vmatprep.mubr.f32.mxu0 0.0
      %1922 = vmatmul.mubr.f32.gmra.mrb[0].mxu0 %v1818
      %v1923 = vpop.f32.mrb[0].mxu0
      %v1924 = vadd.f32 %v1809, %v1923
      %v1925 = vpop.f32.mrb[0].mxu0
      %1926 = vmatprep.mubr.f32.mxu0 0.0
      %1927 = vmatmul.mubr.f32.gmra.mrb[0].mxu0 %v1821
      %v1928 = vpop.f32.mrb[0].mxu0
      %v1929 = vadd.f32 %v1809, %v1928
      %v1930 = vpop.f32.mrb[0].mxu0
      %1931 = vmatprep.mubr.f32.mxu0 0.0
      %1932 = vmatmul.mubr.f32.gmra.mrb[0].mxu0 %v1824
      %v1933 = vpop.f32.mrb[0].mxu0
      %v1934 = vadd.f32 %v1809, %v1933
      %v1935 = vpop.f32.mrb[0].mxu0
      %1936 = vmatprep.mubr.f32.mxu0 0.0
      %1937 = vmatmul.mubr.f32.gmra.mrb[0].mxu0 %v1827
      %v1938 = vpop.f32.mrb[0].mxu0
      %v1939 = vadd.f32 %v1809, %v1938
      %v1940 = vpop.f32.mrb[0].mxu0
      %1941 = vmatprep.mubr.f32.mxu0 0.0
      %1942 = vmatmul.mubr.f32.gmra.mrb[0].mxu0 %v1830
      %v1943 = vpop.f32.mrb[0].mxu0
      %v1944 = vadd.f32 %v1809, %v1943
      %v1945 = vpop.f32.mrb[0].mxu0
      %1946 = vmatprep.mubr.f32.mxu0 0.0
      %1947 = vmatmul.mubr.f32.gmra.mrb[0].mxu0 %v1833
      %v1948 = vpop.f32.mrb[0].mxu0
      %v1949 = vadd.f32 %v1809, %v1948
      %v1950 = vpop.f32.mrb[0].mxu0
      %1951 = vmatprep.mubr.f32.mxu0 0.0
      %1952 = vmatmul.mubr.f32.gmra.mrb[0].mxu0 %v1836
      %v1953 = vpop.f32.mrb[0].mxu0
      %v1954 = vadd.f32 %v1809, %v1953
      %v1955 = vpop.f32.mrb[0].mxu0
      %1956 = vmatprep.mubr.f32.mxu0 0.0
      %1957 = vmatmul.mubr.f32.gmra.mrb[0].mxu0 %v1839
      %v1958 = vpop.f32.mrb[0].mxu0
      %v1959 = vadd.f32 %v1809, %v1958
      %v1960 = vpop.f32.mrb[0].mxu0
      %1961 = vmatprep.mubr.f32.mxu0 0.0
      %1962 = vmatmul.mubr.f32.gmra.mrb[0].mxu0 %v1842
      %v1963 = vpop.f32.mrb[0].mxu0
      %v1964 = vadd.f32 %v1809, %v1963
      %v1965 = vpop.f32.mrb[0].mxu0
      %1966 = vmatprep.mubr.f32.mxu0 0.0
      %1967 = vmatmul.mubr.f32.gmra.mrb[0].mxu0 %v1845
      %v1968 = vpop.f32.mrb[0].mxu0
      %v1969 = vadd.f32 %v1809, %v1968
      %v1970 = vpop.f32.mrb[0].mxu0
      %1971 = vdwg.mxu0
      %v1972 = vld [vmem:[%s5] sm:$0x1]
      %v1973 = vld [vmem:[%s6] sm:$0x1]
      %v1974 = vadd.f32 %v441, %v1914
      %v1975 = vadd.f32 %v442, %v1919
      %v1976 = vadd.f32 %v443, %v1924
      %v1977 = vadd.f32 %v444, %v1929
      %v1978 = vadd.f32 %v445, %v1934
      %v1979 = vadd.f32 %v446, %v1939
      %v1980 = vadd.f32 %v447, %v1944
      %v1981 = vadd.f32 %v448, %v1949
      %v1982 = vadd.f32 %v449, %v1954
      %v1983 = vadd.f32 %v450, %v1959
      %v1984 = vadd.f32 %v451, %v1964
      %v1985 = vadd.f32 %v452, %v1969
      %v1986 = vsel %vm464, %v1974, 0.0
      %1987 = vadd.xlane.f32.xlu0 %v1986
      %v1988 = vpop.xlane.xlu0 %1987
      %v1989 = vsel %vm464, %v1975, 0.0
      %1990 = vadd.xlane.f32.xlu0 %v1989
      %v1991 = vpop.xlane.xlu0 %1990
      %v1992 = vsel %vm464, %v1976, 0.0
      %1993 = vadd.xlane.f32.xlu0 %v1992
      %v1994 = vpop.xlane.xlu0 %1993
      %v1995 = vsel %vm464, %v1977, 0.0
      %1996 = vadd.xlane.f32.xlu0 %v1995
      %v1997 = vpop.xlane.xlu0 %1996
      %v1998 = vsel %vm464, %v1978, 0.0
      %1999 = vadd.xlane.f32.xlu0 %v1998
      %v2000 = vpop.xlane.xlu0 %1999
      %v2001 = vsel %vm464, %v1979, 0.0
      %2002 = vadd.xlane.f32.xlu0 %v2001
      %v2003 = vpop.xlane.xlu0 %2002
      %v2004 = vsel %vm464, %v1980, 0.0
      %2005 = vadd.xlane.f32.xlu0 %v2004
      %v2006 = vpop.xlane.xlu0 %2005
      %v2007 = vsel %vm464, %v1981, 0.0
      %2008 = vadd.xlane.f32.xlu0 %v2007
      %v2009 = vpop.xlane.xlu0 %2008
      %v2010 = vsel %vm464, %v1982, 0.0
      %2011 = vadd.xlane.f32.xlu0 %v2010
      %v2012 = vpop.xlane.xlu0 %2011
      %v2013 = vsel %vm464, %v1983, 0.0
      %2014 = vadd.xlane.f32.xlu0 %v2013
      %v2015 = vpop.xlane.xlu0 %2014
      %v2016 = vsel %vm464, %v1984, 0.0
      %2017 = vadd.xlane.f32.xlu0 %v2016
      %v2018 = vpop.xlane.xlu0 %2017
      %v2019 = vsel %vm464, %v1985, 0.0
      %2020 = vadd.xlane.f32.xlu0 %v2019
      %v2021 = vpop.xlane.xlu0 %2020
      %v2022 = vrcp.pop 32.0
      %v2023 = vmul.f32 %v1988, %v2022
      %v2024 = vmul.f32 %v1991, %v2022
      %v2025 = vmul.f32 %v1994, %v2022
      %v2026 = vmul.f32 %v1997, %v2022
      %v2027 = vmul.f32 %v2000, %v2022
      %v2028 = vmul.f32 %v2003, %v2022
      %v2029 = vmul.f32 %v2006, %v2022
      %v2030 = vmul.f32 %v2009, %v2022
      %v2031 = vmul.f32 %v2012, %v2022
      %v2032 = vmul.f32 %v2015, %v2022
      %v2033 = vmul.f32 %v2018, %v2022
      %v2034 = vmul.f32 %v2021, %v2022
      %v2035 = vsub.f32 %v1974, %v2023
      %v2036 = vsub.f32 %v1975, %v2024
      %v2037 = vsub.f32 %v1976, %v2025
      %v2038 = vsub.f32 %v1977, %v2026
      %v2039 = vsub.f32 %v1978, %v2027
      %v2040 = vsub.f32 %v1979, %v2028
      %v2041 = vsub.f32 %v1980, %v2029
      %v2042 = vsub.f32 %v1981, %v2030
      %v2043 = vsub.f32 %v1982, %v2031
      %v2044 = vsub.f32 %v1983, %v2032
      %v2045 = vsub.f32 %v1984, %v2033
      %v2046 = vsub.f32 %v1985, %v2034
      %v2047 = vmul.f32 %v2035, %v2035
      %v2048 = vmul.f32 %v2036, %v2036
      %v2049 = vmul.f32 %v2037, %v2037
      %v2050 = vmul.f32 %v2038, %v2038
      %v2051 = vmul.f32 %v2039, %v2039
      %v2052 = vmul.f32 %v2040, %v2040
      %v2053 = vmul.f32 %v2041, %v2041
      %v2054 = vmul.f32 %v2042, %v2042
      %v2055 = vmul.f32 %v2043, %v2043
      %v2056 = vmul.f32 %v2044, %v2044
      %v2057 = vmul.f32 %v2045, %v2045
      %v2058 = vmul.f32 %v2046, %v2046
      %v2059 = vsel %vm464, %v2047, 0.0
      %2060 = vadd.xlane.f32.xlu0 %v2059
      %v2061 = vpop.xlane.xlu0 %2060
      %v2062 = vsel %vm464, %v2048, 0.0
      %2063 = vadd.xlane.f32.xlu0 %v2062
      %v2064 = vpop.xlane.xlu0 %2063
      %v2065 = vsel %vm464, %v2049, 0.0
      %2066 = vadd.xlane.f32.xlu0 %v2065
      %v2067 = vpop.xlane.xlu0 %2066
      %v2068 = vsel %vm464, %v2050, 0.0
      %2069 = vadd.xlane.f32.xlu0 %v2068
      %v2070 = vpop.xlane.xlu0 %2069
      %v2071 = vsel %vm464, %v2051, 0.0
      %2072 = vadd.xlane.f32.xlu0 %v2071
      %v2073 = vpop.xlane.xlu0 %2072
      %v2074 = vsel %vm464, %v2052, 0.0
      %2075 = vadd.xlane.f32.xlu0 %v2074
      %v2076 = vpop.xlane.xlu0 %2075
      %v2077 = vsel %vm464, %v2053, 0.0
      %2078 = vadd.xlane.f32.xlu0 %v2077
      %v2079 = vpop.xlane.xlu0 %2078
      %v2080 = vsel %vm464, %v2054, 0.0
      %2081 = vadd.xlane.f32.xlu0 %v2080
      %v2082 = vpop.xlane.xlu0 %2081
      %v2083 = vsel %vm464, %v2055, 0.0
      %2084 = vadd.xlane.f32.xlu0 %v2083
      %v2085 = vpop.xlane.xlu0 %2084
      %v2086 = vsel %vm464, %v2056, 0.0
      %2087 = vadd.xlane.f32.xlu0 %v2086
      %v2088 = vpop.xlane.xlu0 %2087
      %v2089 = vsel %vm464, %v2057, 0.0
      %2090 = vadd.xlane.f32.xlu0 %v2089
      %v2091 = vpop.xlane.xlu0 %2090
      %v2092 = vsel %vm464, %v2058, 0.0
      %2093 = vadd.xlane.f32.xlu0 %v2092
      %v2094 = vpop.xlane.xlu0 %2093
      %v2095 = vmul.f32 %v2061, %v2022
      %v2096 = vmul.f32 %v2064, %v2022
      %v2097 = vmul.f32 %v2067, %v2022
      %v2098 = vmul.f32 %v2070, %v2022
      %v2099 = vmul.f32 %v2073, %v2022
      %v2100 = vmul.f32 %v2076, %v2022
      %v2101 = vmul.f32 %v2079, %v2022
      %v2102 = vmul.f32 %v2082, %v2022
      %v2103 = vmul.f32 %v2085, %v2022
      %v2104 = vmul.f32 %v2088, %v2022
      %v2105 = vmul.f32 %v2091, %v2022
      %v2106 = vmul.f32 %v2094, %v2022
      %v2107 = vadd.f32 %v2095, 1e-05
      %v2108 = vadd.f32 %v2096, 1e-05
      %v2109 = vadd.f32 %v2097, 1e-05
      %v2110 = vadd.f32 %v2098, 1e-05
      %v2111 = vadd.f32 %v2099, 1e-05
      %v2112 = vadd.f32 %v2100, 1e-05
      %v2113 = vadd.f32 %v2101, 1e-05
      %v2114 = vadd.f32 %v2102, 1e-05
      %v2115 = vadd.f32 %v2103, 1e-05
      %v2116 = vadd.f32 %v2104, 1e-05
      %v2117 = vadd.f32 %v2105, 1e-05
      %v2118 = vadd.f32 %v2106, 1e-05
      %v2119 = vrsqrt.pop %v2107
      %v2120 = vrsqrt.pop %v2108
      %v2121 = vrsqrt.pop %v2109
      %v2122 = vrsqrt.pop %v2110
      %v2123 = vrsqrt.pop %v2111
      %v2124 = vrsqrt.pop %v2112
      %v2125 = vrsqrt.pop %v2113
      %v2126 = vrsqrt.pop %v2114
      %v2127 = vrsqrt.pop %v2115
      %v2128 = vrsqrt.pop %v2116
      %v2129 = vrsqrt.pop %v2117
      %v2130 = vrsqrt.pop %v2118
      %v2131 = vmul.f32 %v2035, %v2119
      %v2132 = vmul.f32 %v2036, %v2120
      %v2133 = vmul.f32 %v2037, %v2121
      %v2134 = vmul.f32 %v2038, %v2122
      %v2135 = vmul.f32 %v2039, %v2123
      %v2136 = vmul.f32 %v2040, %v2124
      %v2137 = vmul.f32 %v2041, %v2125
      %v2138 = vmul.f32 %v2042, %v2126
      %v2139 = vmul.f32 %v2043, %v2127
      %v2140 = vmul.f32 %v2044, %v2128
      %v2141 = vmul.f32 %v2045, %v2129
      %v2142 = vmul.f32 %v2046, %v2130
      %v2144 = vlaneseq
      %v2145 = vshrl.u32 %v2144, 7
      %v2146 = vsub.s32 0, %v2145
      %v2147 = vrot.slane %v1972, %v2146
      %v2149 = vmul.f32 %v2131, %v2147
      %v2150 = vmul.f32 %v2132, %v2147
      %v2151 = vmul.f32 %v2133, %v2147
      %v2152 = vmul.f32 %v2134, %v2147
      %v2153 = vmul.f32 %v2135, %v2147
      %v2154 = vmul.f32 %v2136, %v2147
      %v2155 = vmul.f32 %v2137, %v2147
      %v2156 = vmul.f32 %v2138, %v2147
      %v2157 = vmul.f32 %v2139, %v2147
      %v2158 = vmul.f32 %v2140, %v2147
      %v2159 = vmul.f32 %v2141, %v2147
      %v2160 = vmul.f32 %v2142, %v2147
      %v2162 = vlaneseq
      %v2163 = vshrl.u32 %v2162, 7
      %v2164 = vsub.s32 0, %v2163
      %v2165 = vrot.slane %v1973, %v2164
      %v2167 = vadd.f32 %v2149, %v2165
      %v2168 = vadd.f32 %v2150, %v2165
      %v2169 = vadd.f32 %v2151, %v2165
      %v2170 = vadd.f32 %v2152, %v2165
      %v2171 = vadd.f32 %v2153, %v2165
      %v2172 = vadd.f32 %v2154, %v2165
      %v2173 = vadd.f32 %v2155, %v2165
      %v2174 = vadd.f32 %v2156, %v2165
      %v2175 = vadd.f32 %v2157, %v2165
      %v2176 = vadd.f32 %v2158, %v2165
      %v2177 = vadd.f32 %v2159, %v2165
      %v2178 = vadd.f32 %v2160, %v2165
      %v2179 = vld [vmem:[%s7] sm:$0xff]
      %v2180 = vld [vmem:[%s7 + $0x8] sm:$0xff]
      %v2181 = vld [vmem:[%s7 + $0x10] sm:$0xff]
      %v2182 = vld [vmem:[%s7 + $0x18] sm:$0xff]
      %v2183 = vld [vmem:[%s7 + $0x20] sm:$0xff]
      %v2184 = vld [vmem:[%s7 + $0x28] sm:$0xff]
      %v2185 = vld [vmem:[%s7 + $0x30] sm:$0xff]
      %v2186 = vld [vmem:[%s7 + $0x38] sm:$0xff]
      %v2187 = vld [vmem:[%s7 + $0x40] sm:$0xff]
      %v2188 = vld [vmem:[%s7 + $0x48] sm:$0xff]
      %v2189 = vld [vmem:[%s7 + $0x50] sm:$0xff]
      %v2190 = vld [vmem:[%s7 + $0x58] sm:$0xff]
      %v2191 = vld [vmem:[%s7 + $0x60] sm:$0xff]
      %v2192 = vld [vmem:[%s7 + $0x68] sm:$0xff]
      %v2193 = vld [vmem:[%s7 + $0x70] sm:$0xff]
      %v2194 = vld [vmem:[%s7 + $0x78] sm:$0xff]
      %v2195 = vld [vmem:[%s7 + $0x80] sm:$0xff]
      %v2196 = vld [vmem:[%s7 + $0x88] sm:$0xff]
      %v2197 = vld [vmem:[%s7 + $0x90] sm:$0xff]
      %v2198 = vld [vmem:[%s7 + $0x98] sm:$0xff]
      %v2199 = vld [vmem:[%s7 + $0xa0] sm:$0xff]
      %v2200 = vld [vmem:[%s7 + $0xa8] sm:$0xff]
      %v2201 = vld [vmem:[%s7 + $0xb0] sm:$0xff]
      %v2202 = vld [vmem:[%s7 + $0xb8] sm:$0xff]
      %v2203 = vld [vmem:[%s7 + $0xc0] sm:$0xff]
      %v2204 = vld [vmem:[%s7 + $0xc8] sm:$0xff]
      %v2205 = vld [vmem:[%s7 + $0xd0] sm:$0xff]
      %v2206 = vld [vmem:[%s7 + $0xd8] sm:$0xff]
      %v2207 = vld [vmem:[%s7 + $0xe0] sm:$0xff]
      %v2208 = vld [vmem:[%s7 + $0xe8] sm:$0xff]
      %v2209 = vld [vmem:[%s7 + $0xf0] sm:$0xff]
      %v2210 = vld [vmem:[%s7 + $0xf8] sm:$0xff]
      %v2211 = vld [vmem:[%s7 + $0x100] sm:$0xff]
      %v2212 = vld [vmem:[%s7 + $0x108] sm:$0xff]
      %v2213 = vld [vmem:[%s7 + $0x110] sm:$0xff]
      %v2214 = vld [vmem:[%s7 + $0x118] sm:$0xff]
      %v2215 = vld [vmem:[%s7 + $0x120] sm:$0xff]
      %v2216 = vld [vmem:[%s7 + $0x128] sm:$0xff]
      %v2217 = vld [vmem:[%s7 + $0x130] sm:$0xff]
      %v2218 = vld [vmem:[%s7 + $0x138] sm:$0xff]
      %v2219 = vld [vmem:[%s7 + $0x140] sm:$0xff]
      %v2220 = vld [vmem:[%s7 + $0x148] sm:$0xff]
      %v2221 = vld [vmem:[%s7 + $0x150] sm:$0xff]
      %v2222 = vld [vmem:[%s7 + $0x158] sm:$0xff]
      %v2223 = vld [vmem:[%s7 + $0x160] sm:$0xff]
      %v2224 = vld [vmem:[%s7 + $0x168] sm:$0xff]
      %v2225 = vld [vmem:[%s7 + $0x170] sm:$0xff]
      %v2226 = vld [vmem:[%s7 + $0x178] sm:$0xff]
      %v2227 = vld [vmem:[%s7 + $0x180] sm:$0xff]
      %v2228 = vld [vmem:[%s7 + $0x188] sm:$0xff]
      %v2229 = vld [vmem:[%s7 + $0x190] sm:$0xff]
      %v2230 = vld [vmem:[%s7 + $0x198] sm:$0xff]
      %v2231 = vld [vmem:[%s7 + $0x1a0] sm:$0xff]
      %v2232 = vld [vmem:[%s7 + $0x1a8] sm:$0xff]
      %v2233 = vld [vmem:[%s7 + $0x1b0] sm:$0xff]
      %v2234 = vld [vmem:[%s7 + $0x1b8] sm:$0xff]
      %v2235 = vld [vmem:[%s7 + $0x1c0] sm:$0xff]
      %v2236 = vld [vmem:[%s7 + $0x1c8] sm:$0xff]
      %v2237 = vld [vmem:[%s7 + $0x1d0] sm:$0xff]
      %v2238 = vld [vmem:[%s7 + $0x1d8] sm:$0xff]
      %v2239 = vld [vmem:[%s7 + $0x1e0] sm:$0xff]
      %v2240 = vld [vmem:[%s7 + $0x1e8] sm:$0xff]
      %v2241 = vld [vmem:[%s7 + $0x1f0] sm:$0xff]
      %v2242 = vld [vmem:[%s7 + $0x1f8] sm:$0xff]
      %v2243 = vld [vmem:[%s8] sm:$0xff]
      %v2244 = vld [vmem:[%s8 + $0x8] sm:$0xff]
      %v2247 = vlaneseq
      %v2248 = vshrl.u32 %v2247, 7
      %v2249 = vsub.s32 0, %v2248
      %v2250 = vrot.slane %v2243, %v2249
      %v2251 = vlaneseq
      %v2252 = vshrl.u32 %v2251, 7
      %v2253 = vsub.s32 1, %v2252
      %v2254 = vrot.slane %v2243, %v2253
      %v2255 = vlaneseq
      %v2256 = vshrl.u32 %v2255, 7
      %v2257 = vsub.s32 2, %v2256
      %v2258 = vrot.slane %v2243, %v2257
      %v2259 = vlaneseq
      %v2260 = vshrl.u32 %v2259, 7
      %v2261 = vsub.s32 3, %v2260
      %v2262 = vrot.slane %v2243, %v2261
      %v2263 = vlaneseq
      %v2264 = vshrl.u32 %v2263, 7
      %v2265 = vsub.s32 4, %v2264
      %v2266 = vrot.slane %v2243, %v2265
      %v2267 = vlaneseq
      %v2268 = vshrl.u32 %v2267, 7
      %v2269 = vsub.s32 5, %v2268
      %v2270 = vrot.slane %v2243, %v2269
      %v2271 = vlaneseq
      %v2272 = vshrl.u32 %v2271, 7
      %v2273 = vsub.s32 6, %v2272
      %v2274 = vrot.slane %v2243, %v2273
      %v2275 = vlaneseq
      %v2276 = vshrl.u32 %v2275, 7
      %v2277 = vsub.s32 7, %v2276
      %v2278 = vrot.slane %v2243, %v2277
      %v2279 = vlaneseq
      %v2280 = vshrl.u32 %v2279, 7
      %v2281 = vsub.s32 0, %v2280
      %v2282 = vrot.slane %v2244, %v2281
      %v2283 = vlaneseq
      %v2284 = vshrl.u32 %v2283, 7
      %v2285 = vsub.s32 1, %v2284
      %v2286 = vrot.slane %v2244, %v2285
      %v2287 = vlaneseq
      %v2288 = vshrl.u32 %v2287, 7
      %v2289 = vsub.s32 2, %v2288
      %v2290 = vrot.slane %v2244, %v2289
      %v2291 = vlaneseq
      %v2292 = vshrl.u32 %v2291, 7
      %v2293 = vsub.s32 3, %v2292
      %v2294 = vrot.slane %v2244, %v2293
      %v2295 = vlaneseq
      %v2296 = vshrl.u32 %v2295, 7
      %v2297 = vsub.s32 4, %v2296
      %v2298 = vrot.slane %v2244, %v2297
      %v2299 = vlaneseq
      %v2300 = vshrl.u32 %v2299, 7
      %v2301 = vsub.s32 5, %v2300
      %v2302 = vrot.slane %v2244, %v2301
      %v2303 = vlaneseq
      %v2304 = vshrl.u32 %v2303, 7
      %v2305 = vsub.s32 6, %v2304
      %v2306 = vrot.slane %v2244, %v2305
      %v2307 = vlaneseq
      %v2308 = vshrl.u32 %v2307, 7
      %v2309 = vsub.s32 7, %v2308
      %v2310 = vrot.slane %v2244, %v2309
      %v2328 = vsel %vm464, %v2167, 0
      %v2331 = vsel %vm464, %v2168, 0
      %v2334 = vsel %vm464, %v2169, 0
      %v2337 = vsel %vm464, %v2170, 0
      %v2340 = vsel %vm464, %v2171, 0
      %v2343 = vsel %vm464, %v2172, 0
      %v2346 = vsel %vm464, %v2173, 0
      %v2349 = vsel %vm464, %v2174, 0
      %v2352 = vsel %vm464, %v2175, 0
      %v2355 = vsel %vm464, %v2176, 0
      %v2358 = vsel %vm464, %v2177, 0
      %v2361 = vsel %vm464, %v2178, 0
      %2363 = vmatprep.subr.mxu0 %v2180
      %2364 = vmatpush1.msra.mxu0 %v2179
      %2365 = vmatprep.subr.mxu0 %v2196
      %2366 = vmatpush1.msra.mxu0 %v2195
      %2367 = vmatprep.subr.mxu0 %v2212
      %2368 = vmatpush1.msra.mxu0 %v2211
      %2369 = vmatprep.subr.mxu0 %v2228
      %2370 = vmatpush1.msra.mxu0 %v2227
      %2371 = vmatprep.subr.mxu0 0.0
      %2372 = vmatpush1.msra.mxu0 0.0
      %2373 = vmatprep.subr.mxu0 0.0
      %2374 = vmatpush1.msra.mxu0 0.0
      %2375 = vmatprep.subr.mxu0 0.0
      %2376 = vmatpush1.msra.mxu0 0.0
      %2377 = vmatprep.subr.mxu0 0.0
      %2378 = vmatpush1.msra.mxu0 0.0
      %2379 = vmatprep.subr.mxu0 0.0
      %2380 = vmatpush1.msra.mxu0 0.0
      %2381 = vmatprep.subr.mxu0 0.0
      %2382 = vmatpush1.msra.mxu0 0.0
      %2383 = vmatprep.subr.mxu0 0.0
      %2384 = vmatpush1.msra.mxu0 0.0
      %2385 = vmatprep.subr.mxu0 0.0
      %2386 = vmatpush1.msra.mxu0 0.0
      %2387 = vmatprep.subr.mxu0 0.0
      %2388 = vmatpush1.msra.mxu0 0.0
      %2389 = vmatprep.subr.mxu0 0.0
      %2390 = vmatpush1.msra.mxu0 0.0
      %2391 = vmatprep.subr.mxu0 0.0
      %2392 = vmatpush1.msra.mxu0 0.0
      %2393 = vmatprep.subr.mxu0 0.0
      %2394 = vmatpush1.msra.mxu0 0.0
      %2395 = vmatprep.subr.mxu0 0.0
      %2396 = vmatpush1.msra.mxu0 0.0
      %2397 = vmatprep.subr.mxu0 0.0
      %2398 = vmatpush1.msra.mxu0 0.0
      %2399 = vmatprep.subr.mxu0 0.0
      %2400 = vmatpush1.msra.mxu0 0.0
      %2401 = vmatprep.subr.mxu0 0.0
      %2402 = vmatpush1.msra.mxu0 0.0
      %2403 = vmatprep.subr.mxu0 0.0
      %2404 = vmatpush1.msra.mxu0 0.0
      %2405 = vmatprep.subr.mxu0 0.0
      %2406 = vmatpush1.msra.mxu0 0.0
      %2407 = vmatprep.subr.mxu0 0.0
      %2408 = vmatpush1.msra.mxu0 0.0
      %2409 = vmatprep.subr.mxu0 0.0
      %2410 = vmatpush1.msra.mxu0 0.0
      %2411 = vmatprep.subr.mxu0 0.0
      %2412 = vmatpush1.msra.mxu0 0.0
      %2413 = vmatprep.subr.mxu0 0.0
      %2414 = vmatpush1.msra.mxu0 0.0
      %2415 = vmatprep.subr.mxu0 0.0
      %2416 = vmatpush1.msra.mxu0 0.0
      %2417 = vmatprep.subr.mxu0 0.0
      %2418 = vmatpush1.msra.mxu0 0.0
      %2419 = vmatprep.subr.mxu0 0.0
      %2420 = vmatpush1.msra.mxu0 0.0
      %2421 = vmatprep.subr.mxu0 0.0
      %2422 = vmatpush1.msra.mxu0 0.0
      %2423 = vmatprep.subr.mxu0 0.0
      %2424 = vmatpush1.msra.mxu0 0.0
      %2425 = vmatprep.subr.mxu0 0.0
      %2426 = vmatpush1.msra.mxu0 0.0
      %2427 = vmatprep.mubr.f32.mxu0 0.0
      %2428 = vmatmul.mubr.f32.gmra.mrb[0].mxu0 %v2328
      %v2429 = vpop.f32.mrb[0].mxu0
      %v2430 = vadd.f32 %v2250, %v2429
      %v2431 = vpop.f32.mrb[0].mxu0
      %v2432 = vadd.f32 %v2254, %v2431
      %2433 = vmatprep.mubr.f32.mxu0 0.0
      %2434 = vmatmul.mubr.f32.gmra.mrb[0].mxu0 %v2331
      %v2435 = vpop.f32.mrb[0].mxu0
      %v2436 = vadd.f32 %v2250, %v2435
      %v2437 = vpop.f32.mrb[0].mxu0
      %v2438 = vadd.f32 %v2254, %v2437
      %2439 = vmatprep.mubr.f32.mxu0 0.0
      %2440 = vmatmul.mubr.f32.gmra.mrb[0].mxu0 %v2334
      %v2441 = vpop.f32.mrb[0].mxu0
      %v2442 = vadd.f32 %v2250, %v2441
      %v2443 = vpop.f32.mrb[0].mxu0
      %v2444 = vadd.f32 %v2254, %v2443
      %2445 = vmatprep.mubr.f32.mxu0 0.0
      %2446 = vmatmul.mubr.f32.gmra.mrb[0].mxu0 %v2337
      %v2447 = vpop.f32.mrb[0].mxu0
      %v2448 = vadd.f32 %v2250, %v2447
      %v2449 = vpop.f32.mrb[0].mxu0
      %v2450 = vadd.f32 %v2254, %v2449
      %2451 = vmatprep.mubr.f32.mxu0 0.0
      %2452 = vmatmul.mubr.f32.gmra.mrb[0].mxu0 %v2340
      %v2453 = vpop.f32.mrb[0].mxu0
      %v2454 = vadd.f32 %v2250, %v2453
      %v2455 = vpop.f32.mrb[0].mxu0
      %v2456 = vadd.f32 %v2254, %v2455
      %2457 = vmatprep.mubr.f32.mxu0 0.0
      %2458 = vmatmul.mubr.f32.gmra.mrb[0].mxu0 %v2343
      %v2459 = vpop.f32.mrb[0].mxu0
      %v2460 = vadd.f32 %v2250, %v2459
      %v2461 = vpop.f32.mrb[0].mxu0
      %v2462 = vadd.f32 %v2254, %v2461
      %2463 = vmatprep.mubr.f32.mxu0 0.0
      %2464 = vmatmul.mubr.f32.gmra.mrb[0].mxu0 %v2346
      %v2465 = vpop.f32.mrb[0].mxu0
      %v2466 = vadd.f32 %v2250, %v2465
      %v2467 = vpop.f32.mrb[0].mxu0
      %v2468 = vadd.f32 %v2254, %v2467
      %2469 = vmatprep.mubr.f32.mxu0 0.0
      %2470 = vmatmul.mubr.f32.gmra.mrb[0].mxu0 %v2349
      %v2471 = vpop.f32.mrb[0].mxu0
      %v2472 = vadd.f32 %v2250, %v2471
      %v2473 = vpop.f32.mrb[0].mxu0
      %v2474 = vadd.f32 %v2254, %v2473
      %2475 = vmatprep.mubr.f32.mxu0 0.0
      %2476 = vmatmul.mubr.f32.gmra.mrb[0].mxu0 %v2352
      %v2477 = vpop.f32.mrb[0].mxu0
      %v2478 = vadd.f32 %v2250, %v2477
      %v2479 = vpop.f32.mrb[0].mxu0
      %v2480 = vadd.f32 %v2254, %v2479
      %2481 = vmatprep.mubr.f32.mxu0 0.0
      %2482 = vmatmul.mubr.f32.gmra.mrb[0].mxu0 %v2355
      %v2483 = vpop.f32.mrb[0].mxu0
      %v2484 = vadd.f32 %v2250, %v2483
      %v2485 = vpop.f32.mrb[0].mxu0
      %v2486 = vadd.f32 %v2254, %v2485
      %2487 = vmatprep.mubr.f32.mxu0 0.0
      %2488 = vmatmul.mubr.f32.gmra.mrb[0].mxu0 %v2358
      %v2489 = vpop.f32.mrb[0].mxu0
      %v2490 = vadd.f32 %v2250, %v2489
      %v2491 = vpop.f32.mrb[0].mxu0
      %v2492 = vadd.f32 %v2254, %v2491
      %2493 = vmatprep.mubr.f32.mxu0 0.0
      %2494 = vmatmul.mubr.f32.gmra.mrb[0].mxu0 %v2361
      %v2495 = vpop.f32.mrb[0].mxu0
      %v2496 = vadd.f32 %v2250, %v2495
      %v2497 = vpop.f32.mrb[0].mxu0
      %v2498 = vadd.f32 %v2254, %v2497
      %2499 = vdwg.mxu0
      %2500 = vmatprep.subr.mxu0 %v2182
      %2501 = vmatpush1.msra.mxu0 %v2181
      %2502 = vmatprep.subr.mxu0 %v2198
      %2503 = vmatpush1.msra.mxu0 %v2197
      %2504 = vmatprep.subr.mxu0 %v2214
      %2505 = vmatpush1.msra.mxu0 %v2213
      %2506 = vmatprep.subr.mxu0 %v2230
      %2507 = vmatpush1.msra.mxu0 %v2229
      %2508 = vmatprep.subr.mxu0 0.0
      %2509 = vmatpush1.msra.mxu0 0.0
      %2510 = vmatprep.subr.mxu0 0.0
      %2511 = vmatpush1.msra.mxu0 0.0
      %2512 = vmatprep.subr.mxu0 0.0
      %2513 = vmatpush1.msra.mxu0 0.0
      %2514 = vmatprep.subr.mxu0 0.0
      %2515 = vmatpush1.msra.mxu0 0.0
      %2516 = vmatprep.subr.mxu0 0.0
      %2517 = vmatpush1.msra.mxu0 0.0
      %2518 = vmatprep.subr.mxu0 0.0
      %2519 = vmatpush1.msra.mxu0 0.0
      %2520 = vmatprep.subr.mxu0 0.0
      %2521 = vmatpush1.msra.mxu0 0.0
      %2522 = vmatprep.subr.mxu0 0.0
      %2523 = vmatpush1.msra.mxu0 0.0
      %2524 = vmatprep.subr.mxu0 0.0
      %2525 = vmatpush1.msra.mxu0 0.0
      %2526 = vmatprep.subr.mxu0 0.0
      %2527 = vmatpush1.msra.mxu0 0.0
      %2528 = vmatprep.subr.mxu0 0.0
      %2529 = vmatpush1.msra.mxu0 0.0
      %2530 = vmatprep.subr.mxu0 0.0
      %2531 = vmatpush1.msra.mxu0 0.0
      %2532 = vmatprep.subr.mxu0 0.0
      %2533 = vmatpush1.msra.mxu0 0.0
      %2534 = vmatprep.subr.mxu0 0.0
      %2535 = vmatpush1.msra.mxu0 0.0
      %2536 = vmatprep.subr.mxu0 0.0
      %2537 = vmatpush1.msra.mxu0 0.0
      %2538 = vmatprep.subr.mxu0 0.0
      %2539 = vmatpush1.msra.mxu0 0.0
      %2540 = vmatprep.subr.mxu0 0.0
      %2541 = vmatpush1.msra.mxu0 0.0
      %2542 = vmatprep.subr.mxu0 0.0
      %2543 = vmatpush1.msra.mxu0 0.0
      %2544 = vmatprep.subr.mxu0 0.0
      %2545 = vmatpush1.msra.mxu0 0.0
      %2546 = vmatprep.subr.mxu0 0.0
      %2547 = vmatpush1.msra.mxu0 0.0
      %2548 = vmatprep.subr.mxu0 0.0
      %2549 = vmatpush1.msra.mxu0 0.0
      %2550 = vmatprep.subr.mxu0 0.0
      %2551 = vmatpush1.msra.mxu0 0.0
      %2552 = vmatprep.subr.mxu0 0.0
      %2553 = vmatpush1.msra.mxu0 0.0
      %2554 = vmatprep.subr.mxu0 0.0
      %2555 = vmatpush1.msra.mxu0 0.0
      %2556 = vmatprep.subr.mxu0 0.0
      %2557 = vmatpush1.msra.mxu0 0.0
      %2558 = vmatprep.subr.mxu0 0.0
      %2559 = vmatpush1.msra.mxu0 0.0
      %2560 = vmatprep.subr.mxu0 0.0
      %2561 = vmatpush1.msra.mxu0 0.0
      %2562 = vmatprep.subr.mxu0 0.0
      %2563 = vmatpush1.msra.mxu0 0.0
      %2564 = vmatprep.mubr.f32.mxu0 0.0
      %2565 = vmatmul.mubr.f32.gmra.mrb[0].mxu0 %v2328
      %v2566 = vpop.f32.mrb[0].mxu0
      %v2567 = vadd.f32 %v2258, %v2566
      %v2568 = vpop.f32.mrb[0].mxu0
      %v2569 = vadd.f32 %v2262, %v2568
      %2570 = vmatprep.mubr.f32.mxu0 0.0
      %2571 = vmatmul.mubr.f32.gmra.mrb[0].mxu0 %v2331
      %v2572 = vpop.f32.mrb[0].mxu0
      %v2573 = vadd.f32 %v2258, %v2572
      %v2574 = vpop.f32.mrb[0].mxu0
      %v2575 = vadd.f32 %v2262, %v2574
      %2576 = vmatprep.mubr.f32.mxu0 0.0
      %2577 = vmatmul.mubr.f32.gmra.mrb[0].mxu0 %v2334
      %v2578 = vpop.f32.mrb[0].mxu0
      %v2579 = vadd.f32 %v2258, %v2578
      %v2580 = vpop.f32.mrb[0].mxu0
      %v2581 = vadd.f32 %v2262, %v2580
      %2582 = vmatprep.mubr.f32.mxu0 0.0
      %2583 = vmatmul.mubr.f32.gmra.mrb[0].mxu0 %v2337
      %v2584 = vpop.f32.mrb[0].mxu0
      %v2585 = vadd.f32 %v2258, %v2584
      %v2586 = vpop.f32.mrb[0].mxu0
      %v2587 = vadd.f32 %v2262, %v2586
      %2588 = vmatprep.mubr.f32.mxu0 0.0
      %2589 = vmatmul.mubr.f32.gmra.mrb[0].mxu0 %v2340
      %v2590 = vpop.f32.mrb[0].mxu0
      %v2591 = vadd.f32 %v2258, %v2590
      %v2592 = vpop.f32.mrb[0].mxu0
      %v2593 = vadd.f32 %v2262, %v2592
      %2594 = vmatprep.mubr.f32.mxu0 0.0
      %2595 = vmatmul.mubr.f32.gmra.mrb[0].mxu0 %v2343
      %v2596 = vpop.f32.mrb[0].mxu0
      %v2597 = vadd.f32 %v2258, %v2596
      %v2598 = vpop.f32.mrb[0].mxu0
      %v2599 = vadd.f32 %v2262, %v2598
      %2600 = vmatprep.mubr.f32.mxu0 0.0
      %2601 = vmatmul.mubr.f32.gmra.mrb[0].mxu0 %v2346
      %v2602 = vpop.f32.mrb[0].mxu0
      %v2603 = vadd.f32 %v2258, %v2602
      %v2604 = vpop.f32.mrb[0].mxu0
      %v2605 = vadd.f32 %v2262, %v2604
      %2606 = vmatprep.mubr.f32.mxu0 0.0
      %2607 = vmatmul.mubr.f32.gmra.mrb[0].mxu0 %v2349
      %v2608 = vpop.f32.mrb[0].mxu0
      %v2609 = vadd.f32 %v2258, %v2608
      %v2610 = vpop.f32.mrb[0].mxu0
      %v2611 = vadd.f32 %v2262, %v2610
      %2612 = vmatprep.mubr.f32.mxu0 0.0
      %2613 = vmatmul.mubr.f32.gmra.mrb[0].mxu0 %v2352
      %v2614 = vpop.f32.mrb[0].mxu0
      %v2615 = vadd.f32 %v2258, %v2614
      %v2616 = vpop.f32.mrb[0].mxu0
      %v2617 = vadd.f32 %v2262, %v2616
      %2618 = vmatprep.mubr.f32.mxu0 0.0
      %2619 = vmatmul.mubr.f32.gmra.mrb[0].mxu0 %v2355
      %v2620 = vpop.f32.mrb[0].mxu0
      %v2621 = vadd.f32 %v2258, %v2620
      %v2622 = vpop.f32.mrb[0].mxu0
      %v2623 = vadd.f32 %v2262, %v2622
      %2624 = vmatprep.mubr.f32.mxu0 0.0
      %2625 = vmatmul.mubr.f32.gmra.mrb[0].mxu0 %v2358
      %v2626 = vpop.f32.mrb[0].mxu0
      %v2627 = vadd.f32 %v2258, %v2626
      %v2628 = vpop.f32.mrb[0].mxu0
      %v2629 = vadd.f32 %v2262, %v2628
      %2630 = vmatprep.mubr.f32.mxu0 0.0
      %2631 = vmatmul.mubr.f32.gmra.mrb[0].mxu0 %v2361
      %v2632 = vpop.f32.mrb[0].mxu0
      %v2633 = vadd.f32 %v2258, %v2632
      %v2634 = vpop.f32.mrb[0].mxu0
      %v2635 = vadd.f32 %v2262, %v2634
      %2636 = vdwg.mxu0
      %2637 = vmatprep.subr.mxu0 %v2184
      %2638 = vmatpush1.msra.mxu0 %v2183
      %2639 = vmatprep.subr.mxu0 %v2200
      %2640 = vmatpush1.msra.mxu0 %v2199
      %2641 = vmatprep.subr.mxu0 %v2216
      %2642 = vmatpush1.msra.mxu0 %v2215
      %2643 = vmatprep.subr.mxu0 %v2232
      %2644 = vmatpush1.msra.mxu0 %v2231
      %2645 = vmatprep.subr.mxu0 0.0
      %2646 = vmatpush1.msra.mxu0 0.0
      %2647 = vmatprep.subr.mxu0 0.0
      %2648 = vmatpush1.msra.mxu0 0.0
      %2649 = vmatprep.subr.mxu0 0.0
      %2650 = vmatpush1.msra.mxu0 0.0
      %2651 = vmatprep.subr.mxu0 0.0
      %2652 = vmatpush1.msra.mxu0 0.0
      %2653 = vmatprep.subr.mxu0 0.0
      %2654 = vmatpush1.msra.mxu0 0.0
      %2655 = vmatprep.subr.mxu0 0.0
      %2656 = vmatpush1.msra.mxu0 0.0
      %2657 = vmatprep.subr.mxu0 0.0
      %2658 = vmatpush1.msra.mxu0 0.0
      %2659 = vmatprep.subr.mxu0 0.0
      %2660 = vmatpush1.msra.mxu0 0.0
      %2661 = vmatprep.subr.mxu0 0.0
      %2662 = vmatpush1.msra.mxu0 0.0
      %2663 = vmatprep.subr.mxu0 0.0
      %2664 = vmatpush1.msra.mxu0 0.0
      %2665 = vmatprep.subr.mxu0 0.0
      %2666 = vmatpush1.msra.mxu0 0.0
      %2667 = vmatprep.subr.mxu0 0.0
      %2668 = vmatpush1.msra.mxu0 0.0
      %2669 = vmatprep.subr.mxu0 0.0
      %2670 = vmatpush1.msra.mxu0 0.0
      %2671 = vmatprep.subr.mxu0 0.0
      %2672 = vmatpush1.msra.mxu0 0.0
      %2673 = vmatprep.subr.mxu0 0.0
      %2674 = vmatpush1.msra.mxu0 0.0
      %2675 = vmatprep.subr.mxu0 0.0
      %2676 = vmatpush1.msra.mxu0 0.0
      %2677 = vmatprep.subr.mxu0 0.0
      %2678 = vmatpush1.msra.mxu0 0.0
      %2679 = vmatprep.subr.mxu0 0.0
      %2680 = vmatpush1.msra.mxu0 0.0
      %2681 = vmatprep.subr.mxu0 0.0
      %2682 = vmatpush1.msra.mxu0 0.0
      %2683 = vmatprep.subr.mxu0 0.0
      %2684 = vmatpush1.msra.mxu0 0.0
      %2685 = vmatprep.subr.mxu0 0.0
      %2686 = vmatpush1.msra.mxu0 0.0
      %2687 = vmatprep.subr.mxu0 0.0
      %2688 = vmatpush1.msra.mxu0 0.0
      %2689 = vmatprep.subr.mxu0 0.0
      %2690 = vmatpush1.msra.mxu0 0.0
      %2691 = vmatprep.subr.mxu0 0.0
      %2692 = vmatpush1.msra.mxu0 0.0
      %2693 = vmatprep.subr.mxu0 0.0
      %2694 = vmatpush1.msra.mxu0 0.0
      %2695 = vmatprep.subr.mxu0 0.0
      %2696 = vmatpush1.msra.mxu0 0.0
      %2697 = vmatprep.subr.mxu0 0.0
      %2698 = vmatpush1.msra.mxu0 0.0
      %2699 = vmatprep.subr.mxu0 0.0
      %2700 = vmatpush1.msra.mxu0 0.0
      %2701 = vmatprep.mubr.f32.mxu0 0.0
      %2702 = vmatmul.mubr.f32.gmra.mrb[0].mxu0 %v2328
      %v2703 = vpop.f32.mrb[0].mxu0
      %v2704 = vadd.f32 %v2266, %v2703
      %v2705 = vpop.f32.mrb[0].mxu0
      %v2706 = vadd.f32 %v2270, %v2705
      %2707 = vmatprep.mubr.f32.mxu0 0.0
      %2708 = vmatmul.mubr.f32.gmra.mrb[0].mxu0 %v2331
      %v2709 = vpop.f32.mrb[0].mxu0
      %v2710 = vadd.f32 %v2266, %v2709
      %v2711 = vpop.f32.mrb[0].mxu0
      %v2712 = vadd.f32 %v2270, %v2711
      %2713 = vmatprep.mubr.f32.mxu0 0.0
      %2714 = vmatmul.mubr.f32.gmra.mrb[0].mxu0 %v2334
      %v2715 = vpop.f32.mrb[0].mxu0
      %v2716 = vadd.f32 %v2266, %v2715
      %v2717 = vpop.f32.mrb[0].mxu0
      %v2718 = vadd.f32 %v2270, %v2717
      %2719 = vmatprep.mubr.f32.mxu0 0.0
      %2720 = vmatmul.mubr.f32.gmra.mrb[0].mxu0 %v2337
      %v2721 = vpop.f32.mrb[0].mxu0
      %v2722 = vadd.f32 %v2266, %v2721
      %v2723 = vpop.f32.mrb[0].mxu0
      %v2724 = vadd.f32 %v2270, %v2723
      %2725 = vmatprep.mubr.f32.mxu0 0.0
      %2726 = vmatmul.mubr.f32.gmra.mrb[0].mxu0 %v2340
      %v2727 = vpop.f32.mrb[0].mxu0
      %v2728 = vadd.f32 %v2266, %v2727
      %v2729 = vpop.f32.mrb[0].mxu0
      %v2730 = vadd.f32 %v2270, %v2729
      %2731 = vmatprep.mubr.f32.mxu0 0.0
      %2732 = vmatmul.mubr.f32.gmra.mrb[0].mxu0 %v2343
      %v2733 = vpop.f32.mrb[0].mxu0
      %v2734 = vadd.f32 %v2266, %v2733
      %v2735 = vpop.f32.mrb[0].mxu0
      %v2736 = vadd.f32 %v2270, %v2735
      %2737 = vmatprep.mubr.f32.mxu0 0.0
      %2738 = vmatmul.mubr.f32.gmra.mrb[0].mxu0 %v2346
      %v2739 = vpop.f32.mrb[0].mxu0
      %v2740 = vadd.f32 %v2266, %v2739
      %v2741 = vpop.f32.mrb[0].mxu0
      %v2742 = vadd.f32 %v2270, %v2741
      %2743 = vmatprep.mubr.f32.mxu0 0.0
      %2744 = vmatmul.mubr.f32.gmra.mrb[0].mxu0 %v2349
      %v2745 = vpop.f32.mrb[0].mxu0
      %v2746 = vadd.f32 %v2266, %v2745
      %v2747 = vpop.f32.mrb[0].mxu0
      %v2748 = vadd.f32 %v2270, %v2747
      %2749 = vmatprep.mubr.f32.mxu0 0.0
      %2750 = vmatmul.mubr.f32.gmra.mrb[0].mxu0 %v2352
      %v2751 = vpop.f32.mrb[0].mxu0
      %v2752 = vadd.f32 %v2266, %v2751
      %v2753 = vpop.f32.mrb[0].mxu0
      %v2754 = vadd.f32 %v2270, %v2753
      %2755 = vmatprep.mubr.f32.mxu0 0.0
      %2756 = vmatmul.mubr.f32.gmra.mrb[0].mxu0 %v2355
      %v2757 = vpop.f32.mrb[0].mxu0
      %v2758 = vadd.f32 %v2266, %v2757
      %v2759 = vpop.f32.mrb[0].mxu0
      %v2760 = vadd.f32 %v2270, %v2759
      %2761 = vmatprep.mubr.f32.mxu0 0.0
      %2762 = vmatmul.mubr.f32.gmra.mrb[0].mxu0 %v2358
      %v2763 = vpop.f32.mrb[0].mxu0
      %v2764 = vadd.f32 %v2266, %v2763
      %v2765 = vpop.f32.mrb[0].mxu0
      %v2766 = vadd.f32 %v2270, %v2765
      %2767 = vmatprep.mubr.f32.mxu0 0.0
      %2768 = vmatmul.mubr.f32.gmra.mrb[0].mxu0 %v2361
      %v2769 = vpop.f32.mrb[0].mxu0
      %v2770 = vadd.f32 %v2266, %v2769
      %v2771 = vpop.f32.mrb[0].mxu0
      %v2772 = vadd.f32 %v2270, %v2771
      %2773 = vdwg.mxu0
      %2774 = vmatprep.subr.mxu0 %v2186
      %2775 = vmatpush1.msra.mxu0 %v2185
      %2776 = vmatprep.subr.mxu0 %v2202
      %2777 = vmatpush1.msra.mxu0 %v2201
      %2778 = vmatprep.subr.mxu0 %v2218
      %2779 = vmatpush1.msra.mxu0 %v2217
      %2780 = vmatprep.subr.mxu0 %v2234
      %2781 = vmatpush1.msra.mxu0 %v2233
      %2782 = vmatprep.subr.mxu0 0.0
      %2783 = vmatpush1.msra.mxu0 0.0
      %2784 = vmatprep.subr.mxu0 0.0
      %2785 = vmatpush1.msra.mxu0 0.0
      %2786 = vmatprep.subr.mxu0 0.0
      %2787 = vmatpush1.msra.mxu0 0.0
      %2788 = vmatprep.subr.mxu0 0.0
      %2789 = vmatpush1.msra.mxu0 0.0
      %2790 = vmatprep.subr.mxu0 0.0
      %2791 = vmatpush1.msra.mxu0 0.0
      %2792 = vmatprep.subr.mxu0 0.0
      %2793 = vmatpush1.msra.mxu0 0.0
      %2794 = vmatprep.subr.mxu0 0.0
      %2795 = vmatpush1.msra.mxu0 0.0
      %2796 = vmatprep.subr.mxu0 0.0
      %2797 = vmatpush1.msra.mxu0 0.0
      %2798 = vmatprep.subr.mxu0 0.0
      %2799 = vmatpush1.msra.mxu0 0.0
      %2800 = vmatprep.subr.mxu0 0.0
      %2801 = vmatpush1.msra.mxu0 0.0
      %2802 = vmatprep.subr.mxu0 0.0
      %2803 = vmatpush1.msra.mxu0 0.0
      %2804 = vmatprep.subr.mxu0 0.0
      %2805 = vmatpush1.msra.mxu0 0.0
      %2806 = vmatprep.subr.mxu0 0.0
      %2807 = vmatpush1.msra.mxu0 0.0
      %2808 = vmatprep.subr.mxu0 0.0
      %2809 = vmatpush1.msra.mxu0 0.0
      %2810 = vmatprep.subr.mxu0 0.0
      %2811 = vmatpush1.msra.mxu0 0.0
      %2812 = vmatprep.subr.mxu0 0.0
      %2813 = vmatpush1.msra.mxu0 0.0
      %2814 = vmatprep.subr.mxu0 0.0
      %2815 = vmatpush1.msra.mxu0 0.0
      %2816 = vmatprep.subr.mxu0 0.0
      %2817 = vmatpush1.msra.mxu0 0.0
      %2818 = vmatprep.subr.mxu0 0.0
      %2819 = vmatpush1.msra.mxu0 0.0
      %2820 = vmatprep.subr.mxu0 0.0
      %2821 = vmatpush1.msra.mxu0 0.0
      %2822 = vmatprep.subr.mxu0 0.0
      %2823 = vmatpush1.msra.mxu0 0.0
      %2824 = vmatprep.subr.mxu0 0.0
      %2825 = vmatpush1.msra.mxu0 0.0
      %2826 = vmatprep.subr.mxu0 0.0
      %2827 = vmatpush1.msra.mxu0 0.0
      %2828 = vmatprep.subr.mxu0 0.0
      %2829 = vmatpush1.msra.mxu0 0.0
      %2830 = vmatprep.subr.mxu0 0.0
      %2831 = vmatpush1.msra.mxu0 0.0
      %2832 = vmatprep.subr.mxu0 0.0
      %2833 = vmatpush1.msra.mxu0 0.0
      %2834 = vmatprep.subr.mxu0 0.0
      %2835 = vmatpush1.msra.mxu0 0.0
      %2836 = vmatprep.subr.mxu0 0.0
      %2837 = vmatpush1.msra.mxu0 0.0
      %2838 = vmatprep.mubr.f32.mxu0 0.0
      %2839 = vmatmul.mubr.f32.gmra.mrb[0].mxu0 %v2328
      %v2840 = vpop.f32.mrb[0].mxu0
      %v2841 = vadd.f32 %v2274, %v2840
      %v2842 = vpop.f32.mrb[0].mxu0
      %v2843 = vadd.f32 %v2278, %v2842
      %2844 = vmatprep.mubr.f32.mxu0 0.0
      %2845 = vmatmul.mubr.f32.gmra.mrb[0].mxu0 %v2331
      %v2846 = vpop.f32.mrb[0].mxu0
      %v2847 = vadd.f32 %v2274, %v2846
      %v2848 = vpop.f32.mrb[0].mxu0
      %v2849 = vadd.f32 %v2278, %v2848
      %2850 = vmatprep.mubr.f32.mxu0 0.0
      %2851 = vmatmul.mubr.f32.gmra.mrb[0].mxu0 %v2334
      %v2852 = vpop.f32.mrb[0].mxu0
      %v2853 = vadd.f32 %v2274, %v2852
      %v2854 = vpop.f32.mrb[0].mxu0
      %v2855 = vadd.f32 %v2278, %v2854
      %2856 = vmatprep.mubr.f32.mxu0 0.0
      %2857 = vmatmul.mubr.f32.gmra.mrb[0].mxu0 %v2337
      %v2858 = vpop.f32.mrb[0].mxu0
      %v2859 = vadd.f32 %v2274, %v2858
      %v2860 = vpop.f32.mrb[0].mxu0
      %v2861 = vadd.f32 %v2278, %v2860
      %2862 = vmatprep.mubr.f32.mxu0 0.0
      %2863 = vmatmul.mubr.f32.gmra.mrb[0].mxu0 %v2340
      %v2864 = vpop.f32.mrb[0].mxu0
      %v2865 = vadd.f32 %v2274, %v2864
      %v2866 = vpop.f32.mrb[0].mxu0
      %v2867 = vadd.f32 %v2278, %v2866
      %2868 = vmatprep.mubr.f32.mxu0 0.0
      %2869 = vmatmul.mubr.f32.gmra.mrb[0].mxu0 %v2343
      %v2870 = vpop.f32.mrb[0].mxu0
      %v2871 = vadd.f32 %v2274, %v2870
      %v2872 = vpop.f32.mrb[0].mxu0
      %v2873 = vadd.f32 %v2278, %v2872
      %2874 = vmatprep.mubr.f32.mxu0 0.0
      %2875 = vmatmul.mubr.f32.gmra.mrb[0].mxu0 %v2346
      %v2876 = vpop.f32.mrb[0].mxu0
      %v2877 = vadd.f32 %v2274, %v2876
      %v2878 = vpop.f32.mrb[0].mxu0
      %v2879 = vadd.f32 %v2278, %v2878
      %2880 = vmatprep.mubr.f32.mxu0 0.0
      %2881 = vmatmul.mubr.f32.gmra.mrb[0].mxu0 %v2349
      %v2882 = vpop.f32.mrb[0].mxu0
      %v2883 = vadd.f32 %v2274, %v2882
      %v2884 = vpop.f32.mrb[0].mxu0
      %v2885 = vadd.f32 %v2278, %v2884
      %2886 = vmatprep.mubr.f32.mxu0 0.0
      %2887 = vmatmul.mubr.f32.gmra.mrb[0].mxu0 %v2352
      %v2888 = vpop.f32.mrb[0].mxu0
      %v2889 = vadd.f32 %v2274, %v2888
      %v2890 = vpop.f32.mrb[0].mxu0
      %v2891 = vadd.f32 %v2278, %v2890
      %2892 = vmatprep.mubr.f32.mxu0 0.0
      %2893 = vmatmul.mubr.f32.gmra.mrb[0].mxu0 %v2355
      %v2894 = vpop.f32.mrb[0].mxu0
      %v2895 = vadd.f32 %v2274, %v2894
      %v2896 = vpop.f32.mrb[0].mxu0
      %v2897 = vadd.f32 %v2278, %v2896
      %2898 = vmatprep.mubr.f32.mxu0 0.0
      %2899 = vmatmul.mubr.f32.gmra.mrb[0].mxu0 %v2358
      %v2900 = vpop.f32.mrb[0].mxu0
      %v2901 = vadd.f32 %v2274, %v2900
      %v2902 = vpop.f32.mrb[0].mxu0
      %v2903 = vadd.f32 %v2278, %v2902
      %2904 = vmatprep.mubr.f32.mxu0 0.0
      %2905 = vmatmul.mubr.f32.gmra.mrb[0].mxu0 %v2361
      %v2906 = vpop.f32.mrb[0].mxu0
      %v2907 = vadd.f32 %v2274, %v2906
      %v2908 = vpop.f32.mrb[0].mxu0
      %v2909 = vadd.f32 %v2278, %v2908
      %2910 = vdwg.mxu0
      %2911 = vmatprep.subr.mxu0 %v2188
      %2912 = vmatpush1.msra.mxu0 %v2187
      %2913 = vmatprep.subr.mxu0 %v2204
      %2914 = vmatpush1.msra.mxu0 %v2203
      %2915 = vmatprep.subr.mxu0 %v2220
      %2916 = vmatpush1.msra.mxu0 %v2219
      %2917 = vmatprep.subr.mxu0 %v2236
      %2918 = vmatpush1.msra.mxu0 %v2235
      %2919 = vmatprep.subr.mxu0 0.0
      %2920 = vmatpush1.msra.mxu0 0.0
      %2921 = vmatprep.subr.mxu0 0.0
      %2922 = vmatpush1.msra.mxu0 0.0
      %2923 = vmatprep.subr.mxu0 0.0
      %2924 = vmatpush1.msra.mxu0 0.0
      %2925 = vmatprep.subr.mxu0 0.0
      %2926 = vmatpush1.msra.mxu0 0.0
      %2927 = vmatprep.subr.mxu0 0.0
      %2928 = vmatpush1.msra.mxu0 0.0
      %2929 = vmatprep.subr.mxu0 0.0
      %2930 = vmatpush1.msra.mxu0 0.0
      %2931 = vmatprep.subr.mxu0 0.0
      %2932 = vmatpush1.msra.mxu0 0.0
      %2933 = vmatprep.subr.mxu0 0.0
      %2934 = vmatpush1.msra.mxu0 0.0
      %2935 = vmatprep.subr.mxu0 0.0
      %2936 = vmatpush1.msra.mxu0 0.0
      %2937 = vmatprep.subr.mxu0 0.0
      %2938 = vmatpush1.msra.mxu0 0.0
      %2939 = vmatprep.subr.mxu0 0.0
      %2940 = vmatpush1.msra.mxu0 0.0
      %2941 = vmatprep.subr.mxu0 0.0
      %2942 = vmatpush1.msra.mxu0 0.0
      %2943 = vmatprep.subr.mxu0 0.0
      %2944 = vmatpush1.msra.mxu0 0.0
      %2945 = vmatprep.subr.mxu0 0.0
      %2946 = vmatpush1.msra.mxu0 0.0
      %2947 = vmatprep.subr.mxu0 0.0
      %2948 = vmatpush1.msra.mxu0 0.0
      %2949 = vmatprep.subr.mxu0 0.0
      %2950 = vmatpush1.msra.mxu0 0.0
      %2951 = vmatprep.subr.mxu0 0.0
      %2952 = vmatpush1.msra.mxu0 0.0
      %2953 = vmatprep.subr.mxu0 0.0
      %2954 = vmatpush1.msra.mxu0 0.0
      %2955 = vmatprep.subr.mxu0 0.0
      %2956 = vmatpush1.msra.mxu0 0.0
      %2957 = vmatprep.subr.mxu0 0.0
      %2958 = vmatpush1.msra.mxu0 0.0
      %2959 = vmatprep.subr.mxu0 0.0
      %2960 = vmatpush1.msra.mxu0 0.0
      %2961 = vmatprep.subr.mxu0 0.0
      %2962 = vmatpush1.msra.mxu0 0.0
      %2963 = vmatprep.subr.mxu0 0.0
      %2964 = vmatpush1.msra.mxu0 0.0
      %2965 = vmatprep.subr.mxu0 0.0
      %2966 = vmatpush1.msra.mxu0 0.0
      %2967 = vmatprep.subr.mxu0 0.0
      %2968 = vmatpush1.msra.mxu0 0.0
      %2969 = vmatprep.subr.mxu0 0.0
      %2970 = vmatpush1.msra.mxu0 0.0
      %2971 = vmatprep.subr.mxu0 0.0
      %2972 = vmatpush1.msra.mxu0 0.0
      %2973 = vmatprep.subr.mxu0 0.0
      %2974 = vmatpush1.msra.mxu0 0.0
      %2975 = vmatprep.mubr.f32.mxu0 0.0
      %2976 = vmatmul.mubr.f32.gmra.mrb[0].mxu0 %v2328
      %v2977 = vpop.f32.mrb[0].mxu0
      %v2978 = vadd.f32 %v2282, %v2977
      %v2979 = vpop.f32.mrb[0].mxu0
      %v2980 = vadd.f32 %v2286, %v2979
      %2981 = vmatprep.mubr.f32.mxu0 0.0
      %2982 = vmatmul.mubr.f32.gmra.mrb[0].mxu0 %v2331
      %v2983 = vpop.f32.mrb[0].mxu0
      %v2984 = vadd.f32 %v2282, %v2983
      %v2985 = vpop.f32.mrb[0].mxu0
      %v2986 = vadd.f32 %v2286, %v2985
      %2987 = vmatprep.mubr.f32.mxu0 0.0
      %2988 = vmatmul.mubr.f32.gmra.mrb[0].mxu0 %v2334
      %v2989 = vpop.f32.mrb[0].mxu0
      %v2990 = vadd.f32 %v2282, %v2989
      %v2991 = vpop.f32.mrb[0].mxu0
      %v2992 = vadd.f32 %v2286, %v2991
      %2993 = vmatprep.mubr.f32.mxu0 0.0
      %2994 = vmatmul.mubr.f32.gmra.mrb[0].mxu0 %v2337
      %v2995 = vpop.f32.mrb[0].mxu0
      %v2996 = vadd.f32 %v2282, %v2995
      %v2997 = vpop.f32.mrb[0].mxu0
      %v2998 = vadd.f32 %v2286, %v2997
      %2999 = vmatprep.mubr.f32.mxu0 0.0
      %3000 = vmatmul.mubr.f32.gmra.mrb[0].mxu0 %v2340
      %v3001 = vpop.f32.mrb[0].mxu0
      %v3002 = vadd.f32 %v2282, %v3001
      %v3003 = vpop.f32.mrb[0].mxu0
      %v3004 = vadd.f32 %v2286, %v3003
      %3005 = vmatprep.mubr.f32.mxu0 0.0
      %3006 = vmatmul.mubr.f32.gmra.mrb[0].mxu0 %v2343
      %v3007 = vpop.f32.mrb[0].mxu0
      %v3008 = vadd.f32 %v2282, %v3007
      %v3009 = vpop.f32.mrb[0].mxu0
      %v3010 = vadd.f32 %v2286, %v3009
      %3011 = vmatprep.mubr.f32.mxu0 0.0
      %3012 = vmatmul.mubr.f32.gmra.mrb[0].mxu0 %v2346
      %v3013 = vpop.f32.mrb[0].mxu0
      %v3014 = vadd.f32 %v2282, %v3013
      %v3015 = vpop.f32.mrb[0].mxu0
      %v3016 = vadd.f32 %v2286, %v3015
      %3017 = vmatprep.mubr.f32.mxu0 0.0
      %3018 = vmatmul.mubr.f32.gmra.mrb[0].mxu0 %v2349
      %v3019 = vpop.f32.mrb[0].mxu0
      %v3020 = vadd.f32 %v2282, %v3019
      %v3021 = vpop.f32.mrb[0].mxu0
      %v3022 = vadd.f32 %v2286, %v3021
      %3023 = vmatprep.mubr.f32.mxu0 0.0
      %3024 = vmatmul.mubr.f32.gmra.mrb[0].mxu0 %v2352
      %v3025 = vpop.f32.mrb[0].mxu0
      %v3026 = vadd.f32 %v2282, %v3025
      %v3027 = vpop.f32.mrb[0].mxu0
      %v3028 = vadd.f32 %v2286, %v3027
      %3029 = vmatprep.mubr.f32.mxu0 0.0
      %3030 = vmatmul.mubr.f32.gmra.mrb[0].mxu0 %v2355
      %v3031 = vpop.f32.mrb[0].mxu0
      %v3032 = vadd.f32 %v2282, %v3031
      %v3033 = vpop.f32.mrb[0].mxu0
      %v3034 = vadd.f32 %v2286, %v3033
      %3035 = vmatprep.mubr.f32.mxu0 0.0
      %3036 = vmatmul.mubr.f32.gmra.mrb[0].mxu0 %v2358
      %v3037 = vpop.f32.mrb[0].mxu0
      %v3038 = vadd.f32 %v2282, %v3037
      %v3039 = vpop.f32.mrb[0].mxu0
      %v3040 = vadd.f32 %v2286, %v3039
      %3041 = vmatprep.mubr.f32.mxu0 0.0
      %3042 = vmatmul.mubr.f32.gmra.mrb[0].mxu0 %v2361
      %v3043 = vpop.f32.mrb[0].mxu0
      %v3044 = vadd.f32 %v2282, %v3043
      %v3045 = vpop.f32.mrb[0].mxu0
      %v3046 = vadd.f32 %v2286, %v3045
      %3047 = vdwg.mxu0
      %3048 = vmatprep.subr.mxu0 %v2190
      %3049 = vmatpush1.msra.mxu0 %v2189
      %3050 = vmatprep.subr.mxu0 %v2206
      %3051 = vmatpush1.msra.mxu0 %v2205
      %3052 = vmatprep.subr.mxu0 %v2222
      %3053 = vmatpush1.msra.mxu0 %v2221
      %3054 = vmatprep.subr.mxu0 %v2238
      %3055 = vmatpush1.msra.mxu0 %v2237
      %3056 = vmatprep.subr.mxu0 0.0
      %3057 = vmatpush1.msra.mxu0 0.0
      %3058 = vmatprep.subr.mxu0 0.0
      %3059 = vmatpush1.msra.mxu0 0.0
      %3060 = vmatprep.subr.mxu0 0.0
      %3061 = vmatpush1.msra.mxu0 0.0
      %3062 = vmatprep.subr.mxu0 0.0
      %3063 = vmatpush1.msra.mxu0 0.0
      %3064 = vmatprep.subr.mxu0 0.0
      %3065 = vmatpush1.msra.mxu0 0.0
      %3066 = vmatprep.subr.mxu0 0.0
      %3067 = vmatpush1.msra.mxu0 0.0
      %3068 = vmatprep.subr.mxu0 0.0
      %3069 = vmatpush1.msra.mxu0 0.0
      %3070 = vmatprep.subr.mxu0 0.0
      %3071 = vmatpush1.msra.mxu0 0.0
      %3072 = vmatprep.subr.mxu0 0.0
      %3073 = vmatpush1.msra.mxu0 0.0
      %3074 = vmatprep.subr.mxu0 0.0
      %3075 = vmatpush1.msra.mxu0 0.0
      %3076 = vmatprep.subr.mxu0 0.0
      %3077 = vmatpush1.msra.mxu0 0.0
      %3078 = vmatprep.subr.mxu0 0.0
      %3079 = vmatpush1.msra.mxu0 0.0
      %3080 = vmatprep.subr.mxu0 0.0
      %3081 = vmatpush1.msra.mxu0 0.0
      %3082 = vmatprep.subr.mxu0 0.0
      %3083 = vmatpush1.msra.mxu0 0.0
      %3084 = vmatprep.subr.mxu0 0.0
      %3085 = vmatpush1.msra.mxu0 0.0
      %3086 = vmatprep.subr.mxu0 0.0
      %3087 = vmatpush1.msra.mxu0 0.0
      %3088 = vmatprep.subr.mxu0 0.0
      %3089 = vmatpush1.msra.mxu0 0.0
      %3090 = vmatprep.subr.mxu0 0.0
      %3091 = vmatpush1.msra.mxu0 0.0
      %3092 = vmatprep.subr.mxu0 0.0
      %3093 = vmatpush1.msra.mxu0 0.0
      %3094 = vmatprep.subr.mxu0 0.0
      %3095 = vmatpush1.msra.mxu0 0.0
      %3096 = vmatprep.subr.mxu0 0.0
      %3097 = vmatpush1.msra.mxu0 0.0
      %3098 = vmatprep.subr.mxu0 0.0
      %3099 = vmatpush1.msra.mxu0 0.0
      %3100 = vmatprep.subr.mxu0 0.0
      %3101 = vmatpush1.msra.mxu0 0.0
      %3102 = vmatprep.subr.mxu0 0.0
      %3103 = vmatpush1.msra.mxu0 0.0
      %3104 = vmatprep.subr.mxu0 0.0
      %3105 = vmatpush1.msra.mxu0 0.0
      %3106 = vmatprep.subr.mxu0 0.0
      %3107 = vmatpush1.msra.mxu0 0.0
      %3108 = vmatprep.subr.mxu0 0.0
      %3109 = vmatpush1.msra.mxu0 0.0
      %3110 = vmatprep.subr.mxu0 0.0
      %3111 = vmatpush1.msra.mxu0 0.0
      %3112 = vmatprep.mubr.f32.mxu0 0.0
      %3113 = vmatmul.mubr.f32.gmra.mrb[0].mxu0 %v2328
      %v3114 = vpop.f32.mrb[0].mxu0
      %v3115 = vadd.f32 %v2290, %v3114
      %v3116 = vpop.f32.mrb[0].mxu0
      %v3117 = vadd.f32 %v2294, %v3116
      %3118 = vmatprep.mubr.f32.mxu0 0.0
      %3119 = vmatmul.mubr.f32.gmra.mrb[0].mxu0 %v2331
      %v3120 = vpop.f32.mrb[0].mxu0
      %v3121 = vadd.f32 %v2290, %v3120
      %v3122 = vpop.f32.mrb[0].mxu0
      %v3123 = vadd.f32 %v2294, %v3122
      %3124 = vmatprep.mubr.f32.mxu0 0.0
      %3125 = vmatmul.mubr.f32.gmra.mrb[0].mxu0 %v2334
      %v3126 = vpop.f32.mrb[0].mxu0
      %v3127 = vadd.f32 %v2290, %v3126
      %v3128 = vpop.f32.mrb[0].mxu0
      %v3129 = vadd.f32 %v2294, %v3128
      %3130 = vmatprep.mubr.f32.mxu0 0.0
      %3131 = vmatmul.mubr.f32.gmra.mrb[0].mxu0 %v2337
      %v3132 = vpop.f32.mrb[0].mxu0
      %v3133 = vadd.f32 %v2290, %v3132
      %v3134 = vpop.f32.mrb[0].mxu0
      %v3135 = vadd.f32 %v2294, %v3134
      %3136 = vmatprep.mubr.f32.mxu0 0.0
      %3137 = vmatmul.mubr.f32.gmra.mrb[0].mxu0 %v2340
      %v3138 = vpop.f32.mrb[0].mxu0
      %v3139 = vadd.f32 %v2290, %v3138
      %v3140 = vpop.f32.mrb[0].mxu0
      %v3141 = vadd.f32 %v2294, %v3140
      %3142 = vmatprep.mubr.f32.mxu0 0.0
      %3143 = vmatmul.mubr.f32.gmra.mrb[0].mxu0 %v2343
      %v3144 = vpop.f32.mrb[0].mxu0
      %v3145 = vadd.f32 %v2290, %v3144
      %v3146 = vpop.f32.mrb[0].mxu0
      %v3147 = vadd.f32 %v2294, %v3146
      %3148 = vmatprep.mubr.f32.mxu0 0.0
      %3149 = vmatmul.mubr.f32.gmra.mrb[0].mxu0 %v2346
      %v3150 = vpop.f32.mrb[0].mxu0
      %v3151 = vadd.f32 %v2290, %v3150
      %v3152 = vpop.f32.mrb[0].mxu0
      %v3153 = vadd.f32 %v2294, %v3152
      %3154 = vmatprep.mubr.f32.mxu0 0.0
      %3155 = vmatmul.mubr.f32.gmra.mrb[0].mxu0 %v2349
      %v3156 = vpop.f32.mrb[0].mxu0
      %v3157 = vadd.f32 %v2290, %v3156
      %v3158 = vpop.f32.mrb[0].mxu0
      %v3159 = vadd.f32 %v2294, %v3158
      %3160 = vmatprep.mubr.f32.mxu0 0.0
      %3161 = vmatmul.mubr.f32.gmra.mrb[0].mxu0 %v2352
      %v3162 = vpop.f32.mrb[0].mxu0
      %v3163 = vadd.f32 %v2290, %v3162
      %v3164 = vpop.f32.mrb[0].mxu0
      %v3165 = vadd.f32 %v2294, %v3164
      %3166 = vmatprep.mubr.f32.mxu0 0.0
      %3167 = vmatmul.mubr.f32.gmra.mrb[0].mxu0 %v2355
      %v3168 = vpop.f32.mrb[0].mxu0
      %v3169 = vadd.f32 %v2290, %v3168
      %v3170 = vpop.f32.mrb[0].mxu0
      %v3171 = vadd.f32 %v2294, %v3170
      %3172 = vmatprep.mubr.f32.mxu0 0.0
      %3173 = vmatmul.mubr.f32.gmra.mrb[0].mxu0 %v2358
      %v3174 = vpop.f32.mrb[0].mxu0
      %v3175 = vadd.f32 %v2290, %v3174
      %v3176 = vpop.f32.mrb[0].mxu0
      %v3177 = vadd.f32 %v2294, %v3176
      %3178 = vmatprep.mubr.f32.mxu0 0.0
      %3179 = vmatmul.mubr.f32.gmra.mrb[0].mxu0 %v2361
      %v3180 = vpop.f32.mrb[0].mxu0
      %v3181 = vadd.f32 %v2290, %v3180
      %v3182 = vpop.f32.mrb[0].mxu0
      %v3183 = vadd.f32 %v2294, %v3182
      %3184 = vdwg.mxu0
      %3185 = vmatprep.subr.mxu0 %v2192
      %3186 = vmatpush1.msra.mxu0 %v2191
      %3187 = vmatprep.subr.mxu0 %v2208
      %3188 = vmatpush1.msra.mxu0 %v2207
      %3189 = vmatprep.subr.mxu0 %v2224
      %3190 = vmatpush1.msra.mxu0 %v2223
      %3191 = vmatprep.subr.mxu0 %v2240
      %3192 = vmatpush1.msra.mxu0 %v2239
      %3193 = vmatprep.subr.mxu0 0.0
      %3194 = vmatpush1.msra.mxu0 0.0
      %3195 = vmatprep.subr.mxu0 0.0
      %3196 = vmatpush1.msra.mxu0 0.0
      %3197 = vmatprep.subr.mxu0 0.0
      %3198 = vmatpush1.msra.mxu0 0.0
      %3199 = vmatprep.subr.mxu0 0.0
      %3200 = vmatpush1.msra.mxu0 0.0
      %3201 = vmatprep.subr.mxu0 0.0
      %3202 = vmatpush1.msra.mxu0 0.0
      %3203 = vmatprep.subr.mxu0 0.0
      %3204 = vmatpush1.msra.mxu0 0.0
      %3205 = vmatprep.subr.mxu0 0.0
      %3206 = vmatpush1.msra.mxu0 0.0
      %3207 = vmatprep.subr.mxu0 0.0
      %3208 = vmatpush1.msra.mxu0 0.0
      %3209 = vmatprep.subr.mxu0 0.0
      %3210 = vmatpush1.msra.mxu0 0.0
      %3211 = vmatprep.subr.mxu0 0.0
      %3212 = vmatpush1.msra.mxu0 0.0
      %3213 = vmatprep.subr.mxu0 0.0
      %3214 = vmatpush1.msra.mxu0 0.0
      %3215 = vmatprep.subr.mxu0 0.0
      %3216 = vmatpush1.msra.mxu0 0.0
      %3217 = vmatprep.subr.mxu0 0.0
      %3218 = vmatpush1.msra.mxu0 0.0
      %3219 = vmatprep.subr.mxu0 0.0
      %3220 = vmatpush1.msra.mxu0 0.0
      %3221 = vmatprep.subr.mxu0 0.0
      %3222 = vmatpush1.msra.mxu0 0.0
      %3223 = vmatprep.subr.mxu0 0.0
      %3224 = vmatpush1.msra.mxu0 0.0
      %3225 = vmatprep.subr.mxu0 0.0
      %3226 = vmatpush1.msra.mxu0 0.0
      %3227 = vmatprep.subr.mxu0 0.0
      %3228 = vmatpush1.msra.mxu0 0.0
      %3229 = vmatprep.subr.mxu0 0.0
      %3230 = vmatpush1.msra.mxu0 0.0
      %3231 = vmatprep.subr.mxu0 0.0
      %3232 = vmatpush1.msra.mxu0 0.0
      %3233 = vmatprep.subr.mxu0 0.0
      %3234 = vmatpush1.msra.mxu0 0.0
      %3235 = vmatprep.subr.mxu0 0.0
      %3236 = vmatpush1.msra.mxu0 0.0
      %3237 = vmatprep.subr.mxu0 0.0
      %3238 = vmatpush1.msra.mxu0 0.0
      %3239 = vmatprep.subr.mxu0 0.0
      %3240 = vmatpush1.msra.mxu0 0.0
      %3241 = vmatprep.subr.mxu0 0.0
      %3242 = vmatpush1.msra.mxu0 0.0
      %3243 = vmatprep.subr.mxu0 0.0
      %3244 = vmatpush1.msra.mxu0 0.0
      %3245 = vmatprep.subr.mxu0 0.0
      %3246 = vmatpush1.msra.mxu0 0.0
      %3247 = vmatprep.subr.mxu0 0.0
      %3248 = vmatpush1.msra.mxu0 0.0
      %3249 = vmatprep.mubr.f32.mxu0 0.0
      %3250 = vmatmul.mubr.f32.gmra.mrb[0].mxu0 %v2328
      %v3251 = vpop.f32.mrb[0].mxu0
      %v3252 = vadd.f32 %v2298, %v3251
      %v3253 = vpop.f32.mrb[0].mxu0
      %v3254 = vadd.f32 %v2302, %v3253
      %3255 = vmatprep.mubr.f32.mxu0 0.0
      %3256 = vmatmul.mubr.f32.gmra.mrb[0].mxu0 %v2331
      %v3257 = vpop.f32.mrb[0].mxu0
      %v3258 = vadd.f32 %v2298, %v3257
      %v3259 = vpop.f32.mrb[0].mxu0
      %v3260 = vadd.f32 %v2302, %v3259
      %3261 = vmatprep.mubr.f32.mxu0 0.0
      %3262 = vmatmul.mubr.f32.gmra.mrb[0].mxu0 %v2334
      %v3263 = vpop.f32.mrb[0].mxu0
      %v3264 = vadd.f32 %v2298, %v3263
      %v3265 = vpop.f32.mrb[0].mxu0
      %v3266 = vadd.f32 %v2302, %v3265
      %3267 = vmatprep.mubr.f32.mxu0 0.0
      %3268 = vmatmul.mubr.f32.gmra.mrb[0].mxu0 %v2337
      %v3269 = vpop.f32.mrb[0].mxu0
      %v3270 = vadd.f32 %v2298, %v3269
      %v3271 = vpop.f32.mrb[0].mxu0
      %v3272 = vadd.f32 %v2302, %v3271
      %3273 = vmatprep.mubr.f32.mxu0 0.0
      %3274 = vmatmul.mubr.f32.gmra.mrb[0].mxu0 %v2340
      %v3275 = vpop.f32.mrb[0].mxu0
      %v3276 = vadd.f32 %v2298, %v3275
      %v3277 = vpop.f32.mrb[0].mxu0
      %v3278 = vadd.f32 %v2302, %v3277
      %3279 = vmatprep.mubr.f32.mxu0 0.0
      %3280 = vmatmul.mubr.f32.gmra.mrb[0].mxu0 %v2343
      %v3281 = vpop.f32.mrb[0].mxu0
      %v3282 = vadd.f32 %v2298, %v3281
      %v3283 = vpop.f32.mrb[0].mxu0
      %v3284 = vadd.f32 %v2302, %v3283
      %3285 = vmatprep.mubr.f32.mxu0 0.0
      %3286 = vmatmul.mubr.f32.gmra.mrb[0].mxu0 %v2346
      %v3287 = vpop.f32.mrb[0].mxu0
      %v3288 = vadd.f32 %v2298, %v3287
      %v3289 = vpop.f32.mrb[0].mxu0
      %v3290 = vadd.f32 %v2302, %v3289
      %3291 = vmatprep.mubr.f32.mxu0 0.0
      %3292 = vmatmul.mubr.f32.gmra.mrb[0].mxu0 %v2349
      %v3293 = vpop.f32.mrb[0].mxu0
      %v3294 = vadd.f32 %v2298, %v3293
      %v3295 = vpop.f32.mrb[0].mxu0
      %v3296 = vadd.f32 %v2302, %v3295
      %3297 = vmatprep.mubr.f32.mxu0 0.0
      %3298 = vmatmul.mubr.f32.gmra.mrb[0].mxu0 %v2352
      %v3299 = vpop.f32.mrb[0].mxu0
      %v3300 = vadd.f32 %v2298, %v3299
      %v3301 = vpop.f32.mrb[0].mxu0
      %v3302 = vadd.f32 %v2302, %v3301
      %3303 = vmatprep.mubr.f32.mxu0 0.0
      %3304 = vmatmul.mubr.f32.gmra.mrb[0].mxu0 %v2355
      %v3305 = vpop.f32.mrb[0].mxu0
      %v3306 = vadd.f32 %v2298, %v3305
      %v3307 = vpop.f32.mrb[0].mxu0
      %v3308 = vadd.f32 %v2302, %v3307
      %3309 = vmatprep.mubr.f32.mxu0 0.0
      %3310 = vmatmul.mubr.f32.gmra.mrb[0].mxu0 %v2358
      %v3311 = vpop.f32.mrb[0].mxu0
      %v3312 = vadd.f32 %v2298, %v3311
      %v3313 = vpop.f32.mrb[0].mxu0
      %v3314 = vadd.f32 %v2302, %v3313
      %3315 = vmatprep.mubr.f32.mxu0 0.0
      %3316 = vmatmul.mubr.f32.gmra.mrb[0].mxu0 %v2361
      %v3317 = vpop.f32.mrb[0].mxu0
      %v3318 = vadd.f32 %v2298, %v3317
      %v3319 = vpop.f32.mrb[0].mxu0
      %v3320 = vadd.f32 %v2302, %v3319
      %3321 = vdwg.mxu0
      %3322 = vmatprep.subr.mxu0 %v2194
      %3323 = vmatpush1.msra.mxu0 %v2193
      %3324 = vmatprep.subr.mxu0 %v2210
      %3325 = vmatpush1.msra.mxu0 %v2209
      %3326 = vmatprep.subr.mxu0 %v2226
      %3327 = vmatpush1.msra.mxu0 %v2225
      %3328 = vmatprep.subr.mxu0 %v2242
      %3329 = vmatpush1.msra.mxu0 %v2241
      %3330 = vmatprep.subr.mxu0 0.0
      %3331 = vmatpush1.msra.mxu0 0.0
      %3332 = vmatprep.subr.mxu0 0.0
      %3333 = vmatpush1.msra.mxu0 0.0
      %3334 = vmatprep.subr.mxu0 0.0
      %3335 = vmatpush1.msra.mxu0 0.0
      %3336 = vmatprep.subr.mxu0 0.0
      %3337 = vmatpush1.msra.mxu0 0.0
      %3338 = vmatprep.subr.mxu0 0.0
      %3339 = vmatpush1.msra.mxu0 0.0
      %3340 = vmatprep.subr.mxu0 0.0
      %3341 = vmatpush1.msra.mxu0 0.0
      %3342 = vmatprep.subr.mxu0 0.0
      %3343 = vmatpush1.msra.mxu0 0.0
      %3344 = vmatprep.subr.mxu0 0.0
      %3345 = vmatpush1.msra.mxu0 0.0
      %3346 = vmatprep.subr.mxu0 0.0
      %3347 = vmatpush1.msra.mxu0 0.0
      %3348 = vmatprep.subr.mxu0 0.0
      %3349 = vmatpush1.msra.mxu0 0.0
      %3350 = vmatprep.subr.mxu0 0.0
      %3351 = vmatpush1.msra.mxu0 0.0
      %3352 = vmatprep.subr.mxu0 0.0
      %3353 = vmatpush1.msra.mxu0 0.0
      %3354 = vmatprep.subr.mxu0 0.0
      %3355 = vmatpush1.msra.mxu0 0.0
      %3356 = vmatprep.subr.mxu0 0.0
      %3357 = vmatpush1.msra.mxu0 0.0
      %3358 = vmatprep.subr.mxu0 0.0
      %3359 = vmatpush1.msra.mxu0 0.0
      %3360 = vmatprep.subr.mxu0 0.0
      %3361 = vmatpush1.msra.mxu0 0.0
      %3362 = vmatprep.subr.mxu0 0.0
      %3363 = vmatpush1.msra.mxu0 0.0
      %3364 = vmatprep.subr.mxu0 0.0
      %3365 = vmatpush1.msra.mxu0 0.0
      %3366 = vmatprep.subr.mxu0 0.0
      %3367 = vmatpush1.msra.mxu0 0.0
      %3368 = vmatprep.subr.mxu0 0.0
      %3369 = vmatpush1.msra.mxu0 0.0
      %3370 = vmatprep.subr.mxu0 0.0
      %3371 = vmatpush1.msra.mxu0 0.0
      %3372 = vmatprep.subr.mxu0 0.0
      %3373 = vmatpush1.msra.mxu0 0.0
      %3374 = vmatprep.subr.mxu0 0.0
      %3375 = vmatpush1.msra.mxu0 0.0
      %3376 = vmatprep.subr.mxu0 0.0
      %3377 = vmatpush1.msra.mxu0 0.0
      %3378 = vmatprep.subr.mxu0 0.0
      %3379 = vmatpush1.msra.mxu0 0.0
      %3380 = vmatprep.subr.mxu0 0.0
      %3381 = vmatpush1.msra.mxu0 0.0
      %3382 = vmatprep.subr.mxu0 0.0
      %3383 = vmatpush1.msra.mxu0 0.0
      %3384 = vmatprep.subr.mxu0 0.0
      %3385 = vmatpush1.msra.mxu0 0.0
      %3386 = vmatprep.mubr.f32.mxu0 0.0
      %3387 = vmatmul.mubr.f32.gmra.mrb[0].mxu0 %v2328
      %v3388 = vpop.f32.mrb[0].mxu0
      %v3389 = vadd.f32 %v2306, %v3388
      %v3390 = vpop.f32.mrb[0].mxu0
      %v3391 = vadd.f32 %v2310, %v3390
      %3392 = vmatprep.mubr.f32.mxu0 0.0
      %3393 = vmatmul.mubr.f32.gmra.mrb[0].mxu0 %v2331
      %v3394 = vpop.f32.mrb[0].mxu0
      %v3395 = vadd.f32 %v2306, %v3394
      %v3396 = vpop.f32.mrb[0].mxu0
      %v3397 = vadd.f32 %v2310, %v3396
      %3398 = vmatprep.mubr.f32.mxu0 0.0
      %3399 = vmatmul.mubr.f32.gmra.mrb[0].mxu0 %v2334
      %v3400 = vpop.f32.mrb[0].mxu0
      %v3401 = vadd.f32 %v2306, %v3400
      %v3402 = vpop.f32.mrb[0].mxu0
      %v3403 = vadd.f32 %v2310, %v3402
      %3404 = vmatprep.mubr.f32.mxu0 0.0
      %3405 = vmatmul.mubr.f32.gmra.mrb[0].mxu0 %v2337
      %v3406 = vpop.f32.mrb[0].mxu0
      %v3407 = vadd.f32 %v2306, %v3406
      %v3408 = vpop.f32.mrb[0].mxu0
      %v3409 = vadd.f32 %v2310, %v3408
      %3410 = vmatprep.mubr.f32.mxu0 0.0
      %3411 = vmatmul.mubr.f32.gmra.mrb[0].mxu0 %v2340
      %v3412 = vpop.f32.mrb[0].mxu0
      %v3413 = vadd.f32 %v2306, %v3412
      %v3414 = vpop.f32.mrb[0].mxu0
      %v3415 = vadd.f32 %v2310, %v3414
      %3416 = vmatprep.mubr.f32.mxu0 0.0
      %3417 = vmatmul.mubr.f32.gmra.mrb[0].mxu0 %v2343
      %v3418 = vpop.f32.mrb[0].mxu0
      %v3419 = vadd.f32 %v2306, %v3418
      %v3420 = vpop.f32.mrb[0].mxu0
      %v3421 = vadd.f32 %v2310, %v3420
      %3422 = vmatprep.mubr.f32.mxu0 0.0
      %3423 = vmatmul.mubr.f32.gmra.mrb[0].mxu0 %v2346
      %v3424 = vpop.f32.mrb[0].mxu0
      %v3425 = vadd.f32 %v2306, %v3424
      %v3426 = vpop.f32.mrb[0].mxu0
      %v3427 = vadd.f32 %v2310, %v3426
      %3428 = vmatprep.mubr.f32.mxu0 0.0
      %3429 = vmatmul.mubr.f32.gmra.mrb[0].mxu0 %v2349
      %v3430 = vpop.f32.mrb[0].mxu0
      %v3431 = vadd.f32 %v2306, %v3430
      %v3432 = vpop.f32.mrb[0].mxu0
      %v3433 = vadd.f32 %v2310, %v3432
      %3434 = vmatprep.mubr.f32.mxu0 0.0
      %3435 = vmatmul.mubr.f32.gmra.mrb[0].mxu0 %v2352
      %v3436 = vpop.f32.mrb[0].mxu0
      %v3437 = vadd.f32 %v2306, %v3436
      %v3438 = vpop.f32.mrb[0].mxu0
      %v3439 = vadd.f32 %v2310, %v3438
      %3440 = vmatprep.mubr.f32.mxu0 0.0
      %3441 = vmatmul.mubr.f32.gmra.mrb[0].mxu0 %v2355
      %v3442 = vpop.f32.mrb[0].mxu0
      %v3443 = vadd.f32 %v2306, %v3442
      %v3444 = vpop.f32.mrb[0].mxu0
      %v3445 = vadd.f32 %v2310, %v3444
      %3446 = vmatprep.mubr.f32.mxu0 0.0
      %3447 = vmatmul.mubr.f32.gmra.mrb[0].mxu0 %v2358
      %v3448 = vpop.f32.mrb[0].mxu0
      %v3449 = vadd.f32 %v2306, %v3448
      %v3450 = vpop.f32.mrb[0].mxu0
      %v3451 = vadd.f32 %v2310, %v3450
      %3452 = vmatprep.mubr.f32.mxu0 0.0
      %3453 = vmatmul.mubr.f32.gmra.mrb[0].mxu0 %v2361
      %v3454 = vpop.f32.mrb[0].mxu0
      %v3455 = vadd.f32 %v2306, %v3454
      %v3456 = vpop.f32.mrb[0].mxu0
      %v3457 = vadd.f32 %v2310, %v3456
      %3458 = vdwg.mxu0
      %v3459 = vmax.f32 %v2430, 0.0
      %v3460 = vmax.f32 %v2432, 0.0
      %v3461 = vmax.f32 %v2567, 0.0
      %v3462 = vmax.f32 %v2569, 0.0
      %v3463 = vmax.f32 %v2704, 0.0
      %v3464 = vmax.f32 %v2706, 0.0
      %v3465 = vmax.f32 %v2841, 0.0
      %v3466 = vmax.f32 %v2843, 0.0
      %v3467 = vmax.f32 %v2978, 0.0
      %v3468 = vmax.f32 %v2980, 0.0
      %v3469 = vmax.f32 %v3115, 0.0
      %v3470 = vmax.f32 %v3117, 0.0
      %v3471 = vmax.f32 %v3252, 0.0
      %v3472 = vmax.f32 %v3254, 0.0
      %v3473 = vmax.f32 %v3389, 0.0
      %v3474 = vmax.f32 %v3391, 0.0
      %v3475 = vmax.f32 %v2436, 0.0
      %v3476 = vmax.f32 %v2438, 0.0
      %v3477 = vmax.f32 %v2573, 0.0
      %v3478 = vmax.f32 %v2575, 0.0
      %v3479 = vmax.f32 %v2710, 0.0
      %v3480 = vmax.f32 %v2712, 0.0
      %v3481 = vmax.f32 %v2847, 0.0
      %v3482 = vmax.f32 %v2849, 0.0
      %v3483 = vmax.f32 %v2984, 0.0
      %v3484 = vmax.f32 %v2986, 0.0
      %v3485 = vmax.f32 %v3121, 0.0
      %v3486 = vmax.f32 %v3123, 0.0
      %v3487 = vmax.f32 %v3258, 0.0
      %v3488 = vmax.f32 %v3260, 0.0
      %v3489 = vmax.f32 %v3395, 0.0
      %v3490 = vmax.f32 %v3397, 0.0
      %v3491 = vmax.f32 %v2442, 0.0
      %v3492 = vmax.f32 %v2444, 0.0
      %v3493 = vmax.f32 %v2579, 0.0
      %v3494 = vmax.f32 %v2581, 0.0
      %v3495 = vmax.f32 %v2716, 0.0
      %v3496 = vmax.f32 %v2718, 0.0
      %v3497 = vmax.f32 %v2853, 0.0
      %v3498 = vmax.f32 %v2855, 0.0
      %v3499 = vmax.f32 %v2990, 0.0
      %v3500 = vmax.f32 %v2992, 0.0
      %v3501 = vmax.f32 %v3127, 0.0
      %v3502 = vmax.f32 %v3129, 0.0
      %v3503 = vmax.f32 %v3264, 0.0
      %v3504 = vmax.f32 %v3266, 0.0
      %v3505 = vmax.f32 %v3401, 0.0
      %v3506 = vmax.f32 %v3403, 0.0
      %v3507 = vmax.f32 %v2448, 0.0
      %v3508 = vmax.f32 %v2450, 0.0
      %v3509 = vmax.f32 %v2585, 0.0
      %v3510 = vmax.f32 %v2587, 0.0
      %v3511 = vmax.f32 %v2722, 0.0
      %v3512 = vmax.f32 %v2724, 0.0
      %v3513 = vmax.f32 %v2859, 0.0
      %v3514 = vmax.f32 %v2861, 0.0
      %v3515 = vmax.f32 %v2996, 0.0
      %v3516 = vmax.f32 %v2998, 0.0
      %v3517 = vmax.f32 %v3133, 0.0
      %v3518 = vmax.f32 %v3135, 0.0
      %v3519 = vmax.f32 %v3270, 0.0
      %v3520 = vmax.f32 %v3272, 0.0
      %v3521 = vmax.f32 %v3407, 0.0
      %v3522 = vmax.f32 %v3409, 0.0
      %v3523 = vmax.f32 %v2454, 0.0
      %v3524 = vmax.f32 %v2456, 0.0
      %v3525 = vmax.f32 %v2591, 0.0
      %v3526 = vmax.f32 %v2593, 0.0
      %v3527 = vmax.f32 %v2728, 0.0
      %v3528 = vmax.f32 %v2730, 0.0
      %v3529 = vmax.f32 %v2865, 0.0
      %v3530 = vmax.f32 %v2867, 0.0
      %v3531 = vmax.f32 %v3002, 0.0
      %v3532 = vmax.f32 %v3004, 0.0
      %v3533 = vmax.f32 %v3139, 0.0
      %v3534 = vmax.f32 %v3141, 0.0
      %v3535 = vmax.f32 %v3276, 0.0
      %v3536 = vmax.f32 %v3278, 0.0
      %v3537 = vmax.f32 %v3413, 0.0
      %v3538 = vmax.f32 %v3415, 0.0
      %v3539 = vmax.f32 %v2460, 0.0
      %v3540 = vmax.f32 %v2462, 0.0
      %v3541 = vmax.f32 %v2597, 0.0
      %v3542 = vmax.f32 %v2599, 0.0
      %v3543 = vmax.f32 %v2734, 0.0
      %v3544 = vmax.f32 %v2736, 0.0
      %v3545 = vmax.f32 %v2871, 0.0
      %v3546 = vmax.f32 %v2873, 0.0
      %v3547 = vmax.f32 %v3008, 0.0
      %v3548 = vmax.f32 %v3010, 0.0
      %v3549 = vmax.f32 %v3145, 0.0
      %v3550 = vmax.f32 %v3147, 0.0
      %v3551 = vmax.f32 %v3282, 0.0
      %v3552 = vmax.f32 %v3284, 0.0
      %v3553 = vmax.f32 %v3419, 0.0
      %v3554 = vmax.f32 %v3421, 0.0
      %v3555 = vmax.f32 %v2466, 0.0
      %v3556 = vmax.f32 %v2468, 0.0
      %v3557 = vmax.f32 %v2603, 0.0
      %v3558 = vmax.f32 %v2605, 0.0
      %v3559 = vmax.f32 %v2740, 0.0
      %v3560 = vmax.f32 %v2742, 0.0
      %v3561 = vmax.f32 %v2877, 0.0
      %v3562 = vmax.f32 %v2879, 0.0
      %v3563 = vmax.f32 %v3014, 0.0
      %v3564 = vmax.f32 %v3016, 0.0
      %v3565 = vmax.f32 %v3151, 0.0
      %v3566 = vmax.f32 %v3153, 0.0
      %v3567 = vmax.f32 %v3288, 0.0
      %v3568 = vmax.f32 %v3290, 0.0
      %v3569 = vmax.f32 %v3425, 0.0
      %v3570 = vmax.f32 %v3427, 0.0
      %v3571 = vmax.f32 %v2472, 0.0
      %v3572 = vmax.f32 %v2474, 0.0
      %v3573 = vmax.f32 %v2609, 0.0
      %v3574 = vmax.f32 %v2611, 0.0
      %v3575 = vmax.f32 %v2746, 0.0
      %v3576 = vmax.f32 %v2748, 0.0
      %v3577 = vmax.f32 %v2883, 0.0
      %v3578 = vmax.f32 %v2885, 0.0
      %v3579 = vmax.f32 %v3020, 0.0
      %v3580 = vmax.f32 %v3022, 0.0
      %v3581 = vmax.f32 %v3157, 0.0
      %v3582 = vmax.f32 %v3159, 0.0
      %v3583 = vmax.f32 %v3294, 0.0
      %v3584 = vmax.f32 %v3296, 0.0
      %v3585 = vmax.f32 %v3431, 0.0
      %v3586 = vmax.f32 %v3433, 0.0
      %v3587 = vmax.f32 %v2478, 0.0
      %v3588 = vmax.f32 %v2480, 0.0
      %v3589 = vmax.f32 %v2615, 0.0
      %v3590 = vmax.f32 %v2617, 0.0
      %v3591 = vmax.f32 %v2752, 0.0
      %v3592 = vmax.f32 %v2754, 0.0
      %v3593 = vmax.f32 %v2889, 0.0
      %v3594 = vmax.f32 %v2891, 0.0
      %v3595 = vmax.f32 %v3026, 0.0
      %v3596 = vmax.f32 %v3028, 0.0
      %v3597 = vmax.f32 %v3163, 0.0
      %v3598 = vmax.f32 %v3165, 0.0
      %v3599 = vmax.f32 %v3300, 0.0
      %v3600 = vmax.f32 %v3302, 0.0
      %v3601 = vmax.f32 %v3437, 0.0
      %v3602 = vmax.f32 %v3439, 0.0
      %v3603 = vmax.f32 %v2484, 0.0
      %v3604 = vmax.f32 %v2486, 0.0
      %v3605 = vmax.f32 %v2621, 0.0
      %v3606 = vmax.f32 %v2623, 0.0
      %v3607 = vmax.f32 %v2758, 0.0
      %v3608 = vmax.f32 %v2760, 0.0
      %v3609 = vmax.f32 %v2895, 0.0
      %v3610 = vmax.f32 %v2897, 0.0
      %v3611 = vmax.f32 %v3032, 0.0
      %v3612 = vmax.f32 %v3034, 0.0
      %v3613 = vmax.f32 %v3169, 0.0
      %v3614 = vmax.f32 %v3171, 0.0
      %v3615 = vmax.f32 %v3306, 0.0
      %v3616 = vmax.f32 %v3308, 0.0
      %v3617 = vmax.f32 %v3443, 0.0
      %v3618 = vmax.f32 %v3445, 0.0
      %v3619 = vmax.f32 %v2490, 0.0
      %v3620 = vmax.f32 %v2492, 0.0
      %v3621 = vmax.f32 %v2627, 0.0
      %v3622 = vmax.f32 %v2629, 0.0
      %v3623 = vmax.f32 %v2764, 0.0
      %v3624 = vmax.f32 %v2766, 0.0
      %v3625 = vmax.f32 %v2901, 0.0
      %v3626 = vmax.f32 %v2903, 0.0
      %v3627 = vmax.f32 %v3038, 0.0
      %v3628 = vmax.f32 %v3040, 0.0
      %v3629 = vmax.f32 %v3175, 0.0
      %v3630 = vmax.f32 %v3177, 0.0
      %v3631 = vmax.f32 %v3312, 0.0
      %v3632 = vmax.f32 %v3314, 0.0
      %v3633 = vmax.f32 %v3449, 0.0
      %v3634 = vmax.f32 %v3451, 0.0
      %v3635 = vmax.f32 %v2496, 0.0
      %v3636 = vmax.f32 %v2498, 0.0
      %v3637 = vmax.f32 %v2633, 0.0
      %v3638 = vmax.f32 %v2635, 0.0
      %v3639 = vmax.f32 %v2770, 0.0
      %v3640 = vmax.f32 %v2772, 0.0
      %v3641 = vmax.f32 %v2907, 0.0
      %v3642 = vmax.f32 %v2909, 0.0
      %v3643 = vmax.f32 %v3044, 0.0
      %v3644 = vmax.f32 %v3046, 0.0
      %v3645 = vmax.f32 %v3181, 0.0
      %v3646 = vmax.f32 %v3183, 0.0
      %v3647 = vmax.f32 %v3318, 0.0
      %v3648 = vmax.f32 %v3320, 0.0
      %v3649 = vmax.f32 %v3455, 0.0
      %v3650 = vmax.f32 %v3457, 0.0
      %v3651 = vld [vmem:[%s9] sm:$0xff]
      %v3652 = vld [vmem:[%s9 + $0x8] sm:$0xff]
      %v3653 = vld [vmem:[%s9 + $0x10] sm:$0xff]
      %v3654 = vld [vmem:[%s9 + $0x18] sm:$0xff]
      %v3655 = vld [vmem:[%s9 + $0x20] sm:$0xff]
      %v3656 = vld [vmem:[%s9 + $0x28] sm:$0xff]
      %v3657 = vld [vmem:[%s9 + $0x30] sm:$0xff]
      %v3658 = vld [vmem:[%s9 + $0x38] sm:$0xff]
      %v3659 = vld [vmem:[%s9 + $0x40] sm:$0xff]
      %v3660 = vld [vmem:[%s9 + $0x48] sm:$0xff]
      %v3661 = vld [vmem:[%s9 + $0x50] sm:$0xff]
      %v3662 = vld [vmem:[%s9 + $0x58] sm:$0xff]
      %v3663 = vld [vmem:[%s9 + $0x60] sm:$0xff]
      %v3664 = vld [vmem:[%s9 + $0x68] sm:$0xff]
      %v3665 = vld [vmem:[%s9 + $0x70] sm:$0xff]
      %v3666 = vld [vmem:[%s9 + $0x78] sm:$0xff]
      %v3667 = vld [vmem:[%s9 + $0x80] sm:$0xff]
      %v3668 = vld [vmem:[%s9 + $0x88] sm:$0xff]
      %v3669 = vld [vmem:[%s9 + $0x90] sm:$0xff]
      %v3670 = vld [vmem:[%s9 + $0x98] sm:$0xff]
      %v3671 = vld [vmem:[%s9 + $0xa0] sm:$0xff]
      %v3672 = vld [vmem:[%s9 + $0xa8] sm:$0xff]
      %v3673 = vld [vmem:[%s9 + $0xb0] sm:$0xff]
      %v3674 = vld [vmem:[%s9 + $0xb8] sm:$0xff]
      %v3675 = vld [vmem:[%s9 + $0xc0] sm:$0xff]
      %v3676 = vld [vmem:[%s9 + $0xc8] sm:$0xff]
      %v3677 = vld [vmem:[%s9 + $0xd0] sm:$0xff]
      %v3678 = vld [vmem:[%s9 + $0xd8] sm:$0xff]
      %v3679 = vld [vmem:[%s9 + $0xe0] sm:$0xff]
      %v3680 = vld [vmem:[%s9 + $0xe8] sm:$0xff]
      %v3681 = vld [vmem:[%s9 + $0xf0] sm:$0xff]
      %v3682 = vld [vmem:[%s9 + $0xf8] sm:$0xff]
      %v3683 = vld [vmem:[%s9 + $0x100] sm:$0xff]
      %v3684 = vld [vmem:[%s9 + $0x108] sm:$0xff]
      %v3685 = vld [vmem:[%s9 + $0x110] sm:$0xff]
      %v3686 = vld [vmem:[%s9 + $0x118] sm:$0xff]
      %v3687 = vld [vmem:[%s9 + $0x120] sm:$0xff]
      %v3688 = vld [vmem:[%s9 + $0x128] sm:$0xff]
      %v3689 = vld [vmem:[%s9 + $0x130] sm:$0xff]
      %v3690 = vld [vmem:[%s9 + $0x138] sm:$0xff]
      %v3691 = vld [vmem:[%s9 + $0x140] sm:$0xff]
      %v3692 = vld [vmem:[%s9 + $0x148] sm:$0xff]
      %v3693 = vld [vmem:[%s9 + $0x150] sm:$0xff]
      %v3694 = vld [vmem:[%s9 + $0x158] sm:$0xff]
      %v3695 = vld [vmem:[%s9 + $0x160] sm:$0xff]
      %v3696 = vld [vmem:[%s9 + $0x168] sm:$0xff]
      %v3697 = vld [vmem:[%s9 + $0x170] sm:$0xff]
      %v3698 = vld [vmem:[%s9 + $0x178] sm:$0xff]
      %v3699 = vld [vmem:[%s9 + $0x180] sm:$0xff]
      %v3700 = vld [vmem:[%s9 + $0x188] sm:$0xff]
      %v3701 = vld [vmem:[%s9 + $0x190] sm:$0xff]
      %v3702 = vld [vmem:[%s9 + $0x198] sm:$0xff]
      %v3703 = vld [vmem:[%s9 + $0x1a0] sm:$0xff]
      %v3704 = vld [vmem:[%s9 + $0x1a8] sm:$0xff]
      %v3705 = vld [vmem:[%s9 + $0x1b0] sm:$0xff]
      %v3706 = vld [vmem:[%s9 + $0x1b8] sm:$0xff]
      %v3707 = vld [vmem:[%s9 + $0x1c0] sm:$0xff]
      %v3708 = vld [vmem:[%s9 + $0x1c8] sm:$0xff]
      %v3709 = vld [vmem:[%s9 + $0x1d0] sm:$0xff]
      %v3710 = vld [vmem:[%s9 + $0x1d8] sm:$0xff]
      %v3711 = vld [vmem:[%s9 + $0x1e0] sm:$0xff]
      %v3712 = vld [vmem:[%s9 + $0x1e8] sm:$0xff]
      %v3713 = vld [vmem:[%s9 + $0x1f0] sm:$0xff]
      %v3714 = vld [vmem:[%s9 + $0x1f8] sm:$0xff]
      %v3715 = vld [vmem:[%s9 + $0x200] sm:$0xff]
      %v3716 = vld [vmem:[%s9 + $0x208] sm:$0xff]
      %v3717 = vld [vmem:[%s9 + $0x210] sm:$0xff]
      %v3718 = vld [vmem:[%s9 + $0x218] sm:$0xff]
      %v3719 = vld [vmem:[%s9 + $0x220] sm:$0xff]
      %v3720 = vld [vmem:[%s9 + $0x228] sm:$0xff]
      %v3721 = vld [vmem:[%s9 + $0x230] sm:$0xff]
      %v3722 = vld [vmem:[%s9 + $0x238] sm:$0xff]
      %v3723 = vld [vmem:[%s9 + $0x240] sm:$0xff]
      %v3724 = vld [vmem:[%s9 + $0x248] sm:$0xff]
      %v3725 = vld [vmem:[%s9 + $0x250] sm:$0xff]
      %v3726 = vld [vmem:[%s9 + $0x258] sm:$0xff]
      %v3727 = vld [vmem:[%s9 + $0x260] sm:$0xff]
      %v3728 = vld [vmem:[%s9 + $0x268] sm:$0xff]
      %v3729 = vld [vmem:[%s9 + $0x270] sm:$0xff]
      %v3730 = vld [vmem:[%s9 + $0x278] sm:$0xff]
      %v3731 = vld [vmem:[%s9 + $0x280] sm:$0xff]
      %v3732 = vld [vmem:[%s9 + $0x288] sm:$0xff]
      %v3733 = vld [vmem:[%s9 + $0x290] sm:$0xff]
      %v3734 = vld [vmem:[%s9 + $0x298] sm:$0xff]
      %v3735 = vld [vmem:[%s9 + $0x2a0] sm:$0xff]
      %v3736 = vld [vmem:[%s9 + $0x2a8] sm:$0xff]
      %v3737 = vld [vmem:[%s9 + $0x2b0] sm:$0xff]
      %v3738 = vld [vmem:[%s9 + $0x2b8] sm:$0xff]
      %v3739 = vld [vmem:[%s9 + $0x2c0] sm:$0xff]
      %v3740 = vld [vmem:[%s9 + $0x2c8] sm:$0xff]
      %v3741 = vld [vmem:[%s9 + $0x2d0] sm:$0xff]
      %v3742 = vld [vmem:[%s9 + $0x2d8] sm:$0xff]
      %v3743 = vld [vmem:[%s9 + $0x2e0] sm:$0xff]
      %v3744 = vld [vmem:[%s9 + $0x2e8] sm:$0xff]
      %v3745 = vld [vmem:[%s9 + $0x2f0] sm:$0xff]
      %v3746 = vld [vmem:[%s9 + $0x2f8] sm:$0xff]
      %v3747 = vld [vmem:[%s9 + $0x300] sm:$0xff]
      %v3748 = vld [vmem:[%s9 + $0x308] sm:$0xff]
      %v3749 = vld [vmem:[%s9 + $0x310] sm:$0xff]
      %v3750 = vld [vmem:[%s9 + $0x318] sm:$0xff]
      %v3751 = vld [vmem:[%s9 + $0x320] sm:$0xff]
      %v3752 = vld [vmem:[%s9 + $0x328] sm:$0xff]
      %v3753 = vld [vmem:[%s9 + $0x330] sm:$0xff]
      %v3754 = vld [vmem:[%s9 + $0x338] sm:$0xff]
      %v3755 = vld [vmem:[%s9 + $0x340] sm:$0xff]
      %v3756 = vld [vmem:[%s9 + $0x348] sm:$0xff]
      %v3757 = vld [vmem:[%s9 + $0x350] sm:$0xff]
      %v3758 = vld [vmem:[%s9 + $0x358] sm:$0xff]
      %v3759 = vld [vmem:[%s9 + $0x360] sm:$0xff]
      %v3760 = vld [vmem:[%s9 + $0x368] sm:$0xff]
      %v3761 = vld [vmem:[%s9 + $0x370] sm:$0xff]
      %v3762 = vld [vmem:[%s9 + $0x378] sm:$0xff]
      %v3763 = vld [vmem:[%s9 + $0x380] sm:$0xff]
      %v3764 = vld [vmem:[%s9 + $0x388] sm:$0xff]
      %v3765 = vld [vmem:[%s9 + $0x390] sm:$0xff]
      %v3766 = vld [vmem:[%s9 + $0x398] sm:$0xff]
      %v3767 = vld [vmem:[%s9 + $0x3a0] sm:$0xff]
      %v3768 = vld [vmem:[%s9 + $0x3a8] sm:$0xff]
      %v3769 = vld [vmem:[%s9 + $0x3b0] sm:$0xff]
      %v3770 = vld [vmem:[%s9 + $0x3b8] sm:$0xff]
      %v3771 = vld [vmem:[%s9 + $0x3c0] sm:$0xff]
      %v3772 = vld [vmem:[%s9 + $0x3c8] sm:$0xff]
      %v3773 = vld [vmem:[%s9 + $0x3d0] sm:$0xff]
      %v3774 = vld [vmem:[%s9 + $0x3d8] sm:$0xff]
      %v3775 = vld [vmem:[%s9 + $0x3e0] sm:$0xff]
      %v3776 = vld [vmem:[%s9 + $0x3e8] sm:$0xff]
      %v3777 = vld [vmem:[%s9 + $0x3f0] sm:$0xff]
      %v3778 = vld [vmem:[%s9 + $0x3f8] sm:$0xff]
      %v3779 = vld [vmem:[%s9 + $0x400] sm:$0xff]
      %v3780 = vld [vmem:[%s9 + $0x408] sm:$0xff]
      %v3781 = vld [vmem:[%s9 + $0x410] sm:$0xff]
      %v3782 = vld [vmem:[%s9 + $0x418] sm:$0xff]
      %v3783 = vld [vmem:[%s9 + $0x420] sm:$0xff]
      %v3784 = vld [vmem:[%s9 + $0x428] sm:$0xff]
      %v3785 = vld [vmem:[%s9 + $0x430] sm:$0xff]
      %v3786 = vld [vmem:[%s9 + $0x438] sm:$0xff]
      %v3787 = vld [vmem:[%s9 + $0x440] sm:$0xff]
      %v3788 = vld [vmem:[%s9 + $0x448] sm:$0xff]
      %v3789 = vld [vmem:[%s9 + $0x450] sm:$0xff]
      %v3790 = vld [vmem:[%s9 + $0x458] sm:$0xff]
      %v3791 = vld [vmem:[%s9 + $0x460] sm:$0xff]
      %v3792 = vld [vmem:[%s9 + $0x468] sm:$0xff]
      %v3793 = vld [vmem:[%s9 + $0x470] sm:$0xff]
      %v3794 = vld [vmem:[%s9 + $0x478] sm:$0xff]
      %v3795 = vld [vmem:[%s9 + $0x480] sm:$0xff]
      %v3796 = vld [vmem:[%s9 + $0x488] sm:$0xff]
      %v3797 = vld [vmem:[%s9 + $0x490] sm:$0xff]
      %v3798 = vld [vmem:[%s9 + $0x498] sm:$0xff]
      %v3799 = vld [vmem:[%s9 + $0x4a0] sm:$0xff]
      %v3800 = vld [vmem:[%s9 + $0x4a8] sm:$0xff]
      %v3801 = vld [vmem:[%s9 + $0x4b0] sm:$0xff]
      %v3802 = vld [vmem:[%s9 + $0x4b8] sm:$0xff]
      %v3803 = vld [vmem:[%s9 + $0x4c0] sm:$0xff]
      %v3804 = vld [vmem:[%s9 + $0x4c8] sm:$0xff]
      %v3805 = vld [vmem:[%s9 + $0x4d0] sm:$0xff]
      %v3806 = vld [vmem:[%s9 + $0x4d8] sm:$0xff]
      %v3807 = vld [vmem:[%s9 + $0x4e0] sm:$0xff]
      %v3808 = vld [vmem:[%s9 + $0x4e8] sm:$0xff]
      %v3809 = vld [vmem:[%s9 + $0x4f0] sm:$0xff]
      %v3810 = vld [vmem:[%s9 + $0x4f8] sm:$0xff]
      %v3811 = vld [vmem:[%s9 + $0x500] sm:$0xff]
      %v3812 = vld [vmem:[%s9 + $0x508] sm:$0xff]
      %v3813 = vld [vmem:[%s9 + $0x510] sm:$0xff]
      %v3814 = vld [vmem:[%s9 + $0x518] sm:$0xff]
      %v3815 = vld [vmem:[%s9 + $0x520] sm:$0xff]
      %v3816 = vld [vmem:[%s9 + $0x528] sm:$0xff]
      %v3817 = vld [vmem:[%s9 + $0x530] sm:$0xff]
      %v3818 = vld [vmem:[%s9 + $0x538] sm:$0xff]
      %v3819 = vld [vmem:[%s9 + $0x540] sm:$0xff]
      %v3820 = vld [vmem:[%s9 + $0x548] sm:$0xff]
      %v3821 = vld [vmem:[%s9 + $0x550] sm:$0xff]
      %v3822 = vld [vmem:[%s9 + $0x558] sm:$0xff]
      %v3823 = vld [vmem:[%s9 + $0x560] sm:$0xff]
      %v3824 = vld [vmem:[%s9 + $0x568] sm:$0xff]
      %v3825 = vld [vmem:[%s9 + $0x570] sm:$0xff]
      %v3826 = vld [vmem:[%s9 + $0x578] sm:$0xff]
      %v3827 = vld [vmem:[%s9 + $0x580] sm:$0xff]
      %v3828 = vld [vmem:[%s9 + $0x588] sm:$0xff]
      %v3829 = vld [vmem:[%s9 + $0x590] sm:$0xff]
      %v3830 = vld [vmem:[%s9 + $0x598] sm:$0xff]
      %v3831 = vld [vmem:[%s9 + $0x5a0] sm:$0xff]
      %v3832 = vld [vmem:[%s9 + $0x5a8] sm:$0xff]
      %v3833 = vld [vmem:[%s9 + $0x5b0] sm:$0xff]
      %v3834 = vld [vmem:[%s9 + $0x5b8] sm:$0xff]
      %v3835 = vld [vmem:[%s9 + $0x5c0] sm:$0xff]
      %v3836 = vld [vmem:[%s9 + $0x5c8] sm:$0xff]
      %v3837 = vld [vmem:[%s9 + $0x5d0] sm:$0xff]
      %v3838 = vld [vmem:[%s9 + $0x5d8] sm:$0xff]
      %v3839 = vld [vmem:[%s9 + $0x5e0] sm:$0xff]
      %v3840 = vld [vmem:[%s9 + $0x5e8] sm:$0xff]
      %v3841 = vld [vmem:[%s9 + $0x5f0] sm:$0xff]
      %v3842 = vld [vmem:[%s9 + $0x5f8] sm:$0xff]
      %v3843 = vld [vmem:[%s9 + $0x600] sm:$0xff]
      %v3844 = vld [vmem:[%s9 + $0x608] sm:$0xff]
      %v3845 = vld [vmem:[%s9 + $0x610] sm:$0xff]
      %v3846 = vld [vmem:[%s9 + $0x618] sm:$0xff]
      %v3847 = vld [vmem:[%s9 + $0x620] sm:$0xff]
      %v3848 = vld [vmem:[%s9 + $0x628] sm:$0xff]
      %v3849 = vld [vmem:[%s9 + $0x630] sm:$0xff]
      %v3850 = vld [vmem:[%s9 + $0x638] sm:$0xff]
      %v3851 = vld [vmem:[%s9 + $0x640] sm:$0xff]
      %v3852 = vld [vmem:[%s9 + $0x648] sm:$0xff]
      %v3853 = vld [vmem:[%s9 + $0x650] sm:$0xff]
      %v3854 = vld [vmem:[%s9 + $0x658] sm:$0xff]
      %v3855 = vld [vmem:[%s9 + $0x660] sm:$0xff]
      %v3856 = vld [vmem:[%s9 + $0x668] sm:$0xff]
      %v3857 = vld [vmem:[%s9 + $0x670] sm:$0xff]
      %v3858 = vld [vmem:[%s9 + $0x678] sm:$0xff]
      %v3859 = vld [vmem:[%s9 + $0x680] sm:$0xff]
      %v3860 = vld [vmem:[%s9 + $0x688] sm:$0xff]
      %v3861 = vld [vmem:[%s9 + $0x690] sm:$0xff]
      %v3862 = vld [vmem:[%s9 + $0x698] sm:$0xff]
      %v3863 = vld [vmem:[%s9 + $0x6a0] sm:$0xff]
      %v3864 = vld [vmem:[%s9 + $0x6a8] sm:$0xff]
      %v3865 = vld [vmem:[%s9 + $0x6b0] sm:$0xff]
      %v3866 = vld [vmem:[%s9 + $0x6b8] sm:$0xff]
      %v3867 = vld [vmem:[%s9 + $0x6c0] sm:$0xff]
      %v3868 = vld [vmem:[%s9 + $0x6c8] sm:$0xff]
      %v3869 = vld [vmem:[%s9 + $0x6d0] sm:$0xff]
      %v3870 = vld [vmem:[%s9 + $0x6d8] sm:$0xff]
      %v3871 = vld [vmem:[%s9 + $0x6e0] sm:$0xff]
      %v3872 = vld [vmem:[%s9 + $0x6e8] sm:$0xff]
      %v3873 = vld [vmem:[%s9 + $0x6f0] sm:$0xff]
      %v3874 = vld [vmem:[%s9 + $0x6f8] sm:$0xff]
      %v3875 = vld [vmem:[%s9 + $0x700] sm:$0xff]
      %v3876 = vld [vmem:[%s9 + $0x708] sm:$0xff]
      %v3877 = vld [vmem:[%s9 + $0x710] sm:$0xff]
      %v3878 = vld [vmem:[%s9 + $0x718] sm:$0xff]
      %v3879 = vld [vmem:[%s9 + $0x720] sm:$0xff]
      %v3880 = vld [vmem:[%s9 + $0x728] sm:$0xff]
      %v3881 = vld [vmem:[%s9 + $0x730] sm:$0xff]
      %v3882 = vld [vmem:[%s9 + $0x738] sm:$0xff]
      %v3883 = vld [vmem:[%s9 + $0x740] sm:$0xff]
      %v3884 = vld [vmem:[%s9 + $0x748] sm:$0xff]
      %v3885 = vld [vmem:[%s9 + $0x750] sm:$0xff]
      %v3886 = vld [vmem:[%s9 + $0x758] sm:$0xff]
      %v3887 = vld [vmem:[%s9 + $0x760] sm:$0xff]
      %v3888 = vld [vmem:[%s9 + $0x768] sm:$0xff]
      %v3889 = vld [vmem:[%s9 + $0x770] sm:$0xff]
      %v3890 = vld [vmem:[%s9 + $0x778] sm:$0xff]
      %v3891 = vld [vmem:[%s9 + $0x780] sm:$0xff]
      %v3892 = vld [vmem:[%s9 + $0x788] sm:$0xff]
      %v3893 = vld [vmem:[%s9 + $0x790] sm:$0xff]
      %v3894 = vld [vmem:[%s9 + $0x798] sm:$0xff]
      %v3895 = vld [vmem:[%s9 + $0x7a0] sm:$0xff]
      %v3896 = vld [vmem:[%s9 + $0x7a8] sm:$0xff]
      %v3897 = vld [vmem:[%s9 + $0x7b0] sm:$0xff]
      %v3898 = vld [vmem:[%s9 + $0x7b8] sm:$0xff]
      %v3899 = vld [vmem:[%s9 + $0x7c0] sm:$0xff]
      %v3900 = vld [vmem:[%s9 + $0x7c8] sm:$0xff]
      %v3901 = vld [vmem:[%s9 + $0x7d0] sm:$0xff]
      %v3902 = vld [vmem:[%s9 + $0x7d8] sm:$0xff]
      %v3903 = vld [vmem:[%s9 + $0x7e0] sm:$0xff]
      %v3904 = vld [vmem:[%s9 + $0x7e8] sm:$0xff]
      %v3905 = vld [vmem:[%s9 + $0x7f0] sm:$0xff]
      %v3906 = vld [vmem:[%s9 + $0x7f8] sm:$0xff]
      %v3907 = vld [vmem:[%s10] sm:$0x1]
      %v3909 = vlaneseq
      %v3910 = vshrl.u32 %v3909, 7
      %v3911 = vsub.s32 0, %v3910
      %v3912 = vrot.slane %v3907, %v3911
      %3914 = vmatprep.subr.mxu0 0.0
      %3915 = vmatpush1.msra.mxu0 %v3651
      %3916 = vmatprep.subr.mxu0 0.0
      %3917 = vmatpush1.msra.mxu0 %v3652
      %3918 = vmatprep.subr.mxu0 0.0
      %3919 = vmatpush1.msra.mxu0 %v3653
      %3920 = vmatprep.subr.mxu0 0.0
      %3921 = vmatpush1.msra.mxu0 %v3654
      %3922 = vmatprep.subr.mxu0 0.0
      %3923 = vmatpush1.msra.mxu0 %v3655
      %3924 = vmatprep.subr.mxu0 0.0
      %3925 = vmatpush1.msra.mxu0 %v3656
      %3926 = vmatprep.subr.mxu0 0.0
      %3927 = vmatpush1.msra.mxu0 %v3657
      %3928 = vmatprep.subr.mxu0 0.0
      %3929 = vmatpush1.msra.mxu0 %v3658
      %3930 = vmatprep.subr.mxu0 0.0
      %3931 = vmatpush1.msra.mxu0 %v3659
      %3932 = vmatprep.subr.mxu0 0.0
      %3933 = vmatpush1.msra.mxu0 %v3660
      %3934 = vmatprep.subr.mxu0 0.0
      %3935 = vmatpush1.msra.mxu0 %v3661
      %3936 = vmatprep.subr.mxu0 0.0
      %3937 = vmatpush1.msra.mxu0 %v3662
      %3938 = vmatprep.subr.mxu0 0.0
      %3939 = vmatpush1.msra.mxu0 %v3663
      %3940 = vmatprep.subr.mxu0 0.0
      %3941 = vmatpush1.msra.mxu0 %v3664
      %3942 = vmatprep.subr.mxu0 0.0
      %3943 = vmatpush1.msra.mxu0 %v3665
      %3944 = vmatprep.subr.mxu0 0.0
      %3945 = vmatpush1.msra.mxu0 %v3666
      %3946 = vmatprep.subr.mxu0 0.0
      %3947 = vmatpush1.msra.mxu0 %v3667
      %3948 = vmatprep.subr.mxu0 0.0
      %3949 = vmatpush1.msra.mxu0 %v3668
      %3950 = vmatprep.subr.mxu0 0.0
      %3951 = vmatpush1.msra.mxu0 %v3669
      %3952 = vmatprep.subr.mxu0 0.0
      %3953 = vmatpush1.msra.mxu0 %v3670
      %3954 = vmatprep.subr.mxu0 0.0
      %3955 = vmatpush1.msra.mxu0 %v3671
      %3956 = vmatprep.subr.mxu0 0.0
      %3957 = vmatpush1.msra.mxu0 %v3672
      %3958 = vmatprep.subr.mxu0 0.0
      %3959 = vmatpush1.msra.mxu0 %v3673
      %3960 = vmatprep.subr.mxu0 0.0
      %3961 = vmatpush1.msra.mxu0 %v3674
      %3962 = vmatprep.subr.mxu0 0.0
      %3963 = vmatpush1.msra.mxu0 %v3675
      %3964 = vmatprep.subr.mxu0 0.0
      %3965 = vmatpush1.msra.mxu0 %v3676
      %3966 = vmatprep.subr.mxu0 0.0
      %3967 = vmatpush1.msra.mxu0 %v3677
      %3968 = vmatprep.subr.mxu0 0.0
      %3969 = vmatpush1.msra.mxu0 %v3678
      %3970 = vmatprep.subr.mxu0 0.0
      %3971 = vmatpush1.msra.mxu0 %v3679
      %3972 = vmatprep.subr.mxu0 0.0
      %3973 = vmatpush1.msra.mxu0 %v3680
      %3974 = vmatprep.subr.mxu0 0.0
      %3975 = vmatpush1.msra.mxu0 %v3681
      %3976 = vmatprep.subr.mxu0 0.0
      %3977 = vmatpush1.msra.mxu0 %v3682
      %3978 = vmatprep.mubr.f32.mxu0 %v3460
      %3979 = vmatmul.mubr.f32.gmra.mrb[0].mxu0 %v3459
      %v3980 = vpop.f32.mrb[0].mxu0
      %v3981 = vadd.f32 %v3912, %v3980
      %v3982 = vpop.f32.mrb[0].mxu0
      %3983 = vmatprep.mubr.f32.mxu0 %v3476
      %3984 = vmatmul.mubr.f32.gmra.mrb[0].mxu0 %v3475
      %v3985 = vpop.f32.mrb[0].mxu0
      %v3986 = vadd.f32 %v3912, %v3985
      %v3987 = vpop.f32.mrb[0].mxu0
      %3988 = vmatprep.mubr.f32.mxu0 %v3492
      %3989 = vmatmul.mubr.f32.gmra.mrb[0].mxu0 %v3491
      %v3990 = vpop.f32.mrb[0].mxu0
      %v3991 = vadd.f32 %v3912, %v3990
      %v3992 = vpop.f32.mrb[0].mxu0
      %3993 = vmatprep.mubr.f32.mxu0 %v3508
      %3994 = vmatmul.mubr.f32.gmra.mrb[0].mxu0 %v3507
      %v3995 = vpop.f32.mrb[0].mxu0
      %v3996 = vadd.f32 %v3912, %v3995
      %v3997 = vpop.f32.mrb[0].mxu0
      %3998 = vmatprep.mubr.f32.mxu0 %v3524
      %3999 = vmatmul.mubr.f32.gmra.mrb[0].mxu0 %v3523
      %v4000 = vpop.f32.mrb[0].mxu0
      %v4001 = vadd.f32 %v3912, %v4000
      %v4002 = vpop.f32.mrb[0].mxu0
      %4003 = vmatprep.mubr.f32.mxu0 %v3540
      %4004 = vmatmul.mubr.f32.gmra.mrb[0].mxu0 %v3539
      %v4005 = vpop.f32.mrb[0].mxu0
      %v4006 = vadd.f32 %v3912, %v4005
      %v4007 = vpop.f32.mrb[0].mxu0
      %4008 = vmatprep.mubr.f32.mxu0 %v3556
      %4009 = vmatmul.mubr.f32.gmra.mrb[0].mxu0 %v3555
      %v4010 = vpop.f32.mrb[0].mxu0
      %v4011 = vadd.f32 %v3912, %v4010
      %v4012 = vpop.f32.mrb[0].mxu0
      %4013 = vmatprep.mubr.f32.mxu0 %v3572
      %4014 = vmatmul.mubr.f32.gmra.mrb[0].mxu0 %v3571
      %v4015 = vpop.f32.mrb[0].mxu0
      %v4016 = vadd.f32 %v3912, %v4015
      %v4017 = vpop.f32.mrb[0].mxu0
      %4018 = vmatprep.mubr.f32.mxu0 %v3588
      %4019 = vmatmul.mubr.f32.gmra.mrb[0].mxu0 %v3587
      %v4020 = vpop.f32.mrb[0].mxu0
      %v4021 = vadd.f32 %v3912, %v4020
      %v4022 = vpop.f32.mrb[0].mxu0
      %4023 = vmatprep.mubr.f32.mxu0 %v3604
      %4024 = vmatmul.mubr.f32.gmra.mrb[0].mxu0 %v3603
      %v4025 = vpop.f32.mrb[0].mxu0
      %v4026 = vadd.f32 %v3912, %v4025
      %v4027 = vpop.f32.mrb[0].mxu0
      %4028 = vmatprep.mubr.f32.mxu0 %v3620
      %4029 = vmatmul.mubr.f32.gmra.mrb[0].mxu0 %v3619
      %v4030 = vpop.f32.mrb[0].mxu0
      %v4031 = vadd.f32 %v3912, %v4030
      %v4032 = vpop.f32.mrb[0].mxu0
      %4033 = vmatprep.mubr.f32.mxu0 %v3636
      %4034 = vmatmul.mubr.f32.gmra.mrb[0].mxu0 %v3635
      %v4035 = vpop.f32.mrb[0].mxu0
      %v4036 = vadd.f32 %v3912, %v4035
      %v4037 = vpop.f32.mrb[0].mxu0
      %4038 = vdwg.mxu0
      %4039 = vmatprep.subr.mxu0 0.0
      %4040 = vmatpush1.msra.mxu0 %v3683
      %4041 = vmatprep.subr.mxu0 0.0
      %4042 = vmatpush1.msra.mxu0 %v3684
      %4043 = vmatprep.subr.mxu0 0.0
      %4044 = vmatpush1.msra.mxu0 %v3685
      %4045 = vmatprep.subr.mxu0 0.0
      %4046 = vmatpush1.msra.mxu0 %v3686
      %4047 = vmatprep.subr.mxu0 0.0
      %4048 = vmatpush1.msra.mxu0 %v3687
      %4049 = vmatprep.subr.mxu0 0.0
      %4050 = vmatpush1.msra.mxu0 %v3688
      %4051 = vmatprep.subr.mxu0 0.0
      %4052 = vmatpush1.msra.mxu0 %v3689
      %4053 = vmatprep.subr.mxu0 0.0
      %4054 = vmatpush1.msra.mxu0 %v3690
      %4055 = vmatprep.subr.mxu0 0.0
      %4056 = vmatpush1.msra.mxu0 %v3691
      %4057 = vmatprep.subr.mxu0 0.0
      %4058 = vmatpush1.msra.mxu0 %v3692
      %4059 = vmatprep.subr.mxu0 0.0
      %4060 = vmatpush1.msra.mxu0 %v3693
      %4061 = vmatprep.subr.mxu0 0.0
      %4062 = vmatpush1.msra.mxu0 %v3694
      %4063 = vmatprep.subr.mxu0 0.0
      %4064 = vmatpush1.msra.mxu0 %v3695
      %4065 = vmatprep.subr.mxu0 0.0
      %4066 = vmatpush1.msra.mxu0 %v3696
      %4067 = vmatprep.subr.mxu0 0.0
      %4068 = vmatpush1.msra.mxu0 %v3697
      %4069 = vmatprep.subr.mxu0 0.0
      %4070 = vmatpush1.msra.mxu0 %v3698
      %4071 = vmatprep.subr.mxu0 0.0
      %4072 = vmatpush1.msra.mxu0 %v3699
      %4073 = vmatprep.subr.mxu0 0.0
      %4074 = vmatpush1.msra.mxu0 %v3700
      %4075 = vmatprep.subr.mxu0 0.0
      %4076 = vmatpush1.msra.mxu0 %v3701
      %4077 = vmatprep.subr.mxu0 0.0
      %4078 = vmatpush1.msra.mxu0 %v3702
      %4079 = vmatprep.subr.mxu0 0.0
      %4080 = vmatpush1.msra.mxu0 %v3703
      %4081 = vmatprep.subr.mxu0 0.0
      %4082 = vmatpush1.msra.mxu0 %v3704
      %4083 = vmatprep.subr.mxu0 0.0
      %4084 = vmatpush1.msra.mxu0 %v3705
      %4085 = vmatprep.subr.mxu0 0.0
      %4086 = vmatpush1.msra.mxu0 %v3706
      %4087 = vmatprep.subr.mxu0 0.0
      %4088 = vmatpush1.msra.mxu0 %v3707
      %4089 = vmatprep.subr.mxu0 0.0
      %4090 = vmatpush1.msra.mxu0 %v3708
      %4091 = vmatprep.subr.mxu0 0.0
      %4092 = vmatpush1.msra.mxu0 %v3709
      %4093 = vmatprep.subr.mxu0 0.0
      %4094 = vmatpush1.msra.mxu0 %v3710
      %4095 = vmatprep.subr.mxu0 0.0
      %4096 = vmatpush1.msra.mxu0 %v3711
      %4097 = vmatprep.subr.mxu0 0.0
      %4098 = vmatpush1.msra.mxu0 %v3712
      %4099 = vmatprep.subr.mxu0 0.0
      %4100 = vmatpush1.msra.mxu0 %v3713
      %4101 = vmatprep.subr.mxu0 0.0
      %4102 = vmatpush1.msra.mxu0 %v3714
      %4103 = vmatprep.mubr.f32.mxu0 %v3462
      %4104 = vmatmul.mubr.f32.gmra.mrb[0].mxu0 %v3461
      %v4105 = vpop.f32.mrb[0].mxu0
      %v4106 = vadd.f32 %v3981, %v4105
      %v4107 = vpop.f32.mrb[0].mxu0
      %4108 = vmatprep.mubr.f32.mxu0 %v3478
      %4109 = vmatmul.mubr.f32.gmra.mrb[0].mxu0 %v3477
      %v4110 = vpop.f32.mrb[0].mxu0
      %v4111 = vadd.f32 %v3986, %v4110
      %v4112 = vpop.f32.mrb[0].mxu0
      %4113 = vmatprep.mubr.f32.mxu0 %v3494
      %4114 = vmatmul.mubr.f32.gmra.mrb[0].mxu0 %v3493
      %v4115 = vpop.f32.mrb[0].mxu0
      %v4116 = vadd.f32 %v3991, %v4115
      %v4117 = vpop.f32.mrb[0].mxu0
      %4118 = vmatprep.mubr.f32.mxu0 %v3510
      %4119 = vmatmul.mubr.f32.gmra.mrb[0].mxu0 %v3509
      %v4120 = vpop.f32.mrb[0].mxu0
      %v4121 = vadd.f32 %v3996, %v4120
      %v4122 = vpop.f32.mrb[0].mxu0
      %4123 = vmatprep.mubr.f32.mxu0 %v3526
      %4124 = vmatmul.mubr.f32.gmra.mrb[0].mxu0 %v3525
      %v4125 = vpop.f32.mrb[0].mxu0
      %v4126 = vadd.f32 %v4001, %v4125
      %v4127 = vpop.f32.mrb[0].mxu0
      %4128 = vmatprep.mubr.f32.mxu0 %v3542
      %4129 = vmatmul.mubr.f32.gmra.mrb[0].mxu0 %v3541
      %v4130 = vpop.f32.mrb[0].mxu0
      %v4131 = vadd.f32 %v4006, %v4130
      %v4132 = vpop.f32.mrb[0].mxu0
      %4133 = vmatprep.mubr.f32.mxu0 %v3558
      %4134 = vmatmul.mubr.f32.gmra.mrb[0].mxu0 %v3557
      %v4135 = vpop.f32.mrb[0].mxu0
      %v4136 = vadd.f32 %v4011, %v4135
      %v4137 = vpop.f32.mrb[0].mxu0
      %4138 = vmatprep.mubr.f32.mxu0 %v3574
      %4139 = vmatmul.mubr.f32.gmra.mrb[0].mxu0 %v3573
      %v4140 = vpop.f32.mrb[0].mxu0
      %v4141 = vadd.f32 %v4016, %v4140
      %v4142 = vpop.f32.mrb[0].mxu0
      %4143 = vmatprep.mubr.f32.mxu0 %v3590
      %4144 = vmatmul.mubr.f32.gmra.mrb[0].mxu0 %v3589
      %v4145 = vpop.f32.mrb[0].mxu0
      %v4146 = vadd.f32 %v4021, %v4145
      %v4147 = vpop.f32.mrb[0].mxu0
      %4148 = vmatprep.mubr.f32.mxu0 %v3606
      %4149 = vmatmul.mubr.f32.gmra.mrb[0].mxu0 %v3605
      %v4150 = vpop.f32.mrb[0].mxu0
      %v4151 = vadd.f32 %v4026, %v4150
      %v4152 = vpop.f32.mrb[0].mxu0
      %4153 = vmatprep.mubr.f32.mxu0 %v3622
      %4154 = vmatmul.mubr.f32.gmra.mrb[0].mxu0 %v3621
      %v4155 = vpop.f32.mrb[0].mxu0
      %v4156 = vadd.f32 %v4031, %v4155
      %v4157 = vpop.f32.mrb[0].mxu0
      %4158 = vmatprep.mubr.f32.mxu0 %v3638
      %4159 = vmatmul.mubr.f32.gmra.mrb[0].mxu0 %v3637
      %v4160 = vpop.f32.mrb[0].mxu0
      %v4161 = vadd.f32 %v4036, %v4160
      %v4162 = vpop.f32.mrb[0].mxu0
      %4163 = vdwg.mxu0
      %4164 = vmatprep.subr.mxu0 0.0
      %4165 = vmatpush1.msra.mxu0 %v3715
      %4166 = vmatprep.subr.mxu0 0.0
      %4167 = vmatpush1.msra.mxu0 %v3716
      %4168 = vmatprep.subr.mxu0 0.0
      %4169 = vmatpush1.msra.mxu0 %v3717
      %4170 = vmatprep.subr.mxu0 0.0
      %4171 = vmatpush1.msra.mxu0 %v3718
      %4172 = vmatprep.subr.mxu0 0.0
      %4173 = vmatpush1.msra.mxu0 %v3719
      %4174 = vmatprep.subr.mxu0 0.0
      %4175 = vmatpush1.msra.mxu0 %v3720
      %4176 = vmatprep.subr.mxu0 0.0
      %4177 = vmatpush1.msra.mxu0 %v3721
      %4178 = vmatprep.subr.mxu0 0.0
      %4179 = vmatpush1.msra.mxu0 %v3722
      %4180 = vmatprep.subr.mxu0 0.0
      %4181 = vmatpush1.msra.mxu0 %v3723
      %4182 = vmatprep.subr.mxu0 0.0
      %4183 = vmatpush1.msra.mxu0 %v3724
      %4184 = vmatprep.subr.mxu0 0.0
      %4185 = vmatpush1.msra.mxu0 %v3725
      %4186 = vmatprep.subr.mxu0 0.0
      %4187 = vmatpush1.msra.mxu0 %v3726
      %4188 = vmatprep.subr.mxu0 0.0
      %4189 = vmatpush1.msra.mxu0 %v3727
      %4190 = vmatprep.subr.mxu0 0.0
      %4191 = vmatpush1.msra.mxu0 %v3728
      %4192 = vmatprep.subr.mxu0 0.0
      %4193 = vmatpush1.msra.mxu0 %v3729
      %4194 = vmatprep.subr.mxu0 0.0
      %4195 = vmatpush1.msra.mxu0 %v3730
      %4196 = vmatprep.subr.mxu0 0.0
      %4197 = vmatpush1.msra.mxu0 %v3731
      %4198 = vmatprep.subr.mxu0 0.0
      %4199 = vmatpush1.msra.mxu0 %v3732
      %4200 = vmatprep.subr.mxu0 0.0
      %4201 = vmatpush1.msra.mxu0 %v3733
      %4202 = vmatprep.subr.mxu0 0.0
      %4203 = vmatpush1.msra.mxu0 %v3734
      %4204 = vmatprep.subr.mxu0 0.0
      %4205 = vmatpush1.msra.mxu0 %v3735
      %4206 = vmatprep.subr.mxu0 0.0
      %4207 = vmatpush1.msra.mxu0 %v3736
      %4208 = vmatprep.subr.mxu0 0.0
      %4209 = vmatpush1.msra.mxu0 %v3737
      %4210 = vmatprep.subr.mxu0 0.0
      %4211 = vmatpush1.msra.mxu0 %v3738
      %4212 = vmatprep.subr.mxu0 0.0
      %4213 = vmatpush1.msra.mxu0 %v3739
      %4214 = vmatprep.subr.mxu0 0.0
      %4215 = vmatpush1.msra.mxu0 %v3740
      %4216 = vmatprep.subr.mxu0 0.0
      %4217 = vmatpush1.msra.mxu0 %v3741
      %4218 = vmatprep.subr.mxu0 0.0
      %4219 = vmatpush1.msra.mxu0 %v3742
      %4220 = vmatprep.subr.mxu0 0.0
      %4221 = vmatpush1.msra.mxu0 %v3743
      %4222 = vmatprep.subr.mxu0 0.0
      %4223 = vmatpush1.msra.mxu0 %v3744
      %4224 = vmatprep.subr.mxu0 0.0
      %4225 = vmatpush1.msra.mxu0 %v3745
      %4226 = vmatprep.subr.mxu0 0.0
      %4227 = vmatpush1.msra.mxu0 %v3746
      %4228 = vmatprep.mubr.f32.mxu0 %v3464
      %4229 = vmatmul.mubr.f32.gmra.mrb[0].mxu0 %v3463
      %v4230 = vpop.f32.mrb[0].mxu0
      %v4231 = vadd.f32 %v4106, %v4230
      %v4232 = vpop.f32.mrb[0].mxu0
      %4233 = vmatprep.mubr.f32.mxu0 %v3480
      %4234 = vmatmul.mubr.f32.gmra.mrb[0].mxu0 %v3479
      %v4235 = vpop.f32.mrb[0].mxu0
      %v4236 = vadd.f32 %v4111, %v4235
      %v4237 = vpop.f32.mrb[0].mxu0
      %4238 = vmatprep.mubr.f32.mxu0 %v3496
      %4239 = vmatmul.mubr.f32.gmra.mrb[0].mxu0 %v3495
      %v4240 = vpop.f32.mrb[0].mxu0
      %v4241 = vadd.f32 %v4116, %v4240
      %v4242 = vpop.f32.mrb[0].mxu0
      %4243 = vmatprep.mubr.f32.mxu0 %v3512
      %4244 = vmatmul.mubr.f32.gmra.mrb[0].mxu0 %v3511
      %v4245 = vpop.f32.mrb[0].mxu0
      %v4246 = vadd.f32 %v4121, %v4245
      %v4247 = vpop.f32.mrb[0].mxu0
      %4248 = vmatprep.mubr.f32.mxu0 %v3528
      %4249 = vmatmul.mubr.f32.gmra.mrb[0].mxu0 %v3527
      %v4250 = vpop.f32.mrb[0].mxu0
      %v4251 = vadd.f32 %v4126, %v4250
      %v4252 = vpop.f32.mrb[0].mxu0
      %4253 = vmatprep.mubr.f32.mxu0 %v3544
      %4254 = vmatmul.mubr.f32.gmra.mrb[0].mxu0 %v3543
      %v4255 = vpop.f32.mrb[0].mxu0
      %v4256 = vadd.f32 %v4131, %v4255
      %v4257 = vpop.f32.mrb[0].mxu0
      %4258 = vmatprep.mubr.f32.mxu0 %v3560
      %4259 = vmatmul.mubr.f32.gmra.mrb[0].mxu0 %v3559
      %v4260 = vpop.f32.mrb[0].mxu0
      %v4261 = vadd.f32 %v4136, %v4260
      %v4262 = vpop.f32.mrb[0].mxu0
      %4263 = vmatprep.mubr.f32.mxu0 %v3576
      %4264 = vmatmul.mubr.f32.gmra.mrb[0].mxu0 %v3575
      %v4265 = vpop.f32.mrb[0].mxu0
      %v4266 = vadd.f32 %v4141, %v4265
      %v4267 = vpop.f32.mrb[0].mxu0
      %4268 = vmatprep.mubr.f32.mxu0 %v3592
      %4269 = vmatmul.mubr.f32.gmra.mrb[0].mxu0 %v3591
      %v4270 = vpop.f32.mrb[0].mxu0
      %v4271 = vadd.f32 %v4146, %v4270
      %v4272 = vpop.f32.mrb[0].mxu0
      %4273 = vmatprep.mubr.f32.mxu0 %v3608
      %4274 = vmatmul.mubr.f32.gmra.mrb[0].mxu0 %v3607
      %v4275 = vpop.f32.mrb[0].mxu0
      %v4276 = vadd.f32 %v4151, %v4275
      %v4277 = vpop.f32.mrb[0].mxu0
      %4278 = vmatprep.mubr.f32.mxu0 %v3624
      %4279 = vmatmul.mubr.f32.gmra.mrb[0].mxu0 %v3623
      %v4280 = vpop.f32.mrb[0].mxu0
      %v4281 = vadd.f32 %v4156, %v4280
      %v4282 = vpop.f32.mrb[0].mxu0
      %4283 = vmatprep.mubr.f32.mxu0 %v3640
      %4284 = vmatmul.mubr.f32.gmra.mrb[0].mxu0 %v3639
      %v4285 = vpop.f32.mrb[0].mxu0
      %v4286 = vadd.f32 %v4161, %v4285
      %v4287 = vpop.f32.mrb[0].mxu0
      %4288 = vdwg.mxu0
      %4289 = vmatprep.subr.mxu0 0.0
      %4290 = vmatpush1.msra.mxu0 %v3747
      %4291 = vmatprep.subr.mxu0 0.0
      %4292 = vmatpush1.msra.mxu0 %v3748
      %4293 = vmatprep.subr.mxu0 0.0
      %4294 = vmatpush1.msra.mxu0 %v3749
      %4295 = vmatprep.subr.mxu0 0.0
      %4296 = vmatpush1.msra.mxu0 %v3750
      %4297 = vmatprep.subr.mxu0 0.0
      %4298 = vmatpush1.msra.mxu0 %v3751
      %4299 = vmatprep.subr.mxu0 0.0
      %4300 = vmatpush1.msra.mxu0 %v3752
      %4301 = vmatprep.subr.mxu0 0.0
      %4302 = vmatpush1.msra.mxu0 %v3753
      %4303 = vmatprep.subr.mxu0 0.0
      %4304 = vmatpush1.msra.mxu0 %v3754
      %4305 = vmatprep.subr.mxu0 0.0
      %4306 = vmatpush1.msra.mxu0 %v3755
      %4307 = vmatprep.subr.mxu0 0.0
      %4308 = vmatpush1.msra.mxu0 %v3756
      %4309 = vmatprep.subr.mxu0 0.0
      %4310 = vmatpush1.msra.mxu0 %v3757
      %4311 = vmatprep.subr.mxu0 0.0
      %4312 = vmatpush1.msra.mxu0 %v3758
      %4313 = vmatprep.subr.mxu0 0.0
      %4314 = vmatpush1.msra.mxu0 %v3759
      %4315 = vmatprep.subr.mxu0 0.0
      %4316 = vmatpush1.msra.mxu0 %v3760
      %4317 = vmatprep.subr.mxu0 0.0
      %4318 = vmatpush1.msra.mxu0 %v3761
      %4319 = vmatprep.subr.mxu0 0.0
      %4320 = vmatpush1.msra.mxu0 %v3762
      %4321 = vmatprep.subr.mxu0 0.0
      %4322 = vmatpush1.msra.mxu0 %v3763
      %4323 = vmatprep.subr.mxu0 0.0
      %4324 = vmatpush1.msra.mxu0 %v3764
      %4325 = vmatprep.subr.mxu0 0.0
      %4326 = vmatpush1.msra.mxu0 %v3765
      %4327 = vmatprep.subr.mxu0 0.0
      %4328 = vmatpush1.msra.mxu0 %v3766
      %4329 = vmatprep.subr.mxu0 0.0
      %4330 = vmatpush1.msra.mxu0 %v3767
      %4331 = vmatprep.subr.mxu0 0.0
      %4332 = vmatpush1.msra.mxu0 %v3768
      %4333 = vmatprep.subr.mxu0 0.0
      %4334 = vmatpush1.msra.mxu0 %v3769
      %4335 = vmatprep.subr.mxu0 0.0
      %4336 = vmatpush1.msra.mxu0 %v3770
      %4337 = vmatprep.subr.mxu0 0.0
      %4338 = vmatpush1.msra.mxu0 %v3771
      %4339 = vmatprep.subr.mxu0 0.0
      %4340 = vmatpush1.msra.mxu0 %v3772
      %4341 = vmatprep.subr.mxu0 0.0
      %4342 = vmatpush1.msra.mxu0 %v3773
      %4343 = vmatprep.subr.mxu0 0.0
      %4344 = vmatpush1.msra.mxu0 %v3774
      %4345 = vmatprep.subr.mxu0 0.0
      %4346 = vmatpush1.msra.mxu0 %v3775
      %4347 = vmatprep.subr.mxu0 0.0
      %4348 = vmatpush1.msra.mxu0 %v3776
      %4349 = vmatprep.subr.mxu0 0.0
      %4350 = vmatpush1.msra.mxu0 %v3777
      %4351 = vmatprep.subr.mxu0 0.0
      %4352 = vmatpush1.msra.mxu0 %v3778
      %4353 = vmatprep.mubr.f32.mxu0 %v3466
      %4354 = vmatmul.mubr.f32.gmra.mrb[0].mxu0 %v3465
      %v4355 = vpop.f32.mrb[0].mxu0
      %v4356 = vadd.f32 %v4231, %v4355
      %v4357 = vpop.f32.mrb[0].mxu0
      %4358 = vmatprep.mubr.f32.mxu0 %v3482
      %4359 = vmatmul.mubr.f32.gmra.mrb[0].mxu0 %v3481
      %v4360 = vpop.f32.mrb[0].mxu0
      %v4361 = vadd.f32 %v4236, %v4360
      %v4362 = vpop.f32.mrb[0].mxu0
      %4363 = vmatprep.mubr.f32.mxu0 %v3498
      %4364 = vmatmul.mubr.f32.gmra.mrb[0].mxu0 %v3497
      %v4365 = vpop.f32.mrb[0].mxu0
      %v4366 = vadd.f32 %v4241, %v4365
      %v4367 = vpop.f32.mrb[0].mxu0
      %4368 = vmatprep.mubr.f32.mxu0 %v3514
      %4369 = vmatmul.mubr.f32.gmra.mrb[0].mxu0 %v3513
      %v4370 = vpop.f32.mrb[0].mxu0
      %v4371 = vadd.f32 %v4246, %v4370
      %v4372 = vpop.f32.mrb[0].mxu0
      %4373 = vmatprep.mubr.f32.mxu0 %v3530
      %4374 = vmatmul.mubr.f32.gmra.mrb[0].mxu0 %v3529
      %v4375 = vpop.f32.mrb[0].mxu0
      %v4376 = vadd.f32 %v4251, %v4375
      %v4377 = vpop.f32.mrb[0].mxu0
      %4378 = vmatprep.mubr.f32.mxu0 %v3546
      %4379 = vmatmul.mubr.f32.gmra.mrb[0].mxu0 %v3545
      %v4380 = vpop.f32.mrb[0].mxu0
      %v4381 = vadd.f32 %v4256, %v4380
      %v4382 = vpop.f32.mrb[0].mxu0
      %4383 = vmatprep.mubr.f32.mxu0 %v3562
      %4384 = vmatmul.mubr.f32.gmra.mrb[0].mxu0 %v3561
      %v4385 = vpop.f32.mrb[0].mxu0
      %v4386 = vadd.f32 %v4261, %v4385
      %v4387 = vpop.f32.mrb[0].mxu0
      %4388 = vmatprep.mubr.f32.mxu0 %v3578
      %4389 = vmatmul.mubr.f32.gmra.mrb[0].mxu0 %v3577
      %v4390 = vpop.f32.mrb[0].mxu0
      %v4391 = vadd.f32 %v4266, %v4390
      %v4392 = vpop.f32.mrb[0].mxu0
      %4393 = vmatprep.mubr.f32.mxu0 %v3594
      %4394 = vmatmul.mubr.f32.gmra.mrb[0].mxu0 %v3593
      %v4395 = vpop.f32.mrb[0].mxu0
      %v4396 = vadd.f32 %v4271, %v4395
      %v4397 = vpop.f32.mrb[0].mxu0
      %4398 = vmatprep.mubr.f32.mxu0 %v3610
      %4399 = vmatmul.mubr.f32.gmra.mrb[0].mxu0 %v3609
      %v4400 = vpop.f32.mrb[0].mxu0
      %v4401 = vadd.f32 %v4276, %v4400
      %v4402 = vpop.f32.mrb[0].mxu0
      %4403 = vmatprep.mubr.f32.mxu0 %v3626
      %4404 = vmatmul.mubr.f32.gmra.mrb[0].mxu0 %v3625
      %v4405 = vpop.f32.mrb[0].mxu0
      %v4406 = vadd.f32 %v4281, %v4405
      %v4407 = vpop.f32.mrb[0].mxu0
      %4408 = vmatprep.mubr.f32.mxu0 %v3642
      %4409 = vmatmul.mubr.f32.gmra.mrb[0].mxu0 %v3641
      %v4410 = vpop.f32.mrb[0].mxu0
      %v4411 = vadd.f32 %v4286, %v4410
      %v4412 = vpop.f32.mrb[0].mxu0
      %4413 = vdwg.mxu0
      %4414 = vmatprep.subr.mxu0 0.0
      %4415 = vmatpush1.msra.mxu0 %v3779
      %4416 = vmatprep.subr.mxu0 0.0
      %4417 = vmatpush1.msra.mxu0 %v3780
      %4418 = vmatprep.subr.mxu0 0.0
      %4419 = vmatpush1.msra.mxu0 %v3781
      %4420 = vmatprep.subr.mxu0 0.0
      %4421 = vmatpush1.msra.mxu0 %v3782
      %4422 = vmatprep.subr.mxu0 0.0
      %4423 = vmatpush1.msra.mxu0 %v3783
      %4424 = vmatprep.subr.mxu0 0.0
      %4425 = vmatpush1.msra.mxu0 %v3784
      %4426 = vmatprep.subr.mxu0 0.0
      %4427 = vmatpush1.msra.mxu0 %v3785
      %4428 = vmatprep.subr.mxu0 0.0
      %4429 = vmatpush1.msra.mxu0 %v3786
      %4430 = vmatprep.subr.mxu0 0.0
      %4431 = vmatpush1.msra.mxu0 %v3787
      %4432 = vmatprep.subr.mxu0 0.0
      %4433 = vmatpush1.msra.mxu0 %v3788
      %4434 = vmatprep.subr.mxu0 0.0
      %4435 = vmatpush1.msra.mxu0 %v3789
      %4436 = vmatprep.subr.mxu0 0.0
      %4437 = vmatpush1.msra.mxu0 %v3790
      %4438 = vmatprep.subr.mxu0 0.0
      %4439 = vmatpush1.msra.mxu0 %v3791
      %4440 = vmatprep.subr.mxu0 0.0
      %4441 = vmatpush1.msra.mxu0 %v3792
      %4442 = vmatprep.subr.mxu0 0.0
      %4443 = vmatpush1.msra.mxu0 %v3793
      %4444 = vmatprep.subr.mxu0 0.0
      %4445 = vmatpush1.msra.mxu0 %v3794
      %4446 = vmatprep.subr.mxu0 0.0
      %4447 = vmatpush1.msra.mxu0 %v3795
      %4448 = vmatprep.subr.mxu0 0.0
      %4449 = vmatpush1.msra.mxu0 %v3796
      %4450 = vmatprep.subr.mxu0 0.0
      %4451 = vmatpush1.msra.mxu0 %v3797
      %4452 = vmatprep.subr.mxu0 0.0
      %4453 = vmatpush1.msra.mxu0 %v3798
      %4454 = vmatprep.subr.mxu0 0.0
      %4455 = vmatpush1.msra.mxu0 %v3799
      %4456 = vmatprep.subr.mxu0 0.0
      %4457 = vmatpush1.msra.mxu0 %v3800
      %4458 = vmatprep.subr.mxu0 0.0
      %4459 = vmatpush1.msra.mxu0 %v3801
      %4460 = vmatprep.subr.mxu0 0.0
      %4461 = vmatpush1.msra.mxu0 %v3802
      %4462 = vmatprep.subr.mxu0 0.0
      %4463 = vmatpush1.msra.mxu0 %v3803
      %4464 = vmatprep.subr.mxu0 0.0
      %4465 = vmatpush1.msra.mxu0 %v3804
      %4466 = vmatprep.subr.mxu0 0.0
      %4467 = vmatpush1.msra.mxu0 %v3805
      %4468 = vmatprep.subr.mxu0 0.0
      %4469 = vmatpush1.msra.mxu0 %v3806
      %4470 = vmatprep.subr.mxu0 0.0
      %4471 = vmatpush1.msra.mxu0 %v3807
      %4472 = vmatprep.subr.mxu0 0.0
      %4473 = vmatpush1.msra.mxu0 %v3808
      %4474 = vmatprep.subr.mxu0 0.0
      %4475 = vmatpush1.msra.mxu0 %v3809
      %4476 = vmatprep.subr.mxu0 0.0
      %4477 = vmatpush1.msra.mxu0 %v3810
      %4478 = vmatprep.mubr.f32.mxu0 %v3468
      %4479 = vmatmul.mubr.f32.gmra.mrb[0].mxu0 %v3467
      %v4480 = vpop.f32.mrb[0].mxu0
      %v4481 = vadd.f32 %v4356, %v4480
      %v4482 = vpop.f32.mrb[0].mxu0
      %4483 = vmatprep.mubr.f32.mxu0 %v3484
      %4484 = vmatmul.mubr.f32.gmra.mrb[0].mxu0 %v3483
      %v4485 = vpop.f32.mrb[0].mxu0
      %v4486 = vadd.f32 %v4361, %v4485
      %v4487 = vpop.f32.mrb[0].mxu0
      %4488 = vmatprep.mubr.f32.mxu0 %v3500
      %4489 = vmatmul.mubr.f32.gmra.mrb[0].mxu0 %v3499
      %v4490 = vpop.f32.mrb[0].mxu0
      %v4491 = vadd.f32 %v4366, %v4490
      %v4492 = vpop.f32.mrb[0].mxu0
      %4493 = vmatprep.mubr.f32.mxu0 %v3516
      %4494 = vmatmul.mubr.f32.gmra.mrb[0].mxu0 %v3515
      %v4495 = vpop.f32.mrb[0].mxu0
      %v4496 = vadd.f32 %v4371, %v4495
      %v4497 = vpop.f32.mrb[0].mxu0
      %4498 = vmatprep.mubr.f32.mxu0 %v3532
      %4499 = vmatmul.mubr.f32.gmra.mrb[0].mxu0 %v3531
      %v4500 = vpop.f32.mrb[0].mxu0
      %v4501 = vadd.f32 %v4376, %v4500
      %v4502 = vpop.f32.mrb[0].mxu0
      %4503 = vmatprep.mubr.f32.mxu0 %v3548
      %4504 = vmatmul.mubr.f32.gmra.mrb[0].mxu0 %v3547
      %v4505 = vpop.f32.mrb[0].mxu0
      %v4506 = vadd.f32 %v4381, %v4505
      %v4507 = vpop.f32.mrb[0].mxu0
      %4508 = vmatprep.mubr.f32.mxu0 %v3564
      %4509 = vmatmul.mubr.f32.gmra.mrb[0].mxu0 %v3563
      %v4510 = vpop.f32.mrb[0].mxu0
      %v4511 = vadd.f32 %v4386, %v4510
      %v4512 = vpop.f32.mrb[0].mxu0
      %4513 = vmatprep.mubr.f32.mxu0 %v3580
      %4514 = vmatmul.mubr.f32.gmra.mrb[0].mxu0 %v3579
      %v4515 = vpop.f32.mrb[0].mxu0
      %v4516 = vadd.f32 %v4391, %v4515
      %v4517 = vpop.f32.mrb[0].mxu0
      %4518 = vmatprep.mubr.f32.mxu0 %v3596
      %4519 = vmatmul.mubr.f32.gmra.mrb[0].mxu0 %v3595
      %v4520 = vpop.f32.mrb[0].mxu0
      %v4521 = vadd.f32 %v4396, %v4520
      %v4522 = vpop.f32.mrb[0].mxu0
      %4523 = vmatprep.mubr.f32.mxu0 %v3612
      %4524 = vmatmul.mubr.f32.gmra.mrb[0].mxu0 %v3611
      %v4525 = vpop.f32.mrb[0].mxu0
      %v4526 = vadd.f32 %v4401, %v4525
      %v4527 = vpop.f32.mrb[0].mxu0
      %4528 = vmatprep.mubr.f32.mxu0 %v3628
      %4529 = vmatmul.mubr.f32.gmra.mrb[0].mxu0 %v3627
      %v4530 = vpop.f32.mrb[0].mxu0
      %v4531 = vadd.f32 %v4406, %v4530
      %v4532 = vpop.f32.mrb[0].mxu0
      %4533 = vmatprep.mubr.f32.mxu0 %v3644
      %4534 = vmatmul.mubr.f32.gmra.mrb[0].mxu0 %v3643
      %v4535 = vpop.f32.mrb[0].mxu0
      %v4536 = vadd.f32 %v4411, %v4535
      %v4537 = vpop.f32.mrb[0].mxu0
      %4538 = vdwg.mxu0
      %4539 = vmatprep.subr.mxu0 0.0
      %4540 = vmatpush1.msra.mxu0 %v3811
      %4541 = vmatprep.subr.mxu0 0.0
      %4542 = vmatpush1.msra.mxu0 %v3812
      %4543 = vmatprep.subr.mxu0 0.0
      %4544 = vmatpush1.msra.mxu0 %v3813
      %4545 = vmatprep.subr.mxu0 0.0
      %4546 = vmatpush1.msra.mxu0 %v3814
      %4547 = vmatprep.subr.mxu0 0.0
      %4548 = vmatpush1.msra.mxu0 %v3815
      %4549 = vmatprep.subr.mxu0 0.0
      %4550 = vmatpush1.msra.mxu0 %v3816
      %4551 = vmatprep.subr.mxu0 0.0
      %4552 = vmatpush1.msra.mxu0 %v3817
      %4553 = vmatprep.subr.mxu0 0.0
      %4554 = vmatpush1.msra.mxu0 %v3818
      %4555 = vmatprep.subr.mxu0 0.0
      %4556 = vmatpush1.msra.mxu0 %v3819
      %4557 = vmatprep.subr.mxu0 0.0
      %4558 = vmatpush1.msra.mxu0 %v3820
      %4559 = vmatprep.subr.mxu0 0.0
      %4560 = vmatpush1.msra.mxu0 %v3821
      %4561 = vmatprep.subr.mxu0 0.0
      %4562 = vmatpush1.msra.mxu0 %v3822
      %4563 = vmatprep.subr.mxu0 0.0
      %4564 = vmatpush1.msra.mxu0 %v3823
      %4565 = vmatprep.subr.mxu0 0.0
      %4566 = vmatpush1.msra.mxu0 %v3824
      %4567 = vmatprep.subr.mxu0 0.0
      %4568 = vmatpush1.msra.mxu0 %v3825
      %4569 = vmatprep.subr.mxu0 0.0
      %4570 = vmatpush1.msra.mxu0 %v3826
      %4571 = vmatprep.subr.mxu0 0.0
      %4572 = vmatpush1.msra.mxu0 %v3827
      %4573 = vmatprep.subr.mxu0 0.0
      %4574 = vmatpush1.msra.mxu0 %v3828
      %4575 = vmatprep.subr.mxu0 0.0
      %4576 = vmatpush1.msra.mxu0 %v3829
      %4577 = vmatprep.subr.mxu0 0.0
      %4578 = vmatpush1.msra.mxu0 %v3830
      %4579 = vmatprep.subr.mxu0 0.0
      %4580 = vmatpush1.msra.mxu0 %v3831
      %4581 = vmatprep.subr.mxu0 0.0
      %4582 = vmatpush1.msra.mxu0 %v3832
      %4583 = vmatprep.subr.mxu0 0.0
      %4584 = vmatpush1.msra.mxu0 %v3833
      %4585 = vmatprep.subr.mxu0 0.0
      %4586 = vmatpush1.msra.mxu0 %v3834
      %4587 = vmatprep.subr.mxu0 0.0
      %4588 = vmatpush1.msra.mxu0 %v3835
      %4589 = vmatprep.subr.mxu0 0.0
      %4590 = vmatpush1.msra.mxu0 %v3836
      %4591 = vmatprep.subr.mxu0 0.0
      %4592 = vmatpush1.msra.mxu0 %v3837
      %4593 = vmatprep.subr.mxu0 0.0
      %4594 = vmatpush1.msra.mxu0 %v3838
      %4595 = vmatprep.subr.mxu0 0.0
      %4596 = vmatpush1.msra.mxu0 %v3839
      %4597 = vmatprep.subr.mxu0 0.0
      %4598 = vmatpush1.msra.mxu0 %v3840
      %4599 = vmatprep.subr.mxu0 0.0
      %4600 = vmatpush1.msra.mxu0 %v3841
      %4601 = vmatprep.subr.mxu0 0.0
      %4602 = vmatpush1.msra.mxu0 %v3842
      %4603 = vmatprep.mubr.f32.mxu0 %v3470
      %4604 = vmatmul.mubr.f32.gmra.mrb[0].mxu0 %v3469
      %v4605 = vpop.f32.mrb[0].mxu0
      %v4606 = vadd.f32 %v4481, %v4605
      %v4607 = vpop.f32.mrb[0].mxu0
      %4608 = vmatprep.mubr.f32.mxu0 %v3486
      %4609 = vmatmul.mubr.f32.gmra.mrb[0].mxu0 %v3485
      %v4610 = vpop.f32.mrb[0].mxu0
      %v4611 = vadd.f32 %v4486, %v4610
      %v4612 = vpop.f32.mrb[0].mxu0
      %4613 = vmatprep.mubr.f32.mxu0 %v3502
      %4614 = vmatmul.mubr.f32.gmra.mrb[0].mxu0 %v3501
      %v4615 = vpop.f32.mrb[0].mxu0
      %v4616 = vadd.f32 %v4491, %v4615
      %v4617 = vpop.f32.mrb[0].mxu0
      %4618 = vmatprep.mubr.f32.mxu0 %v3518
      %4619 = vmatmul.mubr.f32.gmra.mrb[0].mxu0 %v3517
      %v4620 = vpop.f32.mrb[0].mxu0
      %v4621 = vadd.f32 %v4496, %v4620
      %v4622 = vpop.f32.mrb[0].mxu0
      %4623 = vmatprep.mubr.f32.mxu0 %v3534
      %4624 = vmatmul.mubr.f32.gmra.mrb[0].mxu0 %v3533
      %v4625 = vpop.f32.mrb[0].mxu0
      %v4626 = vadd.f32 %v4501, %v4625
      %v4627 = vpop.f32.mrb[0].mxu0
      %4628 = vmatprep.mubr.f32.mxu0 %v3550
      %4629 = vmatmul.mubr.f32.gmra.mrb[0].mxu0 %v3549
      %v4630 = vpop.f32.mrb[0].mxu0
      %v4631 = vadd.f32 %v4506, %v4630
      %v4632 = vpop.f32.mrb[0].mxu0
      %4633 = vmatprep.mubr.f32.mxu0 %v3566
      %4634 = vmatmul.mubr.f32.gmra.mrb[0].mxu0 %v3565
      %v4635 = vpop.f32.mrb[0].mxu0
      %v4636 = vadd.f32 %v4511, %v4635
      %v4637 = vpop.f32.mrb[0].mxu0
      %4638 = vmatprep.mubr.f32.mxu0 %v3582
      %4639 = vmatmul.mubr.f32.gmra.mrb[0].mxu0 %v3581
      %v4640 = vpop.f32.mrb[0].mxu0
      %v4641 = vadd.f32 %v4516, %v4640
      %v4642 = vpop.f32.mrb[0].mxu0
      %4643 = vmatprep.mubr.f32.mxu0 %v3598
      %4644 = vmatmul.mubr.f32.gmra.mrb[0].mxu0 %v3597
      %v4645 = vpop.f32.mrb[0].mxu0
      %v4646 = vadd.f32 %v4521, %v4645
      %v4647 = vpop.f32.mrb[0].mxu0
      %4648 = vmatprep.mubr.f32.mxu0 %v3614
      %4649 = vmatmul.mubr.f32.gmra.mrb[0].mxu0 %v3613
      %v4650 = vpop.f32.mrb[0].mxu0
      %v4651 = vadd.f32 %v4526, %v4650
      %v4652 = vpop.f32.mrb[0].mxu0
      %4653 = vmatprep.mubr.f32.mxu0 %v3630
      %4654 = vmatmul.mubr.f32.gmra.mrb[0].mxu0 %v3629
      %v4655 = vpop.f32.mrb[0].mxu0
      %v4656 = vadd.f32 %v4531, %v4655
      %v4657 = vpop.f32.mrb[0].mxu0
      %4658 = vmatprep.mubr.f32.mxu0 %v3646
      %4659 = vmatmul.mubr.f32.gmra.mrb[0].mxu0 %v3645
      %v4660 = vpop.f32.mrb[0].mxu0
      %v4661 = vadd.f32 %v4536, %v4660
      %v4662 = vpop.f32.mrb[0].mxu0
      %4663 = vdwg.mxu0
      %4664 = vmatprep.subr.mxu0 0.0
      %4665 = vmatpush1.msra.mxu0 %v3843
      %4666 = vmatprep.subr.mxu0 0.0
      %4667 = vmatpush1.msra.mxu0 %v3844
      %4668 = vmatprep.subr.mxu0 0.0
      %4669 = vmatpush1.msra.mxu0 %v3845
      %4670 = vmatprep.subr.mxu0 0.0
      %4671 = vmatpush1.msra.mxu0 %v3846
      %4672 = vmatprep.subr.mxu0 0.0
      %4673 = vmatpush1.msra.mxu0 %v3847
      %4674 = vmatprep.subr.mxu0 0.0
      %4675 = vmatpush1.msra.mxu0 %v3848
      %4676 = vmatprep.subr.mxu0 0.0
      %4677 = vmatpush1.msra.mxu0 %v3849
      %4678 = vmatprep.subr.mxu0 0.0
      %4679 = vmatpush1.msra.mxu0 %v3850
      %4680 = vmatprep.subr.mxu0 0.0
      %4681 = vmatpush1.msra.mxu0 %v3851
      %4682 = vmatprep.subr.mxu0 0.0
      %4683 = vmatpush1.msra.mxu0 %v3852
      %4684 = vmatprep.subr.mxu0 0.0
      %4685 = vmatpush1.msra.mxu0 %v3853
      %4686 = vmatprep.subr.mxu0 0.0
      %4687 = vmatpush1.msra.mxu0 %v3854
      %4688 = vmatprep.subr.mxu0 0.0
      %4689 = vmatpush1.msra.mxu0 %v3855
      %4690 = vmatprep.subr.mxu0 0.0
      %4691 = vmatpush1.msra.mxu0 %v3856
      %4692 = vmatprep.subr.mxu0 0.0
      %4693 = vmatpush1.msra.mxu0 %v3857
      %4694 = vmatprep.subr.mxu0 0.0
      %4695 = vmatpush1.msra.mxu0 %v3858
      %4696 = vmatprep.subr.mxu0 0.0
      %4697 = vmatpush1.msra.mxu0 %v3859
      %4698 = vmatprep.subr.mxu0 0.0
      %4699 = vmatpush1.msra.mxu0 %v3860
      %4700 = vmatprep.subr.mxu0 0.0
      %4701 = vmatpush1.msra.mxu0 %v3861
      %4702 = vmatprep.subr.mxu0 0.0
      %4703 = vmatpush1.msra.mxu0 %v3862
      %4704 = vmatprep.subr.mxu0 0.0
      %4705 = vmatpush1.msra.mxu0 %v3863
      %4706 = vmatprep.subr.mxu0 0.0
      %4707 = vmatpush1.msra.mxu0 %v3864
      %4708 = vmatprep.subr.mxu0 0.0
      %4709 = vmatpush1.msra.mxu0 %v3865
      %4710 = vmatprep.subr.mxu0 0.0
      %4711 = vmatpush1.msra.mxu0 %v3866
      %4712 = vmatprep.subr.mxu0 0.0
      %4713 = vmatpush1.msra.mxu0 %v3867
      %4714 = vmatprep.subr.mxu0 0.0
      %4715 = vmatpush1.msra.mxu0 %v3868
      %4716 = vmatprep.subr.mxu0 0.0
      %4717 = vmatpush1.msra.mxu0 %v3869
      %4718 = vmatprep.subr.mxu0 0.0
      %4719 = vmatpush1.msra.mxu0 %v3870
      %4720 = vmatprep.subr.mxu0 0.0
      %4721 = vmatpush1.msra.mxu0 %v3871
      %4722 = vmatprep.subr.mxu0 0.0
      %4723 = vmatpush1.msra.mxu0 %v3872
      %4724 = vmatprep.subr.mxu0 0.0
      %4725 = vmatpush1.msra.mxu0 %v3873
      %4726 = vmatprep.subr.mxu0 0.0
      %4727 = vmatpush1.msra.mxu0 %v3874
      %4728 = vmatprep.mubr.f32.mxu0 %v3472
      %4729 = vmatmul.mubr.f32.gmra.mrb[0].mxu0 %v3471
      %v4730 = vpop.f32.mrb[0].mxu0
      %v4731 = vadd.f32 %v4606, %v4730
      %v4732 = vpop.f32.mrb[0].mxu0
      %4733 = vmatprep.mubr.f32.mxu0 %v3488
      %4734 = vmatmul.mubr.f32.gmra.mrb[0].mxu0 %v3487
      %v4735 = vpop.f32.mrb[0].mxu0
      %v4736 = vadd.f32 %v4611, %v4735
      %v4737 = vpop.f32.mrb[0].mxu0
      %4738 = vmatprep.mubr.f32.mxu0 %v3504
      %4739 = vmatmul.mubr.f32.gmra.mrb[0].mxu0 %v3503
      %v4740 = vpop.f32.mrb[0].mxu0
      %v4741 = vadd.f32 %v4616, %v4740
      %v4742 = vpop.f32.mrb[0].mxu0
      %4743 = vmatprep.mubr.f32.mxu0 %v3520
      %4744 = vmatmul.mubr.f32.gmra.mrb[0].mxu0 %v3519
      %v4745 = vpop.f32.mrb[0].mxu0
      %v4746 = vadd.f32 %v4621, %v4745
      %v4747 = vpop.f32.mrb[0].mxu0
      %4748 = vmatprep.mubr.f32.mxu0 %v3536
      %4749 = vmatmul.mubr.f32.gmra.mrb[0].mxu0 %v3535
      %v4750 = vpop.f32.mrb[0].mxu0
      %v4751 = vadd.f32 %v4626, %v4750
      %v4752 = vpop.f32.mrb[0].mxu0
      %4753 = vmatprep.mubr.f32.mxu0 %v3552
      %4754 = vmatmul.mubr.f32.gmra.mrb[0].mxu0 %v3551
      %v4755 = vpop.f32.mrb[0].mxu0
      %v4756 = vadd.f32 %v4631, %v4755
      %v4757 = vpop.f32.mrb[0].mxu0
      %4758 = vmatprep.mubr.f32.mxu0 %v3568
      %4759 = vmatmul.mubr.f32.gmra.mrb[0].mxu0 %v3567
      %v4760 = vpop.f32.mrb[0].mxu0
      %v4761 = vadd.f32 %v4636, %v4760
      %v4762 = vpop.f32.mrb[0].mxu0
      %4763 = vmatprep.mubr.f32.mxu0 %v3584
      %4764 = vmatmul.mubr.f32.gmra.mrb[0].mxu0 %v3583
      %v4765 = vpop.f32.mrb[0].mxu0
      %v4766 = vadd.f32 %v4641, %v4765
      %v4767 = vpop.f32.mrb[0].mxu0
      %4768 = vmatprep.mubr.f32.mxu0 %v3600
      %4769 = vmatmul.mubr.f32.gmra.mrb[0].mxu0 %v3599
      %v4770 = vpop.f32.mrb[0].mxu0
      %v4771 = vadd.f32 %v4646, %v4770
      %v4772 = vpop.f32.mrb[0].mxu0
      %4773 = vmatprep.mubr.f32.mxu0 %v3616
      %4774 = vmatmul.mubr.f32.gmra.mrb[0].mxu0 %v3615
      %v4775 = vpop.f32.mrb[0].mxu0
      %v4776 = vadd.f32 %v4651, %v4775
      %v4777 = vpop.f32.mrb[0].mxu0
      %4778 = vmatprep.mubr.f32.mxu0 %v3632
      %4779 = vmatmul.mubr.f32.gmra.mrb[0].mxu0 %v3631
      %v4780 = vpop.f32.mrb[0].mxu0
      %v4781 = vadd.f32 %v4656, %v4780
      %v4782 = vpop.f32.mrb[0].mxu0
      %4783 = vmatprep.mubr.f32.mxu0 %v3648
      %4784 = vmatmul.mubr.f32.gmra.mrb[0].mxu0 %v3647
      %v4785 = vpop.f32.mrb[0].mxu0
      %v4786 = vadd.f32 %v4661, %v4785
      %v4787 = vpop.f32.mrb[0].mxu0
      %4788 = vdwg.mxu0
      %4789 = vmatprep.subr.mxu0 0.0
      %4790 = vmatpush1.msra.mxu0 %v3875
      %4791 = vmatprep.subr.mxu0 0.0
      %4792 = vmatpush1.msra.mxu0 %v3876
      %4793 = vmatprep.subr.mxu0 0.0
      %4794 = vmatpush1.msra.mxu0 %v3877
      %4795 = vmatprep.subr.mxu0 0.0
      %4796 = vmatpush1.msra.mxu0 %v3878
      %4797 = vmatprep.subr.mxu0 0.0
      %4798 = vmatpush1.msra.mxu0 %v3879
      %4799 = vmatprep.subr.mxu0 0.0
      %4800 = vmatpush1.msra.mxu0 %v3880
      %4801 = vmatprep.subr.mxu0 0.0
      %4802 = vmatpush1.msra.mxu0 %v3881
      %4803 = vmatprep.subr.mxu0 0.0
      %4804 = vmatpush1.msra.mxu0 %v3882
      %4805 = vmatprep.subr.mxu0 0.0
      %4806 = vmatpush1.msra.mxu0 %v3883
      %4807 = vmatprep.subr.mxu0 0.0
      %4808 = vmatpush1.msra.mxu0 %v3884
      %4809 = vmatprep.subr.mxu0 0.0
      %4810 = vmatpush1.msra.mxu0 %v3885
      %4811 = vmatprep.subr.mxu0 0.0
      %4812 = vmatpush1.msra.mxu0 %v3886
      %4813 = vmatprep.subr.mxu0 0.0
      %4814 = vmatpush1.msra.mxu0 %v3887
      %4815 = vmatprep.subr.mxu0 0.0
      %4816 = vmatpush1.msra.mxu0 %v3888
      %4817 = vmatprep.subr.mxu0 0.0
      %4818 = vmatpush1.msra.mxu0 %v3889
      %4819 = vmatprep.subr.mxu0 0.0
      %4820 = vmatpush1.msra.mxu0 %v3890
      %4821 = vmatprep.subr.mxu0 0.0
      %4822 = vmatpush1.msra.mxu0 %v3891
      %4823 = vmatprep.subr.mxu0 0.0
      %4824 = vmatpush1.msra.mxu0 %v3892
      %4825 = vmatprep.subr.mxu0 0.0
      %4826 = vmatpush1.msra.mxu0 %v3893
      %4827 = vmatprep.subr.mxu0 0.0
      %4828 = vmatpush1.msra.mxu0 %v3894
      %4829 = vmatprep.subr.mxu0 0.0
      %4830 = vmatpush1.msra.mxu0 %v3895
      %4831 = vmatprep.subr.mxu0 0.0
      %4832 = vmatpush1.msra.mxu0 %v3896
      %4833 = vmatprep.subr.mxu0 0.0
      %4834 = vmatpush1.msra.mxu0 %v3897
      %4835 = vmatprep.subr.mxu0 0.0
      %4836 = vmatpush1.msra.mxu0 %v3898
      %4837 = vmatprep.subr.mxu0 0.0
      %4838 = vmatpush1.msra.mxu0 %v3899
      %4839 = vmatprep.subr.mxu0 0.0
      %4840 = vmatpush1.msra.mxu0 %v3900
      %4841 = vmatprep.subr.mxu0 0.0
      %4842 = vmatpush1.msra.mxu0 %v3901
      %4843 = vmatprep.subr.mxu0 0.0
      %4844 = vmatpush1.msra.mxu0 %v3902
      %4845 = vmatprep.subr.mxu0 0.0
      %4846 = vmatpush1.msra.mxu0 %v3903
      %4847 = vmatprep.subr.mxu0 0.0
      %4848 = vmatpush1.msra.mxu0 %v3904
      %4849 = vmatprep.subr.mxu0 0.0
      %4850 = vmatpush1.msra.mxu0 %v3905
      %4851 = vmatprep.subr.mxu0 0.0
      %4852 = vmatpush1.msra.mxu0 %v3906
      %4853 = vmatprep.mubr.f32.mxu0 %v3474
      %4854 = vmatmul.mubr.f32.gmra.mrb[0].mxu0 %v3473
      %v4855 = vpop.f32.mrb[0].mxu0
      %v4856 = vadd.f32 %v4731, %v4855
      %v4857 = vpop.f32.mrb[0].mxu0
      %4858 = vmatprep.mubr.f32.mxu0 %v3490
      %4859 = vmatmul.mubr.f32.gmra.mrb[0].mxu0 %v3489
      %v4860 = vpop.f32.mrb[0].mxu0
      %v4861 = vadd.f32 %v4736, %v4860
      %v4862 = vpop.f32.mrb[0].mxu0
      %4863 = vmatprep.mubr.f32.mxu0 %v3506
      %4864 = vmatmul.mubr.f32.gmra.mrb[0].mxu0 %v3505
      %v4865 = vpop.f32.mrb[0].mxu0
      %v4866 = vadd.f32 %v4741, %v4865
      %v4867 = vpop.f32.mrb[0].mxu0
      %4868 = vmatprep.mubr.f32.mxu0 %v3522
      %4869 = vmatmul.mubr.f32.gmra.mrb[0].mxu0 %v3521
      %v4870 = vpop.f32.mrb[0].mxu0
      %v4871 = vadd.f32 %v4746, %v4870
      %v4872 = vpop.f32.mrb[0].mxu0
      %4873 = vmatprep.mubr.f32.mxu0 %v3538
      %4874 = vmatmul.mubr.f32.gmra.mrb[0].mxu0 %v3537
      %v4875 = vpop.f32.mrb[0].mxu0
      %v4876 = vadd.f32 %v4751, %v4875
      %v4877 = vpop.f32.mrb[0].mxu0
      %4878 = vmatprep.mubr.f32.mxu0 %v3554
      %4879 = vmatmul.mubr.f32.gmra.mrb[0].mxu0 %v3553
      %v4880 = vpop.f32.mrb[0].mxu0
      %v4881 = vadd.f32 %v4756, %v4880
      %v4882 = vpop.f32.mrb[0].mxu0
      %4883 = vmatprep.mubr.f32.mxu0 %v3570
      %4884 = vmatmul.mubr.f32.gmra.mrb[0].mxu0 %v3569
      %v4885 = vpop.f32.mrb[0].mxu0
      %v4886 = vadd.f32 %v4761, %v4885
      %v4887 = vpop.f32.mrb[0].mxu0
      %4888 = vmatprep.mubr.f32.mxu0 %v3586
      %4889 = vmatmul.mubr.f32.gmra.mrb[0].mxu0 %v3585
      %v4890 = vpop.f32.mrb[0].mxu0
      %v4891 = vadd.f32 %v4766, %v4890
      %v4892 = vpop.f32.mrb[0].mxu0
      %4893 = vmatprep.mubr.f32.mxu0 %v3602
      %4894 = vmatmul.mubr.f32.gmra.mrb[0].mxu0 %v3601
      %v4895 = vpop.f32.mrb[0].mxu0
      %v4896 = vadd.f32 %v4771, %v4895
      %v4897 = vpop.f32.mrb[0].mxu0
      %4898 = vmatprep.mubr.f32.mxu0 %v3618
      %4899 = vmatmul.mubr.f32.gmra.mrb[0].mxu0 %v3617
      %v4900 = vpop.f32.mrb[0].mxu0
      %v4901 = vadd.f32 %v4776, %v4900
      %v4902 = vpop.f32.mrb[0].mxu0
      %4903 = vmatprep.mubr.f32.mxu0 %v3634
      %4904 = vmatmul.mubr.f32.gmra.mrb[0].mxu0 %v3633
      %v4905 = vpop.f32.mrb[0].mxu0
      %v4906 = vadd.f32 %v4781, %v4905
      %v4907 = vpop.f32.mrb[0].mxu0
      %4908 = vmatprep.mubr.f32.mxu0 %v3650
      %4909 = vmatmul.mubr.f32.gmra.mrb[0].mxu0 %v3649
      %v4910 = vpop.f32.mrb[0].mxu0
      %v4911 = vadd.f32 %v4786, %v4910
      %v4912 = vpop.f32.mrb[0].mxu0
      %4913 = vdwg.mxu0
      %v4914 = vld [vmem:[%s11] sm:$0x1]
      %v4915 = vld [vmem:[%s12] sm:$0x1]
      %v4916 = vadd.f32 %v2167, %v4856
      %v4917 = vadd.f32 %v2168, %v4861
      %v4918 = vadd.f32 %v2169, %v4866
      %v4919 = vadd.f32 %v2170, %v4871
      %v4920 = vadd.f32 %v2171, %v4876
      %v4921 = vadd.f32 %v2172, %v4881
      %v4922 = vadd.f32 %v2173, %v4886
      %v4923 = vadd.f32 %v2174, %v4891
      %v4924 = vadd.f32 %v2175, %v4896
      %v4925 = vadd.f32 %v2176, %v4901
      %v4926 = vadd.f32 %v2177, %v4906
      %v4927 = vadd.f32 %v2178, %v4911
      %v4928 = vsel %vm464, %v4916, 0.0
      %4929 = vadd.xlane.f32.xlu0 %v4928
      %v4930 = vpop.xlane.xlu0 %4929
      %v4931 = vsel %vm464, %v4917, 0.0
      %4932 = vadd.xlane.f32.xlu0 %v4931
      %v4933 = vpop.xlane.xlu0 %4932
      %v4934 = vsel %vm464, %v4918, 0.0
      %4935 = vadd.xlane.f32.xlu0 %v4934
      %v4936 = vpop.xlane.xlu0 %4935
      %v4937 = vsel %vm464, %v4919, 0.0
      %4938 = vadd.xlane.f32.xlu0 %v4937
      %v4939 = vpop.xlane.xlu0 %4938
      %v4940 = vsel %vm464, %v4920, 0.0
      %4941 = vadd.xlane.f32.xlu0 %v4940
      %v4942 = vpop.xlane.xlu0 %4941
      %v4943 = vsel %vm464, %v4921, 0.0
      %4944 = vadd.xlane.f32.xlu0 %v4943
      %v4945 = vpop.xlane.xlu0 %4944
      %v4946 = vsel %vm464, %v4922, 0.0
      %4947 = vadd.xlane.f32.xlu0 %v4946
      %v4948 = vpop.xlane.xlu0 %4947
      %v4949 = vsel %vm464, %v4923, 0.0
      %4950 = vadd.xlane.f32.xlu0 %v4949
      %v4951 = vpop.xlane.xlu0 %4950
      %v4952 = vsel %vm464, %v4924, 0.0
      %4953 = vadd.xlane.f32.xlu0 %v4952
      %v4954 = vpop.xlane.xlu0 %4953
      %v4955 = vsel %vm464, %v4925, 0.0
      %4956 = vadd.xlane.f32.xlu0 %v4955
      %v4957 = vpop.xlane.xlu0 %4956
      %v4958 = vsel %vm464, %v4926, 0.0
      %4959 = vadd.xlane.f32.xlu0 %v4958
      %v4960 = vpop.xlane.xlu0 %4959
      %v4961 = vsel %vm464, %v4927, 0.0
      %4962 = vadd.xlane.f32.xlu0 %v4961
      %v4963 = vpop.xlane.xlu0 %4962
      %v4964 = vmul.f32 %v4930, %v2022
      %v4965 = vmul.f32 %v4933, %v2022
      %v4966 = vmul.f32 %v4936, %v2022
      %v4967 = vmul.f32 %v4939, %v2022
      %v4968 = vmul.f32 %v4942, %v2022
      %v4969 = vmul.f32 %v4945, %v2022
      %v4970 = vmul.f32 %v4948, %v2022
      %v4971 = vmul.f32 %v4951, %v2022
      %v4972 = vmul.f32 %v4954, %v2022
      %v4973 = vmul.f32 %v4957, %v2022
      %v4974 = vmul.f32 %v4960, %v2022
      %v4975 = vmul.f32 %v4963, %v2022
      %v4976 = vsub.f32 %v4916, %v4964
      %v4977 = vsub.f32 %v4917, %v4965
      %v4978 = vsub.f32 %v4918, %v4966
      %v4979 = vsub.f32 %v4919, %v4967
      %v4980 = vsub.f32 %v4920, %v4968
      %v4981 = vsub.f32 %v4921, %v4969
      %v4982 = vsub.f32 %v4922, %v4970
      %v4983 = vsub.f32 %v4923, %v4971
      %v4984 = vsub.f32 %v4924, %v4972
      %v4985 = vsub.f32 %v4925, %v4973
      %v4986 = vsub.f32 %v4926, %v4974
      %v4987 = vsub.f32 %v4927, %v4975
      %v4988 = vmul.f32 %v4976, %v4976
      %v4989 = vmul.f32 %v4977, %v4977
      %v4990 = vmul.f32 %v4978, %v4978
      %v4991 = vmul.f32 %v4979, %v4979
      %v4992 = vmul.f32 %v4980, %v4980
      %v4993 = vmul.f32 %v4981, %v4981
      %v4994 = vmul.f32 %v4982, %v4982
      %v4995 = vmul.f32 %v4983, %v4983
      %v4996 = vmul.f32 %v4984, %v4984
      %v4997 = vmul.f32 %v4985, %v4985
      %v4998 = vmul.f32 %v4986, %v4986
      %v4999 = vmul.f32 %v4987, %v4987
      %v5000 = vsel %vm464, %v4988, 0.0
      %5001 = vadd.xlane.f32.xlu0 %v5000
      %v5002 = vpop.xlane.xlu0 %5001
      %v5003 = vsel %vm464, %v4989, 0.0
      %5004 = vadd.xlane.f32.xlu0 %v5003
      %v5005 = vpop.xlane.xlu0 %5004
      %v5006 = vsel %vm464, %v4990, 0.0
      %5007 = vadd.xlane.f32.xlu0 %v5006
      %v5008 = vpop.xlane.xlu0 %5007
      %v5009 = vsel %vm464, %v4991, 0.0
      %5010 = vadd.xlane.f32.xlu0 %v5009
      %v5011 = vpop.xlane.xlu0 %5010
      %v5012 = vsel %vm464, %v4992, 0.0
      %5013 = vadd.xlane.f32.xlu0 %v5012
      %v5014 = vpop.xlane.xlu0 %5013
      %v5015 = vsel %vm464, %v4993, 0.0
      %5016 = vadd.xlane.f32.xlu0 %v5015
      %v5017 = vpop.xlane.xlu0 %5016
      %v5018 = vsel %vm464, %v4994, 0.0
      %5019 = vadd.xlane.f32.xlu0 %v5018
      %v5020 = vpop.xlane.xlu0 %5019
      %v5021 = vsel %vm464, %v4995, 0.0
      %5022 = vadd.xlane.f32.xlu0 %v5021
      %v5023 = vpop.xlane.xlu0 %5022
      %v5024 = vsel %vm464, %v4996, 0.0
      %5025 = vadd.xlane.f32.xlu0 %v5024
      %v5026 = vpop.xlane.xlu0 %5025
      %v5027 = vsel %vm464, %v4997, 0.0
      %5028 = vadd.xlane.f32.xlu0 %v5027
      %v5029 = vpop.xlane.xlu0 %5028
      %v5030 = vsel %vm464, %v4998, 0.0
      %5031 = vadd.xlane.f32.xlu0 %v5030
      %v5032 = vpop.xlane.xlu0 %5031
      %v5033 = vsel %vm464, %v4999, 0.0
      %5034 = vadd.xlane.f32.xlu0 %v5033
      %v5035 = vpop.xlane.xlu0 %5034
      %v5036 = vmul.f32 %v5002, %v2022
      %v5037 = vmul.f32 %v5005, %v2022
      %v5038 = vmul.f32 %v5008, %v2022
      %v5039 = vmul.f32 %v5011, %v2022
      %v5040 = vmul.f32 %v5014, %v2022
      %v5041 = vmul.f32 %v5017, %v2022
      %v5042 = vmul.f32 %v5020, %v2022
      %v5043 = vmul.f32 %v5023, %v2022
      %v5044 = vmul.f32 %v5026, %v2022
      %v5045 = vmul.f32 %v5029, %v2022
      %v5046 = vmul.f32 %v5032, %v2022
      %v5047 = vmul.f32 %v5035, %v2022
      %v5048 = vadd.f32 %v5036, 1e-05
      %v5049 = vadd.f32 %v5037, 1e-05
      %v5050 = vadd.f32 %v5038, 1e-05
      %v5051 = vadd.f32 %v5039, 1e-05
      %v5052 = vadd.f32 %v5040, 1e-05
      %v5053 = vadd.f32 %v5041, 1e-05
      %v5054 = vadd.f32 %v5042, 1e-05
      %v5055 = vadd.f32 %v5043, 1e-05
      %v5056 = vadd.f32 %v5044, 1e-05
      %v5057 = vadd.f32 %v5045, 1e-05
      %v5058 = vadd.f32 %v5046, 1e-05
      %v5059 = vadd.f32 %v5047, 1e-05
      %v5060 = vrsqrt.pop %v5048
      %v5061 = vrsqrt.pop %v5049
      %v5062 = vrsqrt.pop %v5050
      %v5063 = vrsqrt.pop %v5051
      %v5064 = vrsqrt.pop %v5052
      %v5065 = vrsqrt.pop %v5053
      %v5066 = vrsqrt.pop %v5054
      %v5067 = vrsqrt.pop %v5055
      %v5068 = vrsqrt.pop %v5056
      %v5069 = vrsqrt.pop %v5057
      %v5070 = vrsqrt.pop %v5058
      %v5071 = vrsqrt.pop %v5059
      %v5072 = vmul.f32 %v4976, %v5060
      %v5073 = vmul.f32 %v4977, %v5061
      %v5074 = vmul.f32 %v4978, %v5062
      %v5075 = vmul.f32 %v4979, %v5063
      %v5076 = vmul.f32 %v4980, %v5064
      %v5077 = vmul.f32 %v4981, %v5065
      %v5078 = vmul.f32 %v4982, %v5066
      %v5079 = vmul.f32 %v4983, %v5067
      %v5080 = vmul.f32 %v4984, %v5068
      %v5081 = vmul.f32 %v4985, %v5069
      %v5082 = vmul.f32 %v4986, %v5070
      %v5083 = vmul.f32 %v4987, %v5071
      %v5085 = vlaneseq
      %v5086 = vshrl.u32 %v5085, 7
      %v5087 = vsub.s32 0, %v5086
      %v5088 = vrot.slane %v4914, %v5087
      %v5090 = vmul.f32 %v5072, %v5088
      %v5091 = vmul.f32 %v5073, %v5088
      %v5092 = vmul.f32 %v5074, %v5088
      %v5093 = vmul.f32 %v5075, %v5088
      %v5094 = vmul.f32 %v5076, %v5088
      %v5095 = vmul.f32 %v5077, %v5088
      %v5096 = vmul.f32 %v5078, %v5088
      %v5097 = vmul.f32 %v5079, %v5088
      %v5098 = vmul.f32 %v5080, %v5088
      %v5099 = vmul.f32 %v5081, %v5088
      %v5100 = vmul.f32 %v5082, %v5088
      %v5101 = vmul.f32 %v5083, %v5088
      %v5103 = vlaneseq
      %v5104 = vshrl.u32 %v5103, 7
      %v5105 = vsub.s32 0, %v5104
      %v5106 = vrot.slane %v4915, %v5105
      %v5108 = vadd.f32 %v5090, %v5106
      %v5109 = vadd.f32 %v5091, %v5106
      %v5110 = vadd.f32 %v5092, %v5106
      %v5111 = vadd.f32 %v5093, %v5106
      %v5112 = vadd.f32 %v5094, %v5106
      %v5113 = vadd.f32 %v5095, %v5106
      %v5114 = vadd.f32 %v5096, %v5106
      %v5115 = vadd.f32 %v5097, %v5106
      %v5116 = vadd.f32 %v5098, %v5106
      %v5117 = vadd.f32 %v5099, %v5106
      %v5118 = vadd.f32 %v5100, %v5106
      %v5119 = vadd.f32 %v5101, %v5106
      %5120 = vst.msk [vmem:[%s440] sm:$0xff] %vm464, %v5108
      %5121 = vst.msk [vmem:[%s440 + $0x8] sm:$0xff] %vm464, %v5109
      %5122 = vst.msk [vmem:[%s440 + $0x10] sm:$0xff] %vm464, %v5110
      %5123 = vst.msk [vmem:[%s440 + $0x18] sm:$0xff] %vm464, %v5111
      %5124 = vst.msk [vmem:[%s440 + $0x20] sm:$0xff] %vm464, %v5112
      %5125 = vst.msk [vmem:[%s440 + $0x28] sm:$0xff] %vm464, %v5113
      %5126 = vst.msk [vmem:[%s440 + $0x30] sm:$0xff] %vm464, %v5114
      %5127 = vst.msk [vmem:[%s440 + $0x38] sm:$0xff] %vm464, %v5115
      %5128 = vst.msk [vmem:[%s440 + $0x40] sm:$0xff] %vm464, %v5116
      %5129 = vst.msk [vmem:[%s440 + $0x48] sm:$0xff] %vm464, %v5117
      %5130 = vst.msk [vmem:[%s440 + $0x50] sm:$0xff] %vm464, %v5118
      %5131 = vst.msk [vmem:[%s440 + $0x58] sm:$0xff] %vm464, %v5119
      %p5132 = scmp.lt.s32.totalorder %s24, 1
      %s5133 = scalar_select %p5132, %s24, 1
      %s5134 = smul.addr %s5133, 12
      %s5135 = smul.addr %s5134, 8
      %s5136 = scalar_lea.vmem %s13, %s5135
      // Predicated region
      $region73: #{tpu_custom_call.1} parent=71 // pred_check
        %p5137 = pneg %p320
      $region74: #{tpu_custom_call.1} parent=71 // pred_check_branch
        %5139 = sbr.rel (%p5137) target = $region76
      $region75: #{tpu_custom_call.1} parent=71 // pred_region
        _
      $region76: #{tpu_custom_call.1} parent=71 // pred_fallthru
        _
    $region72: #{tpu_custom_call.1} parent=5 // pred_fallthru
      _
    %p5140 = scmp.le.s32.totalorder 2, %s19
    // Predicated region
    $region77: #{tpu_custom_call.1} parent=5 // pred_check
      %p5141 = pneg %p5140
    $region78: #{tpu_custom_call.1} parent=5 // pred_check_branch
      %5143 = sbr.rel (%p5141) target = $region80
    $region79: #{tpu_custom_call.1} parent=5 // pred_region
      %s5144 = ssub.s32 %s19, 2
      // Predicated region
      $region81: #{tpu_custom_call.1} parent=79 // pred_check
        %p5145 = pneg %p326
      $region82: #{tpu_custom_call.1} parent=79 // pred_check_branch
        %5147 = sbr.rel (%p5145) target = $region84
      $region83: #{tpu_custom_call.1} parent=79 // pred_region
        %p5148 = scmp.lt.s32.totalorder %s25, 1
        %s5149 = scalar_select %p5148, %s25, 1
        %s5150 = smul.addr %s5149, 12
        %s5151 = smul.addr %s5150, 8
        %s5152 = scalar_lea.vmem %s13, %s5151
      $region84: #{tpu_custom_call.1} parent=79 // pred_fallthru
        _
    $region80: #{tpu_custom_call.1} parent=5 // pred_fallthru
      _
  $region6: #{tpu_custom_call.1} parent=0 // loop_footer
    %s23 = sadd.s32 1, %s19
  $region7: #{tpu_custom_call.1} parent=0 // loop_footer_branch
    %18 = sbr.rel target = $region3
  $region8: #{tpu_custom_call.1} parent=0 // loop_exit
    _

</llo_original>
